<compile_context>
chip_gen: v7x
topology: tpu7x:2x2x1
jax: 0.10.0
libtpu: 0.0.40
codegen_flags: <defaults>
</compile_context>

<pallas_src>
import functools

import jax
import jax.numpy as jnp
import numpy as np
from jax.experimental import pallas as pl
from jax.experimental.pallas import tpu as pltpu

EPS = 1e-5


def _nbytes(shape, dtype):
    n = 1
    for s in shape:
        n *= int(s)
    return n * jnp.dtype(dtype).itemsize


def _vmem_cap_bytes():
    """Generation-aware scoped-VMEM ceiling (physical minus headroom)."""
    try:
        phys = int(getattr(pltpu.get_tpu_info(), "vmem_capacity_bytes"))
    except Exception:
        phys = 64 << 20                     # conservative (v7x-sized) default
    return max(min(phys - (16 << 20), 100 << 20), 16 << 20)


def _max_step_bytes(TH, W, P, Cin, Cout, x_dtype, mm_dtype, store_dtype):
    """Rough worst-case per-grid-step VMEM footprint (double-buffered I/O)."""
    xb = jnp.dtype(x_dtype).itemsize
    sb = jnp.dtype(store_dtype).itemsize
    mb = jnp.dtype(mm_dtype).itemsize
    # conv1: x tile + y1 tile (x2 buffering) + f32 matmul out + casted x + w1
    k1 = (2 * (TH * W * Cin * xb + TH * W * P * sb)
          + TH * W * (Cin * mb + P * 4) + Cin * P * mb)
    # conv2: halo+cur in, y2 out, pad scratch, patch/acc temps, w2
    pad = (TH + 4) * (W + 10) * P * mb
    tmp2 = (2 * TH * W * P * 4 if P >= 128
            else TH * W * 9 * P * mb + 2 * TH * W * P * 4)
    k2 = (2 * ((TH + 4) * W * P * sb + TH * W * P * sb)
          + pad + tmp2 + 9 * P * P * mb)
    # conv3
    k3 = (2 * (TH * W * P * sb + TH * W * Cout * sb)
          + TH * W * (P * 4 + P * mb + Cout * 4) + P * Cout * mb)
    # epilogue (residual add)
    k4 = (2 * (TH * W * Cout * sb + TH * W * Cin * xb + TH * W * Cout * xb)
          + TH * W * Cout * 4)
    return max(k1, k2, k3, k4)


def _pick_tile_rows(requested, H, B, W, P, Cin, Cout,
                    x_dtype, mm_dtype, store_dtype, cap):
    """Largest even divisor of H whose per-step footprint fits ~half of cap."""
    if requested is not None and requested % 2 == 0 and H % requested == 0:
        return requested
    budget = cap // 2
    for d in sorted((d for d in range(2, H + 1, 2) if H % d == 0),
                    reverse=True):
        if B == 1 and d == H and H >= 4:
            continue            # keep >= 2 grid steps (v7x has 2 TensorCores)
        if _max_step_bytes(d, W, P, Cin, Cout,
                           x_dtype, mm_dtype, store_dtype) <= budget:
            return d
    return 2


def _finalize_bn(stats, gamma, beta, count):
    """stats: (B, nR, 2, C) per-tile (sum, sum_sq) -> fused (scale, offset)."""
    s = jnp.sum(stats, axis=(0, 1))                        # (2, C), f32
    mean = s[0] / count
    var = jnp.maximum(s[1] / count - mean * mean, 0.0)     # biased batch var
    scale = gamma * jax.lax.rsqrt(var + EPS)
    offset = beta - mean * scale
    return jnp.stack([scale, offset], axis=0).astype(jnp.float32)   # (2, C)


def atrous_bottleneck_nhwc(x, params, *, tile_rows=None,
                           mm_dtype=jnp.bfloat16, out_dtype=None):
    """Forward pass of AtrousBottleneck (stride=1, downsample=None), NHWC.

    x: (B, H, W, Cin) with Cin == 4 * planes.  Returns (B, H, W, Cin).
    """
    w1, g1, b1, w2, g2, b2, w3, g3, b3 = params
    B, H, W, Cin = x.shape
    P = w1.shape[1]                      # planes
    Cout = w3.shape[1]                   # 4 * planes
    if Cin != Cout:
        raise ValueError(
            f"downsample=None requires inplanes == 4*planes "
            f"(got Cin={Cin}, 4*planes={Cout})")
    if H % 2 != 0:
        raise ValueError("H must be even (2-row halo blocks)")

    f32 = jnp.float32
    store_dtype = mm_dtype               # dtype of HBM intermediate activations
    out_dtype = x.dtype if out_dtype is None else out_dtype

    cap = _vmem_cap_bytes()
    TH = _pick_tile_rows(tile_rows, H, B, W, P, Cin, Cout,
                         x.dtype, mm_dtype, store_dtype, cap)
    nR = H // TH
    grid = (B, nR)
    count = float(B * H * W)

    need = _max_step_bytes(TH, W, P, Cin, Cout, x.dtype, mm_dtype, store_dtype)
    cparams = pltpu.CompilerParams(
        dimension_semantics=("parallel", "parallel"),
        vmem_limit_bytes=int(min(max(need + (8 << 20), 16 << 20), cap)))

    # Weights re-laid-out / pre-cast once (HBM stays narrow for DMA).
    w1c = w1.astype(mm_dtype)                      # (Cin, P)
    w2m = w2.reshape(9, P, P).astype(mm_dtype)     # (kh*3+kw, cin, cout)
    w3c = w3.astype(mm_dtype)                      # (P, Cout)

    # ------------------------------ block specs -----------------------------
    def tile_spec(c):
        return pl.BlockSpec((1, TH, W, c), lambda b, r: (b, r, 0, 0))

    def stats_spec(c):
        return pl.BlockSpec((1, 1, 2, c), lambda b, r: (b, r, 0, 0))

    def full_spec(arr):
        return pl.BlockSpec(arr.shape, lambda b, r: (0,) * arr.ndim)

    halo = TH // 2                       # row-block index unit for 2-row halos
    prev_spec = pl.BlockSpec(            # 2-row tail of the previous strip
        (1, 2, W, P),
        lambda b, r: (b, jnp.maximum(r * halo - 1, 0), 0, 0))
    next_spec = pl.BlockSpec(            # 2-row head of the next strip
        (1, 2, W, P),
        lambda b, r: (b, jnp.minimum((r + 1) * halo, H // 2 - 1), 0, 0))

    # -------- kernel 1: conv1 (1x1) + per-tile BN1 partial statistics -------
    def k_conv1(x_ref, w_ref, y_ref, st_ref):
        xm = x_ref[0].astype(mm_dtype).reshape(TH * W, Cin)
        y = jnp.dot(xm, w_ref[...], preferred_element_type=f32)   # (TH*W, P)
        y_ref[0] = y.astype(store_dtype).reshape(TH, W, P)
        # BN stats straight from the f32 accumulator (no bf16 round trip).
        st_ref[0, 0] = jnp.concatenate(
            [jnp.sum(y, axis=0, keepdims=True),
             jnp.sum(y * y, axis=0, keepdims=True)], axis=0)

    y1_raw, st1 = pl.pallas_call(
        k_conv1,
        grid=grid,
        in_specs=[tile_spec(Cin), full_spec(w1c)],
        out_specs=(tile_spec(P), stats_spec(P)),
        out_shape=(jax.ShapeDtypeStruct((B, H, W, P), store_dtype),
                   jax.ShapeDtypeStruct((B, nR, 2, P), f32)),
        compiler_params=cparams,
        cost_estimate=pl.CostEstimate(
            flops=2 * B * H * W * Cin * P, transcendentals=0,
            bytes_accessed=_nbytes(x.shape, x.dtype)
            + _nbytes((B, H, W, P), store_dtype)),
    )(x, w1c)
    sc1 = _finalize_bn(st1, g1, b1, count)          # (2, P): fused scale/offset

    # ------ kernel 2: BN1+ReLU (fused FMA) -> dilated 3x3 conv2 -------------
    # Padded window layout: (TH+4, W+10, P) in mm_dtype.  Interior data lives
    # at rows [2, TH+2) and cols [8, W+8) (8-aligned sublane store); zero-pad
    # columns are [6, 8) and [W+8, W+10); cols [0, 6) are never read.
    PADW = W + 10

    def k_conv2(prev_ref, cur_ref, nxt_ref, sc_ref, w_ref, y_ref, st_ref,
                pad_ref):
        r = pl.program_id(1)
        n_r = pl.num_programs(1)
        sc = sc_ref[...]                                        # (2, P)
        s = sc[0:1, :].reshape(1, 1, P)
        t = sc[1:2, :].reshape(1, 1, P)

        def act(v):                      # BN1 as a single FMA, then ReLU
            return jnp.maximum(v.astype(f32) * s + t, 0.0)

        zcol = jnp.zeros((TH + 4, 2, P), mm_dtype)
        pad_ref[:, 6:8, :] = zcol
        pad_ref[:, W + 8:W + 10, :] = zcol
        pad_ref[0:2, 8:W + 8, :] = jnp.where(
            r > 0, act(prev_ref[0]), 0.0).astype(mm_dtype)
        pad_ref[TH + 2:TH + 4, 8:W + 8, :] = jnp.where(
            r < n_r - 1, act(nxt_ref[0]), 0.0).astype(mm_dtype)
        pad_ref[2:TH + 2, 8:W + 8, :] = act(cur_ref[0]).astype(mm_dtype)

        if P >= 128:
            # 9 accumulating MXU dots; K = P per dot is already deep and this
            # avoids the lane-axis concatenate and the (TH*W, 9P) temp.
            y = jnp.zeros((TH * W, P), f32)
            for kh in range(3):
                for kw in range(3):
                    tap = pad_ref[2 * kh:2 * kh + TH,
                                  6 + 2 * kw:6 + 2 * kw + W, :]
                    y = y + jnp.dot(tap.reshape(TH * W, P),
                                    w_ref[kh * 3 + kw],
                                    preferred_element_type=f32)
        else:
            # small planes: single im2col matmul with K = 9*P
            taps = [pad_ref[2 * kh:2 * kh + TH, 6 + 2 * kw:6 + 2 * kw + W, :]
                    for kh in range(3) for kw in range(3)]
            patches = jnp.concatenate(taps, axis=-1).reshape(TH * W, 9 * P)
            y = jnp.dot(patches, w_ref[...].reshape(9 * P, P),
                        preferred_element_type=f32)

        y_ref[0] = y.astype(store_dtype).reshape(TH, W, P)
        st_ref[0, 0] = jnp.concatenate(
            [jnp.sum(y, axis=0, keepdims=True),
             jnp.sum(y * y, axis=0, keepdims=True)], axis=0)

    y2_raw, st2 = pl.pallas_call(
        k_conv2,
        grid=grid,
        in_specs=[prev_spec, tile_spec(P), next_spec,
                  full_spec(sc1), full_spec(w2m)],
        out_specs=(tile_spec(P), stats_spec(P)),
        out_shape=(jax.ShapeDtypeStruct((B, H, W, P), store_dtype),
                   jax.ShapeDtypeStruct((B, nR, 2, P), f32)),
        scratch_shapes=[pltpu.VMEM((TH + 4, PADW, P), mm_dtype)],
        compiler_params=cparams,
        cost_estimate=pl.CostEstimate(
            flops=2 * B * H * W * 9 * P * P + 4 * B * H * W * P,
            transcendentals=0,
            bytes_accessed=2 * _nbytes((B, H, W, P), store_dtype)),
    )(y1_raw, y1_raw, y1_raw, sc1, w2m)
    sc2 = _finalize_bn(st2, g2, b2, count)

    # -------- kernel 3: BN2+ReLU (fused FMA) -> conv3 (1x1, P -> 4P) --------
    def k_conv3(y2_ref, sc_ref, w_ref, y_ref, st_ref):
        sc = sc_ref[...]
        s = sc[0:1, :].reshape(1, 1, P)
        t = sc[1:2, :].reshape(1, 1, P)
        a = jnp.maximum(y2_ref[0].astype(f32) * s + t, 0.0)
        y = jnp.dot(a.reshape(TH * W, P).astype(mm_dtype), w_ref[...],
                    preferred_element_type=f32)
        y_ref[0] = y.astype(store_dtype).reshape(TH, W, Cout)
        st_ref[0, 0] = jnp.concatenate(
            [jnp.sum(y, axis=0, keepdims=True),
             jnp.sum(y * y, axis=0, keepdims=True)], axis=0)

    y3_raw, st3 = pl.pallas_call(
        k_conv3,
        grid=grid,
        in_specs=[tile_spec(P), full_spec(sc2), full_spec(w3c)],
        out_specs=(tile_spec(Cout), stats_spec(Cout)),
        out_shape=(jax.ShapeDtypeStruct((B, H, W, Cout), store_dtype),
                   jax.ShapeDtypeStruct((B, nR, 2, Cout), f32)),
        compiler_params=cparams,
        cost_estimate=pl.CostEstimate(
            flops=2 * B * H * W * P * Cout, transcendentals=0,
            bytes_accessed=_nbytes((B, H, W, P), store_dtype)
            + _nbytes((B, H, W, Cout), store_dtype)),
    )(y2_raw, sc2, w3c)
    sc3 = _finalize_bn(st3, g3, b3, count)

    # ---------- kernel 4: BN3 (fused FMA) + residual add + ReLU -------------
    def k_out(y3_ref, x_ref, sc_ref, o_ref):
        sc = sc_ref[...]
        s = sc[0:1, :].reshape(1, 1, Cout)
        t = sc[1:2, :].reshape(1, 1, Cout)
        y = y3_ref[0].astype(f32) * s + t
        o_ref[0] = jnp.maximum(y + x_ref[0].astype(f32), 0.0).astype(o_ref.dtype)

    out = pl.pallas_call(
        k_out,
        grid=grid,
        in_specs=[tile_spec(Cout), tile_spec(Cin), full_spec(sc3)],
        out_specs=tile_spec(Cout),
        out_shape=jax.ShapeDtypeStruct((B, H, W, Cout), out_dtype),
        compiler_params=cparams,
        cost_estimate=pl.CostEstimate(
            flops=4 * B * H * W * Cout, transcendentals=0,
            bytes_accessed=_nbytes((B, H, W, Cout), store_dtype)   # y3 read
            + _nbytes(x.shape, x.dtype)                            # residual
            + _nbytes((B, H, W, Cout), out_dtype)),                # writeback
    )(y3_raw, x, sc3)
    return out


def atrous_bottleneck_nchw(x_nchw, params, **kw):
    """Drop-in PyTorch-layout adapter (prefer the NHWC entry point)."""
    x = jnp.transpose(x_nchw, (0, 2, 3, 1))
    return jnp.transpose(atrous_bottleneck_nhwc(x, params, **kw), (0, 3, 1, 2))


def make_params(key, inplanes, planes):
    """Deterministic synthetic weights (PyTorch conv weights, re-laid-out)."""
    k1, k2, k3 = jax.random.split(key, 3)
    w1 = 0.1 * jax.random.normal(k1, (inplanes, planes), jnp.float32)
    w2 = 0.1 * jax.random.normal(k2, (3, 3, planes, planes), jnp.float32)  # HWIO
    w3 = 0.1 * jax.random.normal(k3, (planes, 4 * planes), jnp.float32)
    g1, b1 = jnp.ones((planes,), jnp.float32), jnp.zeros((planes,), jnp.float32)
    g2, b2 = jnp.ones((planes,), jnp.float32), jnp.zeros((planes,), jnp.float32)
    g3 = jnp.ones((4 * planes,), jnp.float32)
    b3 = jnp.zeros((4 * planes,), jnp.float32)
    return (w1, g1, b1, w2, g2, b2, w3, g3, b3)


def reference_nhwc(x, params):
    """Pure-JAX f32 reference (training-mode BatchNorm), NHWC."""
    w1, g1, b1, w2, g2, b2, w3, g3, b3 = params
    dn = ('NHWC', 'HWIO', 'NHWC')

    def bn(y, g, b):
        mean = jnp.mean(y, axis=(0, 1, 2), keepdims=True)
        var = jnp.mean((y - mean) ** 2, axis=(0, 1, 2), keepdims=True)
        return (y - mean) * jax.lax.rsqrt(var + EPS) * g + b

    y = jax.lax.conv_general_dilated(x, w1[None, None], (1, 1), 'VALID',
                                     dimension_numbers=dn)
    y = jax.nn.relu(bn(y, g1, b1))
    y = jax.lax.conv_general_dilated(y, w2, (1, 1), [(2, 2), (2, 2)],
                                     rhs_dilation=(2, 2), dimension_numbers=dn)
    y = jax.nn.relu(bn(y, g2, b2))
    y = jax.lax.conv_general_dilated(y, w3[None, None], (1, 1), 'VALID',
                                     dimension_numbers=dn)
    y = bn(y, g3, b3)
    return jax.nn.relu(y + x)


if __name__ == "__main__":
    key = jax.random.PRNGKey(0)
    kx, kp = jax.random.split(key)

    planes = 4
    inplanes = 4 * planes          # downsample=None => residual requires this
    B, H, W = 2, 16, 16

    x = jax.random.normal(kx, (B, H, W, inplanes), jnp.float32)   # NHWC
    params = make_params(kp, inplanes, planes)

    ref = jax.block_until_ready(reference_nhwc(x, params))

    # Exact-path run (f32 matmul operands, auto tile selection): tight check
    # of tiling / halo / two-pass global-BN machinery vs the f32 reference.
    fwd_f32 = jax.jit(functools.partial(
        atrous_bottleneck_nhwc, mm_dtype=jnp.float32))
    out_f32 = jax.block_until_ready(fwd_f32(x, params))
    np.testing.assert_allclose(np.asarray(out_f32), np.asarray(ref),
                               rtol=2e-3, atol=2e-3)

    # Perf-path run (bf16 MXU operands + bf16 HBM intermediates + bf16 pad
    # scratch): loose check only -- bf16 rounding through three BatchNorm
    # normalizations amplifies per-element error; exact correctness is
    # established by the f32 run above.
    fwd_bf16 = jax.jit(functools.partial(
        atrous_bottleneck_nhwc, mm_dtype=jnp.bfloat16))
    out_bf16 = jax.block_until_ready(fwd_bf16(x, params))
    np.testing.assert_allclose(np.asarray(out_bf16), np.asarray(ref),
                               rtol=1e-1, atol=1e-1)

    print("KERNEL_OK")
</pallas_src>

<mosaic_0001>
module attributes {stable_mosaic.version = 11 : i64} {
  func.func @k_conv1(%arg0: i32, %arg1: i32, %arg2: memref<1x16x16x16xf32, #tpu.memory_space<vmem>>, %arg3: memref<16x4xf32, #tpu.memory_space<vmem>>, %arg4: memref<1x16x16x4xf32, #tpu.memory_space<vmem>>, %arg5: memref<1x1x2x4xf32, #tpu.memory_space<vmem>>) attributes {dimension_semantics = [#tpu.dimension_semantics<parallel>, #tpu.dimension_semantics<parallel>], iteration_bounds = array<i64: 2, 1>, scalar_prefetch = 0 : i64, scratch_operands = 0 : i64, tpu.core_type = #tpu.core_type<tc>, window_params = [{transform_indices = @transform_0, window_bounds = array<i64: 1, 16, 16, 16>}, {pipeline_mode = #tpu.pipeline_mode<synchronous>, transform_indices = @transform_1, window_bounds = array<i64: 16, 4>}, {transform_indices = @transform_2, window_bounds = array<i64: 1, 16, 16, 4>}, {transform_indices = @transform_3, window_bounds = array<i64: 1, 1, 2, 4>}]} {
    %c0 = arith.constant 0 : index
    %c0_0 = arith.constant 0 : index
    %c0_1 = arith.constant 0 : index
    %c0_2 = arith.constant 0 : index
    %0 = vector.load %arg2[%c0, %c0_0, %c0_1, %c0_2] : memref<1x16x16x16xf32, #tpu.memory_space<vmem>>, vector<1x16x16x16xf32>
    %1 = vector.shape_cast %0 : vector<1x16x16x16xf32> to vector<16x16x16xf32>
    %2 = vector.shape_cast %1 : vector<16x16x16xf32> to vector<256x16xf32>
    %c0_3 = arith.constant 0 : index
    %c0_4 = arith.constant 0 : index
    %3 = vector.load %arg3[%c0_3, %c0_4] : memref<16x4xf32, #tpu.memory_space<vmem>>, vector<16x4xf32>
    %cst = arith.constant dense<0.000000e+00> : vector<256x4xf32>
    %4 = tpu.matmul %2, %3, %cst {dimension_numbers = #tpu.dot_dimension_numbers<[1], [0], [0], [1], [0, 0, 1, 1], [], []>} : vector<256x16xf32>, vector<16x4xf32>, vector<256x4xf32> -> vector<256x4xf32>
    %5 = vector.shape_cast %4 : vector<256x4xf32> to vector<16x16x4xf32>
    %c0_5 = arith.constant 0 : index
    %c0_6 = arith.constant 0 : index
    %c0_7 = arith.constant 0 : index
    %c0_8 = arith.constant 0 : index
    %6 = vector.load %arg4[%c0_5, %c0_6, %c0_7, %c0_8] : memref<1x16x16x4xf32, #tpu.memory_space<vmem>>, vector<1x16x16x4xf32>
    %7 = vector.shape_cast %6 : vector<1x16x16x4xf32> to vector<16x16x4xf32>
    %8 = vector.shape_cast %5 : vector<16x16x4xf32> to vector<1x16x16x4xf32>
    tpu.vector_store %arg4[%c0_5, %c0_6, %c0_7, %c0_8], %8 {strides = array<i32>} : memref<1x16x16x4xf32, #tpu.memory_space<vmem>>, vector<1x16x16x4xf32>,
    %cst_9 = arith.constant dense<0.000000e+00> : vector<4xf32>
    %9 = vector.multi_reduction <add>, %4, %cst_9 [0] : vector<256x4xf32> to vector<4xf32>
    %10 = vector.shape_cast %9 : vector<4xf32> to vector<1x4xf32>
    %11 = arith.mulf %4, %4 : vector<256x4xf32>
    %cst_10 = arith.constant dense<0.000000e+00> : vector<4xf32>
    %12 = vector.multi_reduction <add>, %11, %cst_10 [0] : vector<256x4xf32> to vector<4xf32>
    %13 = vector.shape_cast %12 : vector<4xf32> to vector<1x4xf32>
    %14 = tpu.concatenate %10, %13 in 0 : vector<1x4xf32>, vector<1x4xf32> -> vector<2x4xf32>
    %c0_11 = arith.constant 0 : index
    %c0_12 = arith.constant 0 : index
    %c0_13 = arith.constant 0 : index
    %c0_14 = arith.constant 0 : index
    %15 = vector.load %arg5[%c0_11, %c0_12, %c0_13, %c0_14] : memref<1x1x2x4xf32, #tpu.memory_space<vmem>>, vector<1x1x2x4xf32>
    %16 = vector.shape_cast %15 : vector<1x1x2x4xf32> to vector<2x4xf32>
    %17 = vector.shape_cast %14 : vector<2x4xf32> to vector<1x1x2x4xf32>
    tpu.vector_store %arg5[%c0_11, %c0_12, %c0_13, %c0_14], %17 {strides = array<i32>} : memref<1x1x2x4xf32, #tpu.memory_space<vmem>>, vector<1x1x2x4xf32>,
    return
  }
  func.func @transform_0(%arg0: i32, %arg1: i32) -> (i32, i32, i32, i32) {
    %c0_i32 = arith.constant 0 : i32
    %c0_i32_0 = arith.constant 0 : i32
    %c0_i32_1 = arith.constant 0 : i32
    return %arg0, %arg1, %c0_i32, %c0_i32_0 : i32, i32, i32, i32
  }
  func.func @transform_1(%arg0: i32, %arg1: i32) -> (i32, i32) {
    %c0_i32 = arith.constant 0 : i32
    %c0_i32_0 = arith.constant 0 : i32
    %c0_i32_1 = arith.constant 0 : i32
    return %c0_i32, %c0_i32_0 : i32, i32
  }
  func.func @transform_2(%arg0: i32, %arg1: i32) -> (i32, i32, i32, i32) {
    %c0_i32 = arith.constant 0 : i32
    %c0_i32_0 = arith.constant 0 : i32
    %c0_i32_1 = arith.constant 0 : i32
    return %arg0, %arg1, %c0_i32, %c0_i32_0 : i32, i32, i32, i32
  }
  func.func @transform_3(%arg0: i32, %arg1: i32) -> (i32, i32, i32, i32) {
    %c0_i32 = arith.constant 0 : i32
    %c0_i32_0 = arith.constant 0 : i32
    %c0_i32_1 = arith.constant 0 : i32
    return %arg0, %arg1, %c0_i32, %c0_i32_0 : i32, i32, i32, i32
  }
}

module attributes {stable_mosaic.version = 11 : i64} {
  func.func @k_conv3(%arg0: i32, %arg1: i32, %arg2: memref<1x16x16x4xf32, #tpu.memory_space<vmem>>, %arg3: memref<2x4xf32, #tpu.memory_space<vmem>>, %arg4: memref<4x16xf32, #tpu.memory_space<vmem>>, %arg5: memref<1x16x16x16xf32, #tpu.memory_space<vmem>>, %arg6: memref<1x1x2x16xf32, #tpu.memory_space<vmem>>) attributes {dimension_semantics = [#tpu.dimension_semantics<parallel>, #tpu.dimension_semantics<parallel>], iteration_bounds = array<i64: 2, 1>, scalar_prefetch = 0 : i64, scratch_operands = 0 : i64, tpu.core_type = #tpu.core_type<tc>, window_params = [{transform_indices = @transform_0, window_bounds = array<i64: 1, 16, 16, 4>}, {pipeline_mode = #tpu.pipeline_mode<synchronous>, transform_indices = @transform_1, window_bounds = array<i64: 2, 4>}, {pipeline_mode = #tpu.pipeline_mode<synchronous>, transform_indices = @transform_2, window_bounds = array<i64: 4, 16>}, {transform_indices = @transform_3, window_bounds = array<i64: 1, 16, 16, 16>}, {transform_indices = @transform_4, window_bounds = array<i64: 1, 1, 2, 16>}]} {
    %c0 = arith.constant 0 : index
    %c0_0 = arith.constant 0 : index
    %0 = vector.load %arg3[%c0, %c0_0] : memref<2x4xf32, #tpu.memory_space<vmem>>, vector<2x4xf32>
    %1 = vector.extract_strided_slice %0 {offsets = [0, 0], sizes = [1, 4], strides = [1, 1]} : vector<2x4xf32> to vector<1x4xf32>
    %2 = vector.shape_cast %1 : vector<1x4xf32> to vector<1x1x4xf32>
    %3 = vector.extract_strided_slice %0 {offsets = [1, 0], sizes = [1, 4], strides = [1, 1]} : vector<2x4xf32> to vector<1x4xf32>
    %4 = vector.shape_cast %3 : vector<1x4xf32> to vector<1x1x4xf32>
    %c0_1 = arith.constant 0 : index
    %c0_2 = arith.constant 0 : index
    %c0_3 = arith.constant 0 : index
    %c0_4 = arith.constant 0 : index
    %5 = vector.load %arg2[%c0_1, %c0_2, %c0_3, %c0_4] : memref<1x16x16x4xf32, #tpu.memory_space<vmem>>, vector<1x16x16x4xf32>
    %6 = vector.shape_cast %5 : vector<1x16x16x4xf32> to vector<16x16x4xf32>
    %7 = vector.broadcast %2 : vector<1x1x4xf32> to vector<16x16x4xf32>
    %8 = arith.mulf %6, %7 : vector<16x16x4xf32>
    %9 = vector.broadcast %4 : vector<1x1x4xf32> to vector<16x16x4xf32>
    %10 = arith.addf %8, %9 : vector<16x16x4xf32>
    %cst = arith.constant 0.000000e+00 : f32
    %11 = vector.broadcast %cst : f32 to vector<16x16x4xf32>
    %12 = arith.maximumf %10, %11 : vector<16x16x4xf32>
    %13 = vector.shape_cast %12 : vector<16x16x4xf32> to vector<256x4xf32>
    %c0_5 = arith.constant 0 : index
    %c0_6 = arith.constant 0 : index
    %14 = vector.load %arg4[%c0_5, %c0_6] : memref<4x16xf32, #tpu.memory_space<vmem>>, vector<4x16xf32>
    %cst_7 = arith.constant dense<0.000000e+00> : vector<256x16xf32>
    %15 = tpu.matmul %13, %14, %cst_7 {dimension_numbers = #tpu.dot_dimension_numbers<[1], [0], [0], [1], [0, 0, 1, 1], [], []>} : vector<256x4xf32>, vector<4x16xf32>, vector<256x16xf32> -> vector<256x16xf32>
    %16 = vector.shape_cast %15 : vector<256x16xf32> to vector<16x16x16xf32>
    %c0_8 = arith.constant 0 : index
    %c0_9 = arith.constant 0 : index
    %c0_10 = arith.constant 0 : index
    %c0_11 = arith.constant 0 : index
    %17 = vector.load %arg5[%c0_8, %c0_9, %c0_10, %c0_11] : memref<1x16x16x16xf32, #tpu.memory_space<vmem>>, vector<1x16x16x16xf32>
    %18 = vector.shape_cast %17 : vector<1x16x16x16xf32> to vector<16x16x16xf32>
    %19 = vector.shape_cast %16 : vector<16x16x16xf32> to vector<1x16x16x16xf32>
    tpu.vector_store %arg5[%c0_8, %c0_9, %c0_10, %c0_11], %19 {strides = array<i32>} : memref<1x16x16x16xf32, #tpu.memory_space<vmem>>, vector<1x16x16x16xf32>,
    %cst_12 = arith.constant dense<0.000000e+00> : vector<16xf32>
    %20 = vector.multi_reduction <add>, %15, %cst_12 [0] : vector<256x16xf32> to vector<16xf32>
    %21 = vector.shape_cast %20 : vector<16xf32> to vector<1x16xf32>
    %22 = arith.mulf %15, %15 : vector<256x16xf32>
    %cst_13 = arith.constant dense<0.000000e+00> : vector<16xf32>
    %23 = vector.multi_reduction <add>, %22, %cst_13 [0] : vector<256x16xf32> to vector<16xf32>
    %24 = vector.shape_cast %23 : vector<16xf32> to vector<1x16xf32>
    %25 = tpu.concatenate %21, %24 in 0 : vector<1x16xf32>, vector<1x16xf32> -> vector<2x16xf32>
    %c0_14 = arith.constant 0 : index
    %c0_15 = arith.constant 0 : index
    %c0_16 = arith.constant 0 : index
    %c0_17 = arith.constant 0 : index
    %26 = vector.load %arg6[%c0_14, %c0_15, %c0_16, %c0_17] : memref<1x1x2x16xf32, #tpu.memory_space<vmem>>, vector<1x1x2x16xf32>
    %27 = vector.shape_cast %26 : vector<1x1x2x16xf32> to vector<2x16xf32>
    %28 = vector.shape_cast %25 : vector<2x16xf32> to vector<1x1x2x16xf32>
    tpu.vector_store %arg6[%c0_14, %c0_15, %c0_16, %c0_17], %28 {strides = array<i32>} : memref<1x1x2x16xf32, #tpu.memory_space<vmem>>, vector<1x1x2x16xf32>,
    return
  }
  func.func @transform_0(%arg0: i32, %arg1: i32) -> (i32, i32, i32, i32) {
    %c0_i32 = arith.constant 0 : i32
    %c0_i32_0 = arith.constant 0 : i32
    %c0_i32_1 = arith.constant 0 : i32
    return %arg0, %arg1, %c0_i32, %c0_i32_0 : i32, i32, i32, i32
  }
  func.func @transform_1(%arg0: i32, %arg1: i32) -> (i32, i32) {
    %c0_i32 = arith.constant 0 : i32
    %c0_i32_0 = arith.constant 0 : i32
    %c0_i32_1 = arith.constant 0 : i32
    return %c0_i32, %c0_i32_0 : i32, i32
  }
  func.func @transform_2(%arg0: i32, %arg1: i32) -> (i32, i32) {
    %c0_i32 = arith.constant 0 : i32
    %c0_i32_0 = arith.constant 0 : i32
    %c0_i32_1 = arith.constant 0 : i32
    return %c0_i32, %c0_i32_0 : i32, i32
  }
  func.func @transform_3(%arg0: i32, %arg1: i32) -> (i32, i32, i32, i32) {
    %c0_i32 = arith.constant 0 : i32
    %c0_i32_0 = arith.constant 0 : i32
    %c0_i32_1 = arith.constant 0 : i32
    return %arg0, %arg1, %c0_i32, %c0_i32_0 : i32, i32, i32, i32
  }
  func.func @transform_4(%arg0: i32, %arg1: i32) -> (i32, i32, i32, i32) {
    %c0_i32 = arith.constant 0 : i32
    %c0_i32_0 = arith.constant 0 : i32
    %c0_i32_1 = arith.constant 0 : i32
    return %arg0, %arg1, %c0_i32, %c0_i32_0 : i32, i32, i32, i32
  }
}

module attributes {stable_mosaic.version = 11 : i64} {
  func.func @k_conv2(%arg0: i32, %arg1: i32, %arg2: memref<1x2x16x4xf32, #tpu.memory_space<vmem>>, %arg3: memref<1x16x16x4xf32, #tpu.memory_space<vmem>>, %arg4: memref<1x2x16x4xf32, #tpu.memory_space<vmem>>, %arg5: memref<2x4xf32, #tpu.memory_space<vmem>>, %arg6: memref<9x4x4xf32, #tpu.memory_space<vmem>>, %arg7: memref<1x16x16x4xf32, #tpu.memory_space<vmem>>, %arg8: memref<1x1x2x4xf32, #tpu.memory_space<vmem>>, %arg9: memref<20x26x4xf32, #tpu.memory_space<vmem>>) attributes {dimension_semantics = [#tpu.dimension_semantics<parallel>, #tpu.dimension_semantics<parallel>], iteration_bounds = array<i64: 2, 1>, scalar_prefetch = 0 : i64, scratch_operands = 1 : i64, tpu.core_type = #tpu.core_type<tc>, window_params = [{transform_indices = @transform_0, window_bounds = array<i64: 1, 2, 16, 4>}, {transform_indices = @transform_1, window_bounds = array<i64: 1, 16, 16, 4>}, {transform_indices = @transform_2, window_bounds = array<i64: 1, 2, 16, 4>}, {pipeline_mode = #tpu.pipeline_mode<synchronous>, transform_indices = @transform_3, window_bounds = array<i64: 2, 4>}, {pipeline_mode = #tpu.pipeline_mode<synchronous>, transform_indices = @transform_4, window_bounds = array<i64: 9, 4, 4>}, {transform_indices = @transform_5, window_bounds = array<i64: 1, 16, 16, 4>}, {transform_indices = @transform_6, window_bounds = array<i64: 1, 1, 2, 4>}]} {
    %c0 = arith.constant 0 : index
    %c0_0 = arith.constant 0 : index
    %0 = vector.load %arg5[%c0, %c0_0] : memref<2x4xf32, #tpu.memory_space<vmem>>, vector<2x4xf32>
    %1 = vector.extract_strided_slice %0 {offsets = [0, 0], sizes = [1, 4], strides = [1, 1]} : vector<2x4xf32> to vector<1x4xf32>
    %2 = vector.shape_cast %1 : vector<1x4xf32> to vector<1x1x4xf32>
    %3 = vector.extract_strided_slice %0 {offsets = [1, 0], sizes = [1, 4], strides = [1, 1]} : vector<2x4xf32> to vector<1x4xf32>
    %4 = vector.shape_cast %3 : vector<1x4xf32> to vector<1x1x4xf32>
    %cst = arith.constant 0.000000e+00 : f32
    %5 = vector.broadcast %cst : f32 to vector<20x2x4xf32>
    %c0_1 = arith.constant 0 : index
    %c6 = arith.constant 6 : index
    %c0_2 = arith.constant 0 : index
    %6 = vector.load %arg9[%c0_1, %c6, %c0_2] : memref<20x26x4xf32, #tpu.memory_space<vmem>>, vector<20x2x4xf32>
    tpu.vector_store %arg9[%c0_1, %c6, %c0_2], %5 {strides = array<i32>} : memref<20x26x4xf32, #tpu.memory_space<vmem>>, vector<20x2x4xf32>,
    %c0_3 = arith.constant 0 : index
    %c24 = arith.constant 24 : index
    %c0_4 = arith.constant 0 : index
    %7 = vector.load %arg9[%c0_3, %c24, %c0_4] : memref<20x26x4xf32, #tpu.memory_space<vmem>>, vector<20x2x4xf32>
    tpu.vector_store %arg9[%c0_3, %c24, %c0_4], %5 {strides = array<i32>} : memref<20x26x4xf32, #tpu.memory_space<vmem>>, vector<20x2x4xf32>,
    %c0_i32 = arith.constant 0 : i32
    %8 = arith.cmpi sgt, %arg1, %c0_i32 : i32
    %c0_5 = arith.constant 0 : index
    %c0_6 = arith.constant 0 : index
    %c0_7 = arith.constant 0 : index
    %c0_8 = arith.constant 0 : index
    %9 = vector.load %arg2[%c0_5, %c0_6, %c0_7, %c0_8] : memref<1x2x16x4xf32, #tpu.memory_space<vmem>>, vector<1x2x16x4xf32>
    %10 = vector.shape_cast %9 : vector<1x2x16x4xf32> to vector<2x16x4xf32>
    %11 = vector.broadcast %2 : vector<1x1x4xf32> to vector<2x16x4xf32>
    %12 = arith.mulf %10, %11 : vector<2x16x4xf32>
    %13 = vector.broadcast %4 : vector<1x1x4xf32> to vector<2x16x4xf32>
    %14 = arith.addf %12, %13 : vector<2x16x4xf32>
    %cst_9 = arith.constant 0.000000e+00 : f32
    %15 = vector.broadcast %cst_9 : f32 to vector<2x16x4xf32>
    %16 = arith.maximumf %14, %15 : vector<2x16x4xf32>
    %cst_10 = arith.constant 0.000000e+00 : f32
    %17 = vector.broadcast %cst_10 : f32 to vector<2x16x4xf32>
    %18 = arith.select %8, %16, %17 : vector<2x16x4xf32>
    %c0_11 = arith.constant 0 : index
    %c8 = arith.constant 8 : index
    %c0_12 = arith.constant 0 : index
    %19 = vector.load %arg9[%c0_11, %c8, %c0_12] : memref<20x26x4xf32, #tpu.memory_space<vmem>>, vector<2x16x4xf32>
    tpu.vector_store %arg9[%c0_11, %c8, %c0_12], %18 {strides = array<i32>} : memref<20x26x4xf32, #tpu.memory_space<vmem>>, vector<2x16x4xf32>,
    %c0_i32_13 = arith.constant 0 : i32
    %20 = arith.cmpi slt, %arg1, %c0_i32_13 : i32
    %c0_14 = arith.constant 0 : index
    %c0_15 = arith.constant 0 : index
    %c0_16 = arith.constant 0 : index
    %c0_17 = arith.constant 0 : index
    %21 = vector.load %arg4[%c0_14, %c0_15, %c0_16, %c0_17] : memref<1x2x16x4xf32, #tpu.memory_space<vmem>>, vector<1x2x16x4xf32>
    %22 = vector.shape_cast %21 : vector<1x2x16x4xf32> to vector<2x16x4xf32>
    %23 = vector.broadcast %2 : vector<1x1x4xf32> to vector<2x16x4xf32>
    %24 = arith.mulf %22, %23 : vector<2x16x4xf32>
    %25 = vector.broadcast %4 : vector<1x1x4xf32> to vector<2x16x4xf32>
    %26 = arith.addf %24, %25 : vector<2x16x4xf32>
    %cst_18 = arith.constant 0.000000e+00 : f32
    %27 = vector.broadcast %cst_18 : f32 to vector<2x16x4xf32>
    %28 = arith.maximumf %26, %27 : vector<2x16x4xf32>
    %cst_19 = arith.constant 0.000000e+00 : f32
    %29 = vector.broadcast %cst_19 : f32 to vector<2x16x4xf32>
    %30 = arith.select %20, %28, %29 : vector<2x16x4xf32>
    %c18 = arith.constant 18 : index
    %c8_20 = arith.constant 8 : index
    %c0_21 = arith.constant 0 : index
    %31 = vector.load %arg9[%c18, %c8_20, %c0_21] : memref<20x26x4xf32, #tpu.memory_space<vmem>>, vector<2x16x4xf32>
    tpu.vector_store %arg9[%c18, %c8_20, %c0_21], %30 {strides = array<i32>} : memref<20x26x4xf32, #tpu.memory_space<vmem>>, vector<2x16x4xf32>,
    %c0_22 = arith.constant 0 : index
    %c0_23 = arith.constant 0 : index
    %c0_24 = arith.constant 0 : index
    %c0_25 = arith.constant 0 : index
    %32 = vector.load %arg3[%c0_22, %c0_23, %c0_24, %c0_25] : memref<1x16x16x4xf32, #tpu.memory_space<vmem>>, vector<1x16x16x4xf32>
    %33 = vector.shape_cast %32 : vector<1x16x16x4xf32> to vector<16x16x4xf32>
    %34 = vector.broadcast %2 : vector<1x1x4xf32> to vector<16x16x4xf32>
    %35 = arith.mulf %33, %34 : vector<16x16x4xf32>
    %36 = vector.broadcast %4 : vector<1x1x4xf32> to vector<16x16x4xf32>
    %37 = arith.addf %35, %36 : vector<16x16x4xf32>
    %cst_26 = arith.constant 0.000000e+00 : f32
    %38 = vector.broadcast %cst_26 : f32 to vector<16x16x4xf32>
    %39 = arith.maximumf %37, %38 : vector<16x16x4xf32>
    %c2 = arith.constant 2 : index
    %c8_27 = arith.constant 8 : index
    %c0_28 = arith.constant 0 : index
    %40 = vector.load %arg9[%c2, %c8_27, %c0_28] : memref<20x26x4xf32, #tpu.memory_space<vmem>>, vector<16x16x4xf32>
    tpu.vector_store %arg9[%c2, %c8_27, %c0_28], %39 {strides = array<i32>} : memref<20x26x4xf32, #tpu.memory_space<vmem>>, vector<16x16x4xf32>,
    %c0_29 = arith.constant 0 : index
    %c6_30 = arith.constant 6 : index
    %c0_31 = arith.constant 0 : index
    %41 = vector.load %arg9[%c0_29, %c6_30, %c0_31] : memref<20x26x4xf32, #tpu.memory_space<vmem>>, vector<16x16x4xf32>
    %c0_32 = arith.constant 0 : index
    %c8_33 = arith.constant 8 : index
    %c0_34 = arith.constant 0 : index
    %42 = vector.load %arg9[%c0_32, %c8_33, %c0_34] : memref<20x26x4xf32, #tpu.memory_space<vmem>>, vector<16x16x4xf32>
    %c0_35 = arith.constant 0 : index
    %c10 = arith.constant 10 : index
    %c0_36 = arith.constant 0 : index
    %43 = vector.load %arg9[%c0_35, %c10, %c0_36] : memref<20x26x4xf32, #tpu.memory_space<vmem>>, vector<16x16x4xf32>
    %c2_37 = arith.constant 2 : index
    %c6_38 = arith.constant 6 : index
    %c0_39 = arith.constant 0 : index
    %44 = vector.load %arg9[%c2_37, %c6_38, %c0_39] : memref<20x26x4xf32, #tpu.memory_space<vmem>>, vector<16x16x4xf32>
    %c2_40 = arith.constant 2 : index
    %c8_41 = arith.constant 8 : index
    %c0_42 = arith.constant 0 : index
    %45 = vector.load %arg9[%c2_40, %c8_41, %c0_42] : memref<20x26x4xf32, #tpu.memory_space<vmem>>, vector<16x16x4xf32>
    %c2_43 = arith.constant 2 : index
    %c10_44 = arith.constant 10 : index
    %c0_45 = arith.constant 0 : index
    %46 = vector.load %arg9[%c2_43, %c10_44, %c0_45] : memref<20x26x4xf32, #tpu.memory_space<vmem>>, vector<16x16x4xf32>
    %c4 = arith.constant 4 : index
    %c6_46 = arith.constant 6 : index
    %c0_47 = arith.constant 0 : index
    %47 = vector.load %arg9[%c4, %c6_46, %c0_47] : memref<20x26x4xf32, #tpu.memory_space<vmem>>, vector<16x16x4xf32>
    %c4_48 = arith.constant 4 : index
    %c8_49 = arith.constant 8 : index
    %c0_50 = arith.constant 0 : index
    %48 = vector.load %arg9[%c4_48, %c8_49, %c0_50] : memref<20x26x4xf32, #tpu.memory_space<vmem>>, vector<16x16x4xf32>
    %c4_51 = arith.constant 4 : index
    %c10_52 = arith.constant 10 : index
    %c0_53 = arith.constant 0 : index
    %49 = vector.load %arg9[%c4_51, %c10_52, %c0_53] : memref<20x26x4xf32, #tpu.memory_space<vmem>>, vector<16x16x4xf32>
    %50 = tpu.concatenate %41, %42, %43, %44, %45, %46, %47, %48, %49 in 2 : vector<16x16x4xf32>, vector<16x16x4xf32>, vector<16x16x4xf32>, vector<16x16x4xf32>, vector<16x16x4xf32>, vector<16x16x4xf32>, vector<16x16x4xf32>, vector<16x16x4xf32>, vector<16x16x4xf32> -> vector<16x16x36xf32>
    %51 = vector.shape_cast %50 : vector<16x16x36xf32> to vector<256x36xf32>
    %c0_54 = arith.constant 0 : index
    %c0_55 = arith.constant 0 : index
    %c0_56 = arith.constant 0 : index
    %52 = vector.load %arg6[%c0_54, %c0_55, %c0_56] : memref<9x4x4xf32, #tpu.memory_space<vmem>>, vector<9x4x4xf32>
    %53 = vector.shape_cast %52 : vector<9x4x4xf32> to vector<36x4xf32>
    %cst_57 = arith.constant dense<0.000000e+00> : vector<256x4xf32>
    %54 = tpu.matmul %51, %53, %cst_57 {dimension_numbers = #tpu.dot_dimension_numbers<[1], [0], [0], [1], [0, 0, 1, 1], [], []>} : vector<256x36xf32>, vector<36x4xf32>, vector<256x4xf32> -> vector<256x4xf32>
    %55 = vector.shape_cast %54 : vector<256x4xf32> to vector<16x16x4xf32>
    %c0_58 = arith.constant 0 : index
    %c0_59 = arith.constant 0 : index
    %c0_60 = arith.constant 0 : index
    %c0_61 = arith.constant 0 : index
    %56 = vector.load %arg7[%c0_58, %c0_59, %c0_60, %c0_61] : memref<1x16x16x4xf32, #tpu.memory_space<vmem>>, vector<1x16x16x4xf32>
    %57 = vector.shape_cast %56 : vector<1x16x16x4xf32> to vector<16x16x4xf32>
    %58 = vector.shape_cast %55 : vector<16x16x4xf32> to vector<1x16x16x4xf32>
    tpu.vector_store %arg7[%c0_58, %c0_59, %c0_60, %c0_61], %58 {strides = array<i32>} : memref<1x16x16x4xf32, #tpu.memory_space<vmem>>, vector<1x16x16x4xf32>,
    %cst_62 = arith.constant dense<0.000000e+00> : vector<4xf32>
    %59 = vector.multi_reduction <add>, %54, %cst_62 [0] : vector<256x4xf32> to vector<4xf32>
    %60 = vector.shape_cast %59 : vector<4xf32> to vector<1x4xf32>
    %61 = arith.mulf %54, %54 : vector<256x4xf32>
    %cst_63 = arith.constant dense<0.000000e+00> : vector<4xf32>
    %62 = vector.multi_reduction <add>, %61, %cst_63 [0] : vector<256x4xf32> to vector<4xf32>
    %63 = vector.shape_cast %62 : vector<4xf32> to vector<1x4xf32>
    %64 = tpu.concatenate %60, %63 in 0 : vector<1x4xf32>, vector<1x4xf32> -> vector<2x4xf32>
    %c0_64 = arith.constant 0 : index
    %c0_65 = arith.constant 0 : index
    %c0_66 = arith.constant 0 : index
    %c0_67 = arith.constant 0 : index
    %65 = vector.load %arg8[%c0_64, %c0_65, %c0_66, %c0_67] : memref<1x1x2x4xf32, #tpu.memory_space<vmem>>, vector<1x1x2x4xf32>
    %66 = vector.shape_cast %65 : vector<1x1x2x4xf32> to vector<2x4xf32>
    %67 = vector.shape_cast %64 : vector<2x4xf32> to vector<1x1x2x4xf32>
    tpu.vector_store %arg8[%c0_64, %c0_65, %c0_66, %c0_67], %67 {strides = array<i32>} : memref<1x1x2x4xf32, #tpu.memory_space<vmem>>, vector<1x1x2x4xf32>,
    return
  }
  func.func @transform_0(%arg0: i32, %arg1: i32) -> (i32, i32, i32, i32) {
    %c8_i32 = arith.constant 8 : i32
    %0 = arith.muli %arg1, %c8_i32 : i32
    %c1_i32 = arith.constant 1 : i32
    %1 = arith.subi %0, %c1_i32 : i32
    %c0_i32 = arith.constant 0 : i32
    %2 = arith.maxsi %1, %c0_i32 : i32
    %c0_i32_0 = arith.constant 0 : i32
    %c0_i32_1 = arith.constant 0 : i32
    %c0_i32_2 = arith.constant 0 : i32
    return %arg0, %2, %c0_i32_0, %c0_i32_1 : i32, i32, i32, i32
  }
  func.func @transform_1(%arg0: i32, %arg1: i32) -> (i32, i32, i32, i32) {
    %c0_i32 = arith.constant 0 : i32
    %c0_i32_0 = arith.constant 0 : i32
    %c0_i32_1 = arith.constant 0 : i32
    return %arg0, %arg1, %c0_i32, %c0_i32_0 : i32, i32, i32, i32
  }
  func.func @transform_2(%arg0: i32, %arg1: i32) -> (i32, i32, i32, i32) {
    %c1_i32 = arith.constant 1 : i32
    %0 = arith.addi %arg1, %c1_i32 : i32
    %c8_i32 = arith.constant 8 : i32
    %1 = arith.muli %0, %c8_i32 : i32
    %c7_i32 = arith.constant 7 : i32
    %2 = arith.minsi %1, %c7_i32 : i32
    %c0_i32 = arith.constant 0 : i32
    %c0_i32_0 = arith.constant 0 : i32
    %c0_i32_1 = arith.constant 0 : i32
    return %arg0, %2, %c0_i32, %c0_i32_0 : i32, i32, i32, i32
  }
  func.func @transform_3(%arg0: i32, %arg1: i32) -> (i32, i32) {
    %c0_i32 = arith.constant 0 : i32
    %c0_i32_0 = arith.constant 0 : i32
    %c0_i32_1 = arith.constant 0 : i32
    return %c0_i32, %c0_i32_0 : i32, i32
  }
  func.func @transform_4(%arg0: i32, %arg1: i32) -> (i32, i32, i32) {
    %c0_i32 = arith.constant 0 : i32
    %c0_i32_0 = arith.constant 0 : i32
    %c0_i32_1 = arith.constant 0 : i32
    %c0_i32_2 = arith.constant 0 : i32
    return %c0_i32, %c0_i32_0, %c0_i32_1 : i32, i32, i32
  }
  func.func @transform_5(%arg0: i32, %arg1: i32) -> (i32, i32, i32, i32) {
    %c0_i32 = arith.constant 0 : i32
    %c0_i32_0 = arith.constant 0 : i32
    %c0_i32_1 = arith.constant 0 : i32
    return %arg0, %arg1, %c0_i32, %c0_i32_0 : i32, i32, i32, i32
  }
  func.func @transform_6(%arg0: i32, %arg1: i32) -> (i32, i32, i32, i32) {
    %c0_i32 = arith.constant 0 : i32
    %c0_i32_0 = arith.constant 0 : i32
    %c0_i32_1 = arith.constant 0 : i32
    return %arg0, %arg1, %c0_i32, %c0_i32_0 : i32, i32, i32, i32
  }
}

module attributes {stable_mosaic.version = 11 : i64} {
  func.func @k_out(%arg0: i32, %arg1: i32, %arg2: memref<1x16x16x16xf32, #tpu.memory_space<vmem>>, %arg3: memref<1x16x16x16xf32, #tpu.memory_space<vmem>>, %arg4: memref<2x16xf32, #tpu.memory_space<vmem>>, %arg5: memref<1x16x16x16xf32, #tpu.memory_space<vmem>>) attributes {dimension_semantics = [#tpu.dimension_semantics<parallel>, #tpu.dimension_semantics<parallel>], iteration_bounds = array<i64: 2, 1>, scalar_prefetch = 0 : i64, scratch_operands = 0 : i64, tpu.core_type = #tpu.core_type<tc>, window_params = [{transform_indices = @transform_0, window_bounds = array<i64: 1, 16, 16, 16>}, {transform_indices = @transform_1, window_bounds = array<i64: 1, 16, 16, 16>}, {pipeline_mode = #tpu.pipeline_mode<synchronous>, transform_indices = @transform_2, window_bounds = array<i64: 2, 16>}, {transform_indices = @transform_3, window_bounds = array<i64: 1, 16, 16, 16>}]} {
    %c0 = arith.constant 0 : index
    %c0_0 = arith.constant 0 : index
    %0 = vector.load %arg4[%c0, %c0_0] : memref<2x16xf32, #tpu.memory_space<vmem>>, vector<2x16xf32>
    %1 = vector.extract_strided_slice %0 {offsets = [0, 0], sizes = [1, 16], strides = [1, 1]} : vector<2x16xf32> to vector<1x16xf32>
    %2 = vector.shape_cast %1 : vector<1x16xf32> to vector<1x1x16xf32>
    %3 = vector.extract_strided_slice %0 {offsets = [1, 0], sizes = [1, 16], strides = [1, 1]} : vector<2x16xf32> to vector<1x16xf32>
    %4 = vector.shape_cast %3 : vector<1x16xf32> to vector<1x1x16xf32>
    %c0_1 = arith.constant 0 : index
    %c0_2 = arith.constant 0 : index
    %c0_3 = arith.constant 0 : index
    %c0_4 = arith.constant 0 : index
    %5 = vector.load %arg2[%c0_1, %c0_2, %c0_3, %c0_4] : memref<1x16x16x16xf32, #tpu.memory_space<vmem>>, vector<1x16x16x16xf32>
    %6 = vector.shape_cast %5 : vector<1x16x16x16xf32> to vector<16x16x16xf32>
    %7 = vector.broadcast %2 : vector<1x1x16xf32> to vector<16x16x16xf32>
    %8 = arith.mulf %6, %7 : vector<16x16x16xf32>
    %9 = vector.broadcast %4 : vector<1x1x16xf32> to vector<16x16x16xf32>
    %10 = arith.addf %8, %9 : vector<16x16x16xf32>
    %c0_5 = arith.constant 0 : index
    %c0_6 = arith.constant 0 : index
    %c0_7 = arith.constant 0 : index
    %c0_8 = arith.constant 0 : index
    %11 = vector.load %arg3[%c0_5, %c0_6, %c0_7, %c0_8] : memref<1x16x16x16xf32, #tpu.memory_space<vmem>>, vector<1x16x16x16xf32>
    %12 = vector.shape_cast %11 : vector<1x16x16x16xf32> to vector<16x16x16xf32>
    %13 = arith.addf %10, %12 : vector<16x16x16xf32>
    %cst = arith.constant 0.000000e+00 : f32
    %14 = vector.broadcast %cst : f32 to vector<16x16x16xf32>
    %15 = arith.maximumf %13, %14 : vector<16x16x16xf32>
    %c0_9 = arith.constant 0 : index
    %c0_10 = arith.constant 0 : index
    %c0_11 = arith.constant 0 : index
    %c0_12 = arith.constant 0 : index
    %16 = vector.load %arg5[%c0_9, %c0_10, %c0_11, %c0_12] : memref<1x16x16x16xf32, #tpu.memory_space<vmem>>, vector<1x16x16x16xf32>
    %17 = vector.shape_cast %16 : vector<1x16x16x16xf32> to vector<16x16x16xf32>
    %18 = vector.shape_cast %15 : vector<16x16x16xf32> to vector<1x16x16x16xf32>
    tpu.vector_store %arg5[%c0_9, %c0_10, %c0_11, %c0_12], %18 {strides = array<i32>} : memref<1x16x16x16xf32, #tpu.memory_space<vmem>>, vector<1x16x16x16xf32>,
    return
  }
  func.func @transform_0(%arg0: i32, %arg1: i32) -> (i32, i32, i32, i32) {
    %c0_i32 = arith.constant 0 : i32
    %c0_i32_0 = arith.constant 0 : i32
    %c0_i32_1 = arith.constant 0 : i32
    return %arg0, %arg1, %c0_i32, %c0_i32_0 : i32, i32, i32, i32
  }
  func.func @transform_1(%arg0: i32, %arg1: i32) -> (i32, i32, i32, i32) {
    %c0_i32 = arith.constant 0 : i32
    %c0_i32_0 = arith.constant 0 : i32
    %c0_i32_1 = arith.constant 0 : i32
    return %arg0, %arg1, %c0_i32, %c0_i32_0 : i32, i32, i32, i32
  }
  func.func @transform_2(%arg0: i32, %arg1: i32) -> (i32, i32) {
    %c0_i32 = arith.constant 0 : i32
    %c0_i32_0 = arith.constant 0 : i32
    %c0_i32_1 = arith.constant 0 : i32
    return %c0_i32, %c0_i32_0 : i32, i32
  }
  func.func @transform_3(%arg0: i32, %arg1: i32) -> (i32, i32, i32, i32) {
    %c0_i32 = arith.constant 0 : i32
    %c0_i32_0 = arith.constant 0 : i32
    %c0_i32_1 = arith.constant 0 : i32
    return %arg0, %arg1, %c0_i32, %c0_i32_0 : i32, i32, i32, i32
  }
}

</mosaic_0001>

<llo_original>
// kernel: atrous_bottleneck_nhwc.4
$region0: #{atrous_bottleneck_nhwc.4}
  #allocation0 [shape = 'u32[]', space=smem, size = 0x4, offset = 0x4, fixed_abs, tag = 'smem constant byte address 0x4 - core index']
  #allocation1 [shape = 'u32[144,128]{1,0:T(1,128)}', space=vmem, size = 0x12000, scoped, tag = 'internal scratch']
  %s0 = inlined_call_operand.hbm [shape: f32[2,16,16,16], index: 0, kind: input, shape index: {}]
  %s1 = inlined_call_operand.vmem [shape: f32[16,4], index: 1, kind: input, shape index: {}]
  %s2 = inlined_call_operand.vmem [shape: f32[2,16,16,4], index: 2, kind: output, shape index: {0}]
  %s3 = inlined_call_operand.vmem [shape: f32[2,1,2,4], index: 3, kind: output, shape index: {1}]
  %4 = xla_tuple %s2, %s3
  %s5 = sld [smem:[#allocation0]]
  $region53: #{atrous_bottleneck_nhwc.4} parent=0
    _
  %s7 = ssub.s32 1, %s5
  %s8 = scalar_select 0, %s7, %s5
  $region1: #{atrous_bottleneck_nhwc.4} parent=0
    #allocation2 [shape = 'u8[262144]{0}', space=vmem, size = 0x40000, scoped, tag = 'input window, operand 0']
    #allocation3 [shape = 's32[2]{0}', space=sflag, size = 0x8, scoped, tag = 'scoped memory for atrous_bottleneck_nhwc.4']
    %9 = vsyncpa [#allocation3], 0
    %s10 = scalar_lea.sflag [#allocation3], 1
    %11 = vsyncpa %s10, 0
    loop: start=0, step=1, limit=4
    $region2: #{atrous_bottleneck_nhwc.4} parent=1 // loop_pre_header
      _
    $region3: #{atrous_bottleneck_nhwc.4} parent=1 // loop_header
      %s13 = sphi 0, %s17
      %p14 = scmp.ge.s32.totalorder %s13, 4
      %s20 = sphi 0, %s32
      %s21 = sphi 0, %s28
      %s22 = sphi 0, %s20
      %s23 = sphi 0, %s21
      %s24 = sphi 0, %s22
      %s25 = sphi 0, %s23
      %s37 = sphi 0, %s39
      %s40 = sphi 0, %s37
      %s41 = sphi 0, %s40
      %s57 = sphi 0, %s41
      %s61 = sphi 0, %s61
      %s63 = sphi 0, %s61
      %s64 = sphi 0, %s63
      %s78 = sphi 0, %s64
      %s86 = sphi 0, %s88
      %s89 = sphi 0, %s86
      %s90 = sphi 0, %s89
      %s106 = sphi 0, %s90
      %s114 = sphi 0, %s116
      %s117 = sphi 0, %s114
      %s118 = sphi 0, %s117
      %s134 = sphi 0, %s118
    $region4: #{atrous_bottleneck_nhwc.4} parent=1 // loop_header_branch
      %16 = sbr.rel (%p14) target = $region8
    $region5: #{atrous_bottleneck_nhwc.4} parent=1 // loop_body
      %s18 = ssub.s32 %s13, 1
      %s19 = ssub.s32 %s13, 2
      %s26 = sadd.s32 1, %s21
      %p27 = scmp.ge.s32.totalorder %s26, 1
      %s28 = scalar_select %p27, 0, %s26
      %s29 = sadd.s32 1, %s20
      %s30 = scalar_select %p27, %s29, %s20
      %p31 = scmp.ge.s32.totalorder %s30, 2
      %s32 = scalar_select %p31, 0, %s30
      %s33 = ssub.s32 %s20, %s32
      %s34 = ssub.s32 %s21, %s28
      %s35 = sor.u32 %s33, %s34
      %p36 = scmp.eq.s32.totalorder %s35, 0
      %s38 = sadd.s32 %s37, 1
      %s39 = scalar_select %p36, %s37, %s38
      %p42 = pneg %p36
      %p43 = scmp.eq.s32.totalorder %s13, 1
      %p44 = por %p42, %p43
      %p45 = scmp.ne.s32.totalorder %s37, %s40
      %p46 = scmp.eq.s32.totalorder %s13, 0
      %p47 = por %p45, %p46
      %p48 = scmp.ne.s32.totalorder %s37, %s40
      %p49 = scmp.eq.s32.totalorder %s18, 1
      %p50 = por %p48, %p49
      %p51 = scmp.ne.s32.totalorder %s40, %s41
      %p52 = scmp.eq.s32.totalorder %s18, 0
      %p53 = por %p51, %p52
      %p54 = scmp.ne.s32.totalorder %s40, %s41
      %p55 = scmp.eq.s32.totalorder %s19, 1
      %p56 = por %p54, %p55
      %p58 = scmp.ne.s32.totalorder %s41, %s57
      %p59 = scmp.eq.s32.totalorder %s19, 0
      %p60 = por %p58, %p59
      %s62 = sadd.s32 %s61, 1
      %p65 = scmp.eq.s32.totalorder %s13, 1
      %p66 = scmp.ne.s32.totalorder %s61, %s63
      %p67 = scmp.eq.s32.totalorder %s13, 0
      %p68 = por %p66, %p67
      %p69 = scmp.ne.s32.totalorder %s61, %s63
      %p70 = scmp.eq.s32.totalorder %s18, 1
      %p71 = por %p69, %p70
      %p72 = scmp.ne.s32.totalorder %s63, %s64
      %p73 = scmp.eq.s32.totalorder %s18, 0
      %p74 = por %p72, %p73
      %p75 = scmp.ne.s32.totalorder %s63, %s64
      %p76 = scmp.eq.s32.totalorder %s19, 1
      %p77 = por %p75, %p76
      %p79 = scmp.ne.s32.totalorder %s64, %s78
      %p80 = scmp.eq.s32.totalorder %s19, 0
      %p81 = por %p79, %p80
      %s82 = ssub.s32 %s20, %s32
      %s83 = ssub.s32 %s21, %s28
      %s84 = sor.u32 %s82, %s83
      %p85 = scmp.eq.s32.totalorder %s84, 0
      %s87 = sadd.s32 %s86, 1
      %s88 = scalar_select %p85, %s86, %s87
      %p91 = pneg %p85
      %p92 = scmp.eq.s32.totalorder %s13, 1
      %p93 = por %p91, %p92
      %p94 = scmp.ne.s32.totalorder %s86, %s89
      %p95 = scmp.eq.s32.totalorder %s13, 0
      %p96 = por %p94, %p95
      %p97 = scmp.ne.s32.totalorder %s86, %s89
      %p98 = scmp.eq.s32.totalorder %s18, 1
      %p99 = por %p97, %p98
      %p100 = scmp.ne.s32.totalorder %s89, %s90
      %p101 = scmp.eq.s32.totalorder %s18, 0
      %p102 = por %p100, %p101
      %p103 = scmp.ne.s32.totalorder %s89, %s90
      %p104 = scmp.eq.s32.totalorder %s19, 1
      %p105 = por %p103, %p104
      %p107 = scmp.ne.s32.totalorder %s90, %s106
      %p108 = scmp.eq.s32.totalorder %s19, 0
      %p109 = por %p107, %p108
      %s110 = ssub.s32 %s20, %s32
      %s111 = ssub.s32 %s21, %s28
      %s112 = sor.u32 %s110, %s111
      %p113 = scmp.eq.s32.totalorder %s112, 0
      %s115 = sadd.s32 %s114, 1
      %s116 = scalar_select %p113, %s114, %s115
      %p119 = pneg %p113
      %p120 = scmp.eq.s32.totalorder %s13, 1
      %p121 = por %p119, %p120
      %p122 = scmp.ne.s32.totalorder %s114, %s117
      %p123 = scmp.eq.s32.totalorder %s13, 0
      %p124 = por %p122, %p123
      %p125 = scmp.ne.s32.totalorder %s114, %s117
      %p126 = scmp.eq.s32.totalorder %s18, 1
      %p127 = por %p125, %p126
      %p128 = scmp.ne.s32.totalorder %s117, %s118
      %p129 = scmp.eq.s32.totalorder %s18, 0
      %p130 = por %p128, %p129
      %p131 = scmp.ne.s32.totalorder %s117, %s118
      %p132 = scmp.eq.s32.totalorder %s19, 1
      %p133 = por %p131, %p132
      %p135 = scmp.ne.s32.totalorder %s118, %s134
      %p136 = scmp.eq.s32.totalorder %s19, 0
      %p137 = por %p135, %p136
      %p138 = scmp.le.s32.totalorder 1, %s13
      %p139 = scmp.lt.s32.totalorder %s13, 3
      %p140 = pnand %p138, %p139
      %p141 = pneg %p140
      // Predicated region
      $region9: #{atrous_bottleneck_nhwc.4} parent=5 // pred_check
        _
      $region10: #{atrous_bottleneck_nhwc.4} parent=5 // pred_check_branch
        %143 = sbr.rel (%p140) target = $region12
      $region11: #{atrous_bottleneck_nhwc.4} parent=5 // pred_region
        %s144 = ssub.s32 %s13, 1
        // Predicated region
        $region13: #{atrous_bottleneck_nhwc.4} parent=11 // pred_check
          %p145 = pneg %p74
        $region14: #{atrous_bottleneck_nhwc.4} parent=11 // pred_check_branch
          %147 = sbr.rel (%p145) target = $region16
        $region15: #{atrous_bottleneck_nhwc.4} parent=11 // pred_region
          _
        $region16: #{atrous_bottleneck_nhwc.4} parent=11 // pred_fallthru
          _
      $region12: #{atrous_bottleneck_nhwc.4} parent=5 // pred_fallthru
        _
      %p148 = scmp.lt.s32.totalorder %s13, 2
      // Predicated region
      $region17: #{atrous_bottleneck_nhwc.4} parent=5 // pred_check
        %p149 = pneg %p148
      $region18: #{atrous_bottleneck_nhwc.4} parent=5 // pred_check_branch
        %151 = sbr.rel (%p149) target = $region20
      $region19: #{atrous_bottleneck_nhwc.4} parent=5 // pred_region
        // Predicated region
        $region21: #{atrous_bottleneck_nhwc.4} parent=19 // pred_check
          %p152 = pneg %p47
        $region22: #{atrous_bottleneck_nhwc.4} parent=19 // pred_check_branch
          %154 = sbr.rel (%p152) target = $region24
        $region23: #{atrous_bottleneck_nhwc.4} parent=19 // pred_region
          %s155 = sand.u32 %s37, 1
          %s156 = scalar_lea.sflag [#allocation3], %s155
          %s157 = sand.u32 %s37, 1
          %s158 = smul.addr %s157, 256
          %s159 = scalar_lea.vmem [#allocation2], %s158
          %s160 = smul.u32 16, %s21
          %s162 = ssub.s32 4096, 4096
          %163 = vsyncadd %s156, %s162
          %s164 = smul.addr %s160, 2
          %s165 = smul.addr %s20, 32
          %s166 = sadd.s32 %s164, %s165
          %s167 = smul.addr %s166, 128
          %s168 = scalar_lea.hbm %s0, %s167
          %s169 = sshll.u32 %s159, 4
          %s170 = int_to_ptr.vmem [resolvable:$true] %s169
          %175 = dma.hbm_to_vmem [thread:$0]  %s168, 4096, %s170, %s156, 128, 128, 8
        $region24: #{atrous_bottleneck_nhwc.4} parent=19 // pred_fallthru
          _
      $region20: #{atrous_bottleneck_nhwc.4} parent=5 // pred_fallthru
        _
      %p176 = scmp.le.s32.totalorder 1, %s13
      %p177 = scmp.lt.s32.totalorder %s13, 3
      %p178 = pnand %p176, %p177
      %p179 = pneg %p178
      // Predicated region
      $region25: #{atrous_bottleneck_nhwc.4} parent=5 // pred_check
        _
      $region26: #{atrous_bottleneck_nhwc.4} parent=5 // pred_check_branch
        %181 = sbr.rel (%p178) target = $region28
      $region27: #{atrous_bottleneck_nhwc.4} parent=5 // pred_region
        %s182 = ssub.s32 %s13, 1
        %s183 = sand.u32 %s40, 1
        %s184 = scalar_lea.sflag [#allocation3], %s183
        %s185 = sand.u32 %s40, 1
        %s186 = smul.addr %s185, 256
        %s187 = scalar_lea.vmem [#allocation2], %s186
        // Predicated region
        $region29: #{atrous_bottleneck_nhwc.4} parent=27 // pred_check
          %p188 = pneg %p53
        $region30: #{atrous_bottleneck_nhwc.4} parent=27 // pred_check_branch
          %190 = sbr.rel (%p188) target = $region32
        $region31: #{atrous_bottleneck_nhwc.4} parent=27 // pred_region
          %191 = dma.done %s184, 4096
        $region32: #{atrous_bottleneck_nhwc.4} parent=27 // pred_fallthru
          _
        %s192 = sand.u32 %s40, 1
        %s193 = scalar_lea.sflag [#allocation3], %s192
        %s194 = sand.u32 %s40, 1
        %s195 = smul.addr %s194, 256
        %s196 = scalar_lea.vmem [#allocation2], %s195
        %p197 = pneg %p53
        %p198 = pneg %p50
        %p199 = pneg %p74
        %p200 = pneg %p71
        %p201 = pneg %p102
        %p202 = pneg %p99
        %s203 = smul.u32 16, %s23
        %p204 = scmp.lt.s32.totalorder %s22, 1
        %s205 = scalar_select %p204, %s22, 1
        %p206 = scmp.lt.s32.totalorder %s203, 15
        %s207 = scalar_select %p206, %s203, 15
        %s208 = smul.addr %s207, 2
        %s209 = smul.addr %s205, 32
        %s210 = sadd.s32 %s208, %s209
        %s211 = smul.addr %s210, 8
        %s212 = scalar_lea.vmem %s2, %s211
        %p213 = pneg %p130
        %p214 = pneg %p127
        %p215 = scmp.lt.s32.totalorder %s22, 1
        %s216 = scalar_select %p215, %s22, 1
        %p217 = scmp.lt.s32.totalorder %s23, 0
        %s218 = scalar_select %p217, %s23, 0
        %s219 = sadd.s32 %s218, %s216
        %s220 = smul.addr %s219, 2
        %s221 = scalar_lea.vmem %s3, %s220
        %s222 = smul.u32 16, %s23
        %s223 = smul.u32 16, %s23
        %p224 = scmp.lt.s32.totalorder %s22, 1
        %s225 = scalar_select %p224, %s22, 1
        %p226 = scmp.lt.s32.totalorder %s223, 15
        %s227 = scalar_select %p226, %s223, 15
        %s228 = smul.addr %s227, 2
        %s229 = smul.addr %s225, 32
        %s230 = sadd.s32 %s228, %s229
        %s231 = smul.addr %s230, 8
        %s232 = scalar_lea.vmem %s2, %s231
        %s233 = smul.u32 16, %s23
        %p234 = scmp.lt.s32.totalorder %s22, 1
        %s235 = scalar_select %p234, %s22, 1
        %p236 = scmp.lt.s32.totalorder %s23, 0
        %s237 = scalar_select %p236, %s23, 0
        %s238 = sadd.s32 %s237, %s235
        %s239 = smul.addr %s238, 2
        %s240 = scalar_lea.vmem %s3, %s239
        %v241 = vld [vmem:[%s187] sm:$0xff]
        %v242 = vld [vmem:[%s187 + $0x8] sm:$0xff]
        %v243 = vld [vmem:[%s187 + $0x10] sm:$0xff]
        %v244 = vld [vmem:[%s187 + $0x18] sm:$0xff]
        %v245 = vld [vmem:[%s187 + $0x20] sm:$0xff]
        %v246 = vld [vmem:[%s187 + $0x28] sm:$0xff]
        %v247 = vld [vmem:[%s187 + $0x30] sm:$0xff]
        %v248 = vld [vmem:[%s187 + $0x38] sm:$0xff]
        %v249 = vld [vmem:[%s187 + $0x40] sm:$0xff]
        %v250 = vld [vmem:[%s187 + $0x48] sm:$0xff]
        %v251 = vld [vmem:[%s187 + $0x50] sm:$0xff]
        %v252 = vld [vmem:[%s187 + $0x58] sm:$0xff]
        %v253 = vld [vmem:[%s187 + $0x60] sm:$0xff]
        %v254 = vld [vmem:[%s187 + $0x68] sm:$0xff]
        %v255 = vld [vmem:[%s187 + $0x70] sm:$0xff]
        %v256 = vld [vmem:[%s187 + $0x78] sm:$0xff]
        %v257 = vld [vmem:[%s187 + $0x80] sm:$0xff]
        %v258 = vld [vmem:[%s187 + $0x88] sm:$0xff]
        %v259 = vld [vmem:[%s187 + $0x90] sm:$0xff]
        %v260 = vld [vmem:[%s187 + $0x98] sm:$0xff]
        %v261 = vld [vmem:[%s187 + $0xa0] sm:$0xff]
        %v262 = vld [vmem:[%s187 + $0xa8] sm:$0xff]
        %v263 = vld [vmem:[%s187 + $0xb0] sm:$0xff]
        %v264 = vld [vmem:[%s187 + $0xb8] sm:$0xff]
        %v265 = vld [vmem:[%s187 + $0xc0] sm:$0xff]
        %v266 = vld [vmem:[%s187 + $0xc8] sm:$0xff]
        %v267 = vld [vmem:[%s187 + $0xd0] sm:$0xff]
        %v268 = vld [vmem:[%s187 + $0xd8] sm:$0xff]
        %v269 = vld [vmem:[%s187 + $0xe0] sm:$0xff]
        %v270 = vld [vmem:[%s187 + $0xe8] sm:$0xff]
        %v271 = vld [vmem:[%s187 + $0xf0] sm:$0xff]
        %v272 = vld [vmem:[%s187 + $0xf8] sm:$0xff]
        %v273 = vld [vmem:[%s1] sm:$0xff]
        %v274 = vld [vmem:[%s1 + $0x8] sm:$0xff]
        %vm275 = vcmask 130048
        %v277 = vsel %vm275, %v241, 0
        %v280 = vsel %vm275, %v242, 0
        %v283 = vsel %vm275, %v243, 0
        %v286 = vsel %vm275, %v244, 0
        %v289 = vsel %vm275, %v245, 0
        %v292 = vsel %vm275, %v246, 0
        %v295 = vsel %vm275, %v247, 0
        %v298 = vsel %vm275, %v248, 0
        %v301 = vsel %vm275, %v249, 0
        %v304 = vsel %vm275, %v250, 0
        %v307 = vsel %vm275, %v251, 0
        %v310 = vsel %vm275, %v252, 0
        %v313 = vsel %vm275, %v253, 0
        %v316 = vsel %vm275, %v254, 0
        %v319 = vsel %vm275, %v255, 0
        %v322 = vsel %vm275, %v256, 0
        %v325 = vsel %vm275, %v257, 0
        %v328 = vsel %vm275, %v258, 0
        %v331 = vsel %vm275, %v259, 0
        %v334 = vsel %vm275, %v260, 0
        %v337 = vsel %vm275, %v261, 0
        %v340 = vsel %vm275, %v262, 0
        %v343 = vsel %vm275, %v263, 0
        %v346 = vsel %vm275, %v264, 0
        %v349 = vsel %vm275, %v265, 0
        %v352 = vsel %vm275, %v266, 0
        %v355 = vsel %vm275, %v267, 0
        %v358 = vsel %vm275, %v268, 0
        %v361 = vsel %vm275, %v269, 0
        %v364 = vsel %vm275, %v270, 0
        %v367 = vsel %vm275, %v271, 0
        %v370 = vsel %vm275, %v272, 0
        %372 = vmatprep.subr.mxu0 0.0
        %373 = vmatpush1.msra.mxu0 %v273
        %374 = vmatprep.subr.mxu0 0.0
        %375 = vmatpush1.msra.mxu0 %v274
        %376 = vmatprep.subr.mxu0 0.0
        %377 = vmatpush1.msra.mxu0 0.0
        %378 = vmatprep.subr.mxu0 0.0
        %379 = vmatpush1.msra.mxu0 0.0
        %380 = vmatprep.subr.mxu0 0.0
        %381 = vmatpush1.msra.mxu0 0.0
        %382 = vmatprep.subr.mxu0 0.0
        %383 = vmatpush1.msra.mxu0 0.0
        %384 = vmatprep.subr.mxu0 0.0
        %385 = vmatpush1.msra.mxu0 0.0
        %386 = vmatprep.subr.mxu0 0.0
        %387 = vmatpush1.msra.mxu0 0.0
        %388 = vmatprep.subr.mxu0 0.0
        %389 = vmatpush1.msra.mxu0 0.0
        %390 = vmatprep.subr.mxu0 0.0
        %391 = vmatpush1.msra.mxu0 0.0
        %392 = vmatprep.subr.mxu0 0.0
        %393 = vmatpush1.msra.mxu0 0.0
        %394 = vmatprep.subr.mxu0 0.0
        %395 = vmatpush1.msra.mxu0 0.0
        %396 = vmatprep.subr.mxu0 0.0
        %397 = vmatpush1.msra.mxu0 0.0
        %398 = vmatprep.subr.mxu0 0.0
        %399 = vmatpush1.msra.mxu0 0.0
        %400 = vmatprep.subr.mxu0 0.0
        %401 = vmatpush1.msra.mxu0 0.0
        %402 = vmatprep.subr.mxu0 0.0
        %403 = vmatpush1.msra.mxu0 0.0
        %404 = vmatprep.subr.mxu0 0.0
        %405 = vmatpush1.msra.mxu0 0.0
        %406 = vmatprep.subr.mxu0 0.0
        %407 = vmatpush1.msra.mxu0 0.0
        %408 = vmatprep.subr.mxu0 0.0
        %409 = vmatpush1.msra.mxu0 0.0
        %410 = vmatprep.subr.mxu0 0.0
        %411 = vmatpush1.msra.mxu0 0.0
        %412 = vmatprep.subr.mxu0 0.0
        %413 = vmatpush1.msra.mxu0 0.0
        %414 = vmatprep.subr.mxu0 0.0
        %415 = vmatpush1.msra.mxu0 0.0
        %416 = vmatprep.subr.mxu0 0.0
        %417 = vmatpush1.msra.mxu0 0.0
        %418 = vmatprep.subr.mxu0 0.0
        %419 = vmatpush1.msra.mxu0 0.0
        %420 = vmatprep.subr.mxu0 0.0
        %421 = vmatpush1.msra.mxu0 0.0
        %422 = vmatprep.subr.mxu0 0.0
        %423 = vmatpush1.msra.mxu0 0.0
        %424 = vmatprep.subr.mxu0 0.0
        %425 = vmatpush1.msra.mxu0 0.0
        %426 = vmatprep.subr.mxu0 0.0
        %427 = vmatpush1.msra.mxu0 0.0
        %428 = vmatprep.subr.mxu0 0.0
        %429 = vmatpush1.msra.mxu0 0.0
        %430 = vmatprep.subr.mxu0 0.0
        %431 = vmatpush1.msra.mxu0 0.0
        %432 = vmatprep.subr.mxu0 0.0
        %433 = vmatpush1.msra.mxu0 0.0
        %434 = vmatprep.subr.mxu0 0.0
        %435 = vmatpush1.msra.mxu0 0.0
        %436 = vmatprep.mubr.f32.mxu0 0.0
        %437 = vmatmul.mubr.f32.gmra.mrb[0].mxu0 %v277
        %v438 = vpop.f32.mrb[0].mxu0
        %v439 = vadd.f32 0.0, %v438
        %v440 = vpop.f32.mrb[0].mxu0
        %441 = vmatprep.mubr.f32.mxu0 0.0
        %442 = vmatmul.mubr.f32.gmra.mrb[0].mxu0 %v280
        %v443 = vpop.f32.mrb[0].mxu0
        %v444 = vadd.f32 0.0, %v443
        %v445 = vpop.f32.mrb[0].mxu0
        %446 = vmatprep.mubr.f32.mxu0 0.0
        %447 = vmatmul.mubr.f32.gmra.mrb[0].mxu0 %v283
        %v448 = vpop.f32.mrb[0].mxu0
        %v449 = vadd.f32 0.0, %v448
        %v450 = vpop.f32.mrb[0].mxu0
        %451 = vmatprep.mubr.f32.mxu0 0.0
        %452 = vmatmul.mubr.f32.gmra.mrb[0].mxu0 %v286
        %v453 = vpop.f32.mrb[0].mxu0
        %v454 = vadd.f32 0.0, %v453
        %v455 = vpop.f32.mrb[0].mxu0
        %456 = vmatprep.mubr.f32.mxu0 0.0
        %457 = vmatmul.mubr.f32.gmra.mrb[0].mxu0 %v289
        %v458 = vpop.f32.mrb[0].mxu0
        %v459 = vadd.f32 0.0, %v458
        %v460 = vpop.f32.mrb[0].mxu0
        %461 = vmatprep.mubr.f32.mxu0 0.0
        %462 = vmatmul.mubr.f32.gmra.mrb[0].mxu0 %v292
        %v463 = vpop.f32.mrb[0].mxu0
        %v464 = vadd.f32 0.0, %v463
        %v465 = vpop.f32.mrb[0].mxu0
        %466 = vmatprep.mubr.f32.mxu0 0.0
        %467 = vmatmul.mubr.f32.gmra.mrb[0].mxu0 %v295
        %v468 = vpop.f32.mrb[0].mxu0
        %v469 = vadd.f32 0.0, %v468
        %v470 = vpop.f32.mrb[0].mxu0
        %471 = vmatprep.mubr.f32.mxu0 0.0
        %472 = vmatmul.mubr.f32.gmra.mrb[0].mxu0 %v298
        %v473 = vpop.f32.mrb[0].mxu0
        %v474 = vadd.f32 0.0, %v473
        %v475 = vpop.f32.mrb[0].mxu0
        %476 = vmatprep.mubr.f32.mxu0 0.0
        %477 = vmatmul.mubr.f32.gmra.mrb[0].mxu0 %v301
        %v478 = vpop.f32.mrb[0].mxu0
        %v479 = vadd.f32 0.0, %v478
        %v480 = vpop.f32.mrb[0].mxu0
        %481 = vmatprep.mubr.f32.mxu0 0.0
        %482 = vmatmul.mubr.f32.gmra.mrb[0].mxu0 %v304
        %v483 = vpop.f32.mrb[0].mxu0
        %v484 = vadd.f32 0.0, %v483
        %v485 = vpop.f32.mrb[0].mxu0
        %486 = vmatprep.mubr.f32.mxu0 0.0
        %487 = vmatmul.mubr.f32.gmra.mrb[0].mxu0 %v307
        %v488 = vpop.f32.mrb[0].mxu0
        %v489 = vadd.f32 0.0, %v488
        %v490 = vpop.f32.mrb[0].mxu0
        %491 = vmatprep.mubr.f32.mxu0 0.0
        %492 = vmatmul.mubr.f32.gmra.mrb[0].mxu0 %v310
        %v493 = vpop.f32.mrb[0].mxu0
        %v494 = vadd.f32 0.0, %v493
        %v495 = vpop.f32.mrb[0].mxu0
        %496 = vmatprep.mubr.f32.mxu0 0.0
        %497 = vmatmul.mubr.f32.gmra.mrb[0].mxu0 %v313
        %v498 = vpop.f32.mrb[0].mxu0
        %v499 = vadd.f32 0.0, %v498
        %v500 = vpop.f32.mrb[0].mxu0
        %501 = vmatprep.mubr.f32.mxu0 0.0
        %502 = vmatmul.mubr.f32.gmra.mrb[0].mxu0 %v316
        %v503 = vpop.f32.mrb[0].mxu0
        %v504 = vadd.f32 0.0, %v503
        %v505 = vpop.f32.mrb[0].mxu0
        %506 = vmatprep.mubr.f32.mxu0 0.0
        %507 = vmatmul.mubr.f32.gmra.mrb[0].mxu0 %v319
        %v508 = vpop.f32.mrb[0].mxu0
        %v509 = vadd.f32 0.0, %v508
        %v510 = vpop.f32.mrb[0].mxu0
        %511 = vmatprep.mubr.f32.mxu0 0.0
        %512 = vmatmul.mubr.f32.gmra.mrb[0].mxu0 %v322
        %v513 = vpop.f32.mrb[0].mxu0
        %v514 = vadd.f32 0.0, %v513
        %v515 = vpop.f32.mrb[0].mxu0
        %516 = vmatprep.mubr.f32.mxu0 0.0
        %517 = vmatmul.mubr.f32.gmra.mrb[0].mxu0 %v325
        %v518 = vpop.f32.mrb[0].mxu0
        %v519 = vadd.f32 0.0, %v518
        %v520 = vpop.f32.mrb[0].mxu0
        %521 = vmatprep.mubr.f32.mxu0 0.0
        %522 = vmatmul.mubr.f32.gmra.mrb[0].mxu0 %v328
        %v523 = vpop.f32.mrb[0].mxu0
        %v524 = vadd.f32 0.0, %v523
        %v525 = vpop.f32.mrb[0].mxu0
        %526 = vmatprep.mubr.f32.mxu0 0.0
        %527 = vmatmul.mubr.f32.gmra.mrb[0].mxu0 %v331
        %v528 = vpop.f32.mrb[0].mxu0
        %v529 = vadd.f32 0.0, %v528
        %v530 = vpop.f32.mrb[0].mxu0
        %531 = vmatprep.mubr.f32.mxu0 0.0
        %532 = vmatmul.mubr.f32.gmra.mrb[0].mxu0 %v334
        %v533 = vpop.f32.mrb[0].mxu0
        %v534 = vadd.f32 0.0, %v533
        %v535 = vpop.f32.mrb[0].mxu0
        %536 = vmatprep.mubr.f32.mxu0 0.0
        %537 = vmatmul.mubr.f32.gmra.mrb[0].mxu0 %v337
        %v538 = vpop.f32.mrb[0].mxu0
        %v539 = vadd.f32 0.0, %v538
        %v540 = vpop.f32.mrb[0].mxu0
        %541 = vmatprep.mubr.f32.mxu0 0.0
        %542 = vmatmul.mubr.f32.gmra.mrb[0].mxu0 %v340
        %v543 = vpop.f32.mrb[0].mxu0
        %v544 = vadd.f32 0.0, %v543
        %v545 = vpop.f32.mrb[0].mxu0
        %546 = vmatprep.mubr.f32.mxu0 0.0
        %547 = vmatmul.mubr.f32.gmra.mrb[0].mxu0 %v343
        %v548 = vpop.f32.mrb[0].mxu0
        %v549 = vadd.f32 0.0, %v548
        %v550 = vpop.f32.mrb[0].mxu0
        %551 = vmatprep.mubr.f32.mxu0 0.0
        %552 = vmatmul.mubr.f32.gmra.mrb[0].mxu0 %v346
        %v553 = vpop.f32.mrb[0].mxu0
        %v554 = vadd.f32 0.0, %v553
        %v555 = vpop.f32.mrb[0].mxu0
        %556 = vmatprep.mubr.f32.mxu0 0.0
        %557 = vmatmul.mubr.f32.gmra.mrb[0].mxu0 %v349
        %v558 = vpop.f32.mrb[0].mxu0
        %v559 = vadd.f32 0.0, %v558
        %v560 = vpop.f32.mrb[0].mxu0
        %561 = vmatprep.mubr.f32.mxu0 0.0
        %562 = vmatmul.mubr.f32.gmra.mrb[0].mxu0 %v352
        %v563 = vpop.f32.mrb[0].mxu0
        %v564 = vadd.f32 0.0, %v563
        %v565 = vpop.f32.mrb[0].mxu0
        %566 = vmatprep.mubr.f32.mxu0 0.0
        %567 = vmatmul.mubr.f32.gmra.mrb[0].mxu0 %v355
        %v568 = vpop.f32.mrb[0].mxu0
        %v569 = vadd.f32 0.0, %v568
        %v570 = vpop.f32.mrb[0].mxu0
        %571 = vmatprep.mubr.f32.mxu0 0.0
        %572 = vmatmul.mubr.f32.gmra.mrb[0].mxu0 %v358
        %v573 = vpop.f32.mrb[0].mxu0
        %v574 = vadd.f32 0.0, %v573
        %v575 = vpop.f32.mrb[0].mxu0
        %576 = vmatprep.mubr.f32.mxu0 0.0
        %577 = vmatmul.mubr.f32.gmra.mrb[0].mxu0 %v361
        %v578 = vpop.f32.mrb[0].mxu0
        %v579 = vadd.f32 0.0, %v578
        %v580 = vpop.f32.mrb[0].mxu0
        %581 = vmatprep.mubr.f32.mxu0 0.0
        %582 = vmatmul.mubr.f32.gmra.mrb[0].mxu0 %v364
        %v583 = vpop.f32.mrb[0].mxu0
        %v584 = vadd.f32 0.0, %v583
        %v585 = vpop.f32.mrb[0].mxu0
        %586 = vmatprep.mubr.f32.mxu0 0.0
        %587 = vmatmul.mubr.f32.gmra.mrb[0].mxu0 %v367
        %v588 = vpop.f32.mrb[0].mxu0
        %v589 = vadd.f32 0.0, %v588
        %v590 = vpop.f32.mrb[0].mxu0
        %591 = vmatprep.mubr.f32.mxu0 0.0
        %592 = vmatmul.mubr.f32.gmra.mrb[0].mxu0 %v370
        %v593 = vpop.f32.mrb[0].mxu0
        %v594 = vadd.f32 0.0, %v593
        %v595 = vpop.f32.mrb[0].mxu0
        %596 = vdwg.mxu0
        %vm597 = vcmask 31744
        %598 = vst.msk [vmem:[%s232] sm:$0xff] %vm597, %v439
        %599 = vst.msk [vmem:[%s232 + $0x8] sm:$0xff] %vm597, %v444
        %600 = vst.msk [vmem:[%s232 + $0x10] sm:$0xff] %vm597, %v449
        %601 = vst.msk [vmem:[%s232 + $0x18] sm:$0xff] %vm597, %v454
        %602 = vst.msk [vmem:[%s232 + $0x20] sm:$0xff] %vm597, %v459
        %603 = vst.msk [vmem:[%s232 + $0x28] sm:$0xff] %vm597, %v464
        %604 = vst.msk [vmem:[%s232 + $0x30] sm:$0xff] %vm597, %v469
        %605 = vst.msk [vmem:[%s232 + $0x38] sm:$0xff] %vm597, %v474
        %606 = vst.msk [vmem:[%s232 + $0x40] sm:$0xff] %vm597, %v479
        %607 = vst.msk [vmem:[%s232 + $0x48] sm:$0xff] %vm597, %v484
        %608 = vst.msk [vmem:[%s232 + $0x50] sm:$0xff] %vm597, %v489
        %609 = vst.msk [vmem:[%s232 + $0x58] sm:$0xff] %vm597, %v494
        %610 = vst.msk [vmem:[%s232 + $0x60] sm:$0xff] %vm597, %v499
        %611 = vst.msk [vmem:[%s232 + $0x68] sm:$0xff] %vm597, %v504
        %612 = vst.msk [vmem:[%s232 + $0x70] sm:$0xff] %vm597, %v509
        %613 = vst.msk [vmem:[%s232 + $0x78] sm:$0xff] %vm597, %v514
        %614 = vst.msk [vmem:[%s232 + $0x80] sm:$0xff] %vm597, %v519
        %615 = vst.msk [vmem:[%s232 + $0x88] sm:$0xff] %vm597, %v524
        %616 = vst.msk [vmem:[%s232 + $0x90] sm:$0xff] %vm597, %v529
        %617 = vst.msk [vmem:[%s232 + $0x98] sm:$0xff] %vm597, %v534
        %618 = vst.msk [vmem:[%s232 + $0xa0] sm:$0xff] %vm597, %v539
        %619 = vst.msk [vmem:[%s232 + $0xa8] sm:$0xff] %vm597, %v544
        %620 = vst.msk [vmem:[%s232 + $0xb0] sm:$0xff] %vm597, %v549
        %621 = vst.msk [vmem:[%s232 + $0xb8] sm:$0xff] %vm597, %v554
        %622 = vst.msk [vmem:[%s232 + $0xc0] sm:$0xff] %vm597, %v559
        %623 = vst.msk [vmem:[%s232 + $0xc8] sm:$0xff] %vm597, %v564
        %624 = vst.msk [vmem:[%s232 + $0xd0] sm:$0xff] %vm597, %v569
        %625 = vst.msk [vmem:[%s232 + $0xd8] sm:$0xff] %vm597, %v574
        %626 = vst.msk [vmem:[%s232 + $0xe0] sm:$0xff] %vm597, %v579
        %627 = vst.msk [vmem:[%s232 + $0xe8] sm:$0xff] %vm597, %v584
        %628 = vst.msk [vmem:[%s232 + $0xf0] sm:$0xff] %vm597, %v589
        %629 = vst.msk [vmem:[%s232 + $0xf8] sm:$0xff] %vm597, %v594
        %v630 = vsel %vm597, %v439, 0.0
        %v631 = vsel %vm597, %v444, 0.0
        %v632 = vadd.f32 %v630, %v631
        %v633 = vsel %vm597, %v449, 0.0
        %v634 = vadd.f32 %v632, %v633
        %v635 = vsel %vm597, %v454, 0.0
        %v636 = vadd.f32 %v634, %v635
        %v637 = vsel %vm597, %v459, 0.0
        %v638 = vadd.f32 %v636, %v637
        %v639 = vsel %vm597, %v464, 0.0
        %v640 = vadd.f32 %v638, %v639
        %v641 = vsel %vm597, %v469, 0.0
        %v642 = vadd.f32 %v640, %v641
        %v643 = vsel %vm597, %v474, 0.0
        %v644 = vadd.f32 %v642, %v643
        %v645 = vsel %vm597, %v479, 0.0
        %v646 = vadd.f32 %v644, %v645
        %v647 = vsel %vm597, %v484, 0.0
        %v648 = vadd.f32 %v646, %v647
        %v649 = vsel %vm597, %v489, 0.0
        %v650 = vadd.f32 %v648, %v649
        %v651 = vsel %vm597, %v494, 0.0
        %v652 = vadd.f32 %v650, %v651
        %v653 = vsel %vm597, %v499, 0.0
        %v654 = vadd.f32 %v652, %v653
        %v655 = vsel %vm597, %v504, 0.0
        %v656 = vadd.f32 %v654, %v655
        %v657 = vsel %vm597, %v509, 0.0
        %v658 = vadd.f32 %v656, %v657
        %v659 = vsel %vm597, %v514, 0.0
        %v660 = vadd.f32 %v658, %v659
        %v661 = vsel %vm597, %v519, 0.0
        %v662 = vadd.f32 %v660, %v661
        %v663 = vsel %vm597, %v524, 0.0
        %v664 = vadd.f32 %v662, %v663
        %v665 = vsel %vm597, %v529, 0.0
        %v666 = vadd.f32 %v664, %v665
        %v667 = vsel %vm597, %v534, 0.0
        %v668 = vadd.f32 %v666, %v667
        %v669 = vsel %vm597, %v539, 0.0
        %v670 = vadd.f32 %v668, %v669
        %v671 = vsel %vm597, %v544, 0.0
        %v672 = vadd.f32 %v670, %v671
        %v673 = vsel %vm597, %v549, 0.0
        %v674 = vadd.f32 %v672, %v673
        %v675 = vsel %vm597, %v554, 0.0
        %v676 = vadd.f32 %v674, %v675
        %v677 = vsel %vm597, %v559, 0.0
        %v678 = vadd.f32 %v676, %v677
        %v679 = vsel %vm597, %v564, 0.0
        %v680 = vadd.f32 %v678, %v679
        %v681 = vsel %vm597, %v569, 0.0
        %v682 = vadd.f32 %v680, %v681
        %v683 = vsel %vm597, %v574, 0.0
        %v684 = vadd.f32 %v682, %v683
        %v685 = vsel %vm597, %v579, 0.0
        %v686 = vadd.f32 %v684, %v685
        %v687 = vsel %vm597, %v584, 0.0
        %v688 = vadd.f32 %v686, %v687
        %v689 = vsel %vm597, %v589, 0.0
        %v690 = vadd.f32 %v688, %v689
        %v691 = vsel %vm597, %v594, 0.0
        %v692 = vadd.f32 %v690, %v691
        %v693 = vrot.slane %v692, 4
        %v694 = vadd.f32 %v692, %v693
        %v695 = vrot.slane %v694, 2
        %v696 = vadd.f32 %v694, %v695
        %v697 = vrot.slane %v696, 1
        %v698 = vadd.f32 %v696, %v697
        %v699 = vmul.f32 %v439, %v439
        %v700 = vmul.f32 %v444, %v444
        %v701 = vmul.f32 %v449, %v449
        %v702 = vmul.f32 %v454, %v454
        %v703 = vmul.f32 %v459, %v459
        %v704 = vmul.f32 %v464, %v464
        %v705 = vmul.f32 %v469, %v469
        %v706 = vmul.f32 %v474, %v474
        %v707 = vmul.f32 %v479, %v479
        %v708 = vmul.f32 %v484, %v484
        %v709 = vmul.f32 %v489, %v489
        %v710 = vmul.f32 %v494, %v494
        %v711 = vmul.f32 %v499, %v499
        %v712 = vmul.f32 %v504, %v504
        %v713 = vmul.f32 %v509, %v509
        %v714 = vmul.f32 %v514, %v514
        %v715 = vmul.f32 %v519, %v519
        %v716 = vmul.f32 %v524, %v524
        %v717 = vmul.f32 %v529, %v529
        %v718 = vmul.f32 %v534, %v534
        %v719 = vmul.f32 %v539, %v539
        %v720 = vmul.f32 %v544, %v544
        %v721 = vmul.f32 %v549, %v549
        %v722 = vmul.f32 %v554, %v554
        %v723 = vmul.f32 %v559, %v559
        %v724 = vmul.f32 %v564, %v564
        %v725 = vmul.f32 %v569, %v569
        %v726 = vmul.f32 %v574, %v574
        %v727 = vmul.f32 %v579, %v579
        %v728 = vmul.f32 %v584, %v584
        %v729 = vmul.f32 %v589, %v589
        %v730 = vmul.f32 %v594, %v594
        %v731 = vsel %vm597, %v699, 0.0
        %v732 = vsel %vm597, %v700, 0.0
        %v733 = vadd.f32 %v731, %v732
        %v734 = vsel %vm597, %v701, 0.0
        %v735 = vadd.f32 %v733, %v734
        %v736 = vsel %vm597, %v702, 0.0
        %v737 = vadd.f32 %v735, %v736
        %v738 = vsel %vm597, %v703, 0.0
        %v739 = vadd.f32 %v737, %v738
        %v740 = vsel %vm597, %v704, 0.0
        %v741 = vadd.f32 %v739, %v740
        %v742 = vsel %vm597, %v705, 0.0
        %v743 = vadd.f32 %v741, %v742
        %v744 = vsel %vm597, %v706, 0.0
        %v745 = vadd.f32 %v743, %v744
        %v746 = vsel %vm597, %v707, 0.0
        %v747 = vadd.f32 %v745, %v746
        %v748 = vsel %vm597, %v708, 0.0
        %v749 = vadd.f32 %v747, %v748
        %v750 = vsel %vm597, %v709, 0.0
        %v751 = vadd.f32 %v749, %v750
        %v752 = vsel %vm597, %v710, 0.0
        %v753 = vadd.f32 %v751, %v752
        %v754 = vsel %vm597, %v711, 0.0
        %v755 = vadd.f32 %v753, %v754
        %v756 = vsel %vm597, %v712, 0.0
        %v757 = vadd.f32 %v755, %v756
        %v758 = vsel %vm597, %v713, 0.0
        %v759 = vadd.f32 %v757, %v758
        %v760 = vsel %vm597, %v714, 0.0
        %v761 = vadd.f32 %v759, %v760
        %v762 = vsel %vm597, %v715, 0.0
        %v763 = vadd.f32 %v761, %v762
        %v764 = vsel %vm597, %v716, 0.0
        %v765 = vadd.f32 %v763, %v764
        %v766 = vsel %vm597, %v717, 0.0
        %v767 = vadd.f32 %v765, %v766
        %v768 = vsel %vm597, %v718, 0.0
        %v769 = vadd.f32 %v767, %v768
        %v770 = vsel %vm597, %v719, 0.0
        %v771 = vadd.f32 %v769, %v770
        %v772 = vsel %vm597, %v720, 0.0
        %v773 = vadd.f32 %v771, %v772
        %v774 = vsel %vm597, %v721, 0.0
        %v775 = vadd.f32 %v773, %v774
        %v776 = vsel %vm597, %v722, 0.0
        %v777 = vadd.f32 %v775, %v776
        %v778 = vsel %vm597, %v723, 0.0
        %v779 = vadd.f32 %v777, %v778
        %v780 = vsel %vm597, %v724, 0.0
        %v781 = vadd.f32 %v779, %v780
        %v782 = vsel %vm597, %v725, 0.0
        %v783 = vadd.f32 %v781, %v782
        %v784 = vsel %vm597, %v726, 0.0
        %v785 = vadd.f32 %v783, %v784
        %v786 = vsel %vm597, %v727, 0.0
        %v787 = vadd.f32 %v785, %v786
        %v788 = vsel %vm597, %v728, 0.0
        %v789 = vadd.f32 %v787, %v788
        %v790 = vsel %vm597, %v729, 0.0
        %v791 = vadd.f32 %v789, %v790
        %v792 = vsel %vm597, %v730, 0.0
        %v793 = vadd.f32 %v791, %v792
        %v794 = vrot.slane %v793, 4
        %v795 = vadd.f32 %v793, %v794
        %v796 = vrot.slane %v795, 2
        %v797 = vadd.f32 %v795, %v796
        %v798 = vrot.slane %v797, 1
        %v799 = vadd.f32 %v797, %v798
        %vm800 = vcmask 1040384
        %v801 = vsel %vm800, %v698, %v799
        %vm802 = vcmask 25600
        %803 = vst.msk [vmem:[%s240] sm:$0x3] %vm802, %v801
        %s804 = smul.u32 16, %s23
        %p805 = scmp.lt.s32.totalorder %s22, 1
        %s806 = scalar_select %p805, %s22, 1
        %p807 = scmp.lt.s32.totalorder %s804, 15
        %s808 = scalar_select %p807, %s804, 15
        %s809 = smul.addr %s808, 2
        %s810 = smul.addr %s806, 32
        %s811 = sadd.s32 %s809, %s810
        %s812 = smul.addr %s811, 8
        %s813 = scalar_lea.vmem %s2, %s812
        %p814 = scmp.lt.s32.totalorder %s22, 1
        %s815 = scalar_select %p814, %s22, 1
        %p816 = scmp.lt.s32.totalorder %s23, 0
        %s817 = scalar_select %p816, %s23, 0
        %s818 = sadd.s32 %s817, %s815
        %s819 = smul.addr %s818, 2
        %s820 = scalar_lea.vmem %s3, %s819
        // Predicated region
        $region33: #{atrous_bottleneck_nhwc.4} parent=27 // pred_check
          %p821 = pneg %p99
        $region34: #{atrous_bottleneck_nhwc.4} parent=27 // pred_check_branch
          %823 = sbr.rel (%p821) target = $region36
        $region35: #{atrous_bottleneck_nhwc.4} parent=27 // pred_region
          %s824 = smul.u32 16, %s23
        $region36: #{atrous_bottleneck_nhwc.4} parent=27 // pred_fallthru
          _
        // Predicated region
        $region37: #{atrous_bottleneck_nhwc.4} parent=27 // pred_check
          %p825 = pneg %p127
        $region38: #{atrous_bottleneck_nhwc.4} parent=27 // pred_check_branch
          %827 = sbr.rel (%p825) target = $region40
        $region39: #{atrous_bottleneck_nhwc.4} parent=27 // pred_region
          _
        $region40: #{atrous_bottleneck_nhwc.4} parent=27 // pred_fallthru
          _
      $region28: #{atrous_bottleneck_nhwc.4} parent=5 // pred_fallthru
        _
      %p828 = scmp.le.s32.totalorder 2, %s13
      // Predicated region
      $region41: #{atrous_bottleneck_nhwc.4} parent=5 // pred_check
        %p829 = pneg %p828
      $region42: #{atrous_bottleneck_nhwc.4} parent=5 // pred_check_branch
        %831 = sbr.rel (%p829) target = $region44
      $region43: #{atrous_bottleneck_nhwc.4} parent=5 // pred_region
        %s832 = ssub.s32 %s13, 2
        // Predicated region
        $region45: #{atrous_bottleneck_nhwc.4} parent=43 // pred_check
          %p833 = pneg %p105
        $region46: #{atrous_bottleneck_nhwc.4} parent=43 // pred_check_branch
          %835 = sbr.rel (%p833) target = $region48
        $region47: #{atrous_bottleneck_nhwc.4} parent=43 // pred_region
          %s836 = smul.u32 16, %s25
          %p837 = scmp.lt.s32.totalorder %s24, 1
          %s838 = scalar_select %p837, %s24, 1
          %p839 = scmp.lt.s32.totalorder %s836, 15
          %s840 = scalar_select %p839, %s836, 15
          %s841 = smul.addr %s840, 2
          %s842 = smul.addr %s838, 32
          %s843 = sadd.s32 %s841, %s842
          %s844 = smul.addr %s843, 8
          %s845 = scalar_lea.vmem %s2, %s844
        $region48: #{atrous_bottleneck_nhwc.4} parent=43 // pred_fallthru
          _
        // Predicated region
        $region49: #{atrous_bottleneck_nhwc.4} parent=43 // pred_check
          %p846 = pneg %p133
        $region50: #{atrous_bottleneck_nhwc.4} parent=43 // pred_check_branch
          %848 = sbr.rel (%p846) target = $region52
        $region51: #{atrous_bottleneck_nhwc.4} parent=43 // pred_region
          %p849 = scmp.lt.s32.totalorder %s24, 1
          %s850 = scalar_select %p849, %s24, 1
          %p851 = scmp.lt.s32.totalorder %s25, 0
          %s852 = scalar_select %p851, %s25, 0
          %s853 = sadd.s32 %s852, %s850
          %s854 = smul.addr %s853, 2
          %s855 = scalar_lea.vmem %s3, %s854
        $region52: #{atrous_bottleneck_nhwc.4} parent=43 // pred_fallthru
          _
      $region44: #{atrous_bottleneck_nhwc.4} parent=5 // pred_fallthru
        _
    $region6: #{atrous_bottleneck_nhwc.4} parent=1 // loop_footer
      %s17 = sadd.s32 1, %s13
    $region7: #{atrous_bottleneck_nhwc.4} parent=1 // loop_footer_branch
      %12 = sbr.rel target = $region3
    $region8: #{atrous_bottleneck_nhwc.4} parent=1 // loop_exit
      _
    %856 = vsyncpa [#allocation3], 1
    %s857 = scalar_lea.sflag [#allocation3], 1
    %858 = vsyncpa %s857, 1

// kernel: atrous_bottleneck_nhwc.7
$region0: #{atrous_bottleneck_nhwc.7}
  #allocation0 [shape = 'u32[]', space=smem, size = 0x4, offset = 0x4, fixed_abs, tag = 'smem constant byte address 0x4 - core index']
  #allocation1 [shape = 'u32[144,128]{1,0:T(1,128)}', space=vmem, size = 0x12000, scoped, tag = 'internal scratch']
  %s0 = inlined_call_operand.vmem [shape: f32[2,16,16,16], index: 0, kind: input, shape index: {}]
  %s1 = inlined_call_operand.vmem [shape: f32[2,16,16,16], index: 1, kind: input, shape index: {}]
  %s2 = inlined_call_operand.vmem [shape: f32[2,16], index: 2, kind: input, shape index: {}]
  %s3 = inlined_call_operand.hbm [shape: f32[2,16,16,16], index: 3, kind: output, shape index: {}]
  %s4 = sld [smem:[#allocation0]]
  $region45: #{atrous_bottleneck_nhwc.7} parent=0
    _
  %s6 = ssub.s32 1, %s4
  %s7 = scalar_select 0, %s6, %s4
  $region1: #{atrous_bottleneck_nhwc.7} parent=0
    #allocation2 [shape = 'u8[262144]{0}', space=vmem, size = 0x40000, scoped, tag = 'output window, operand 0']
    #allocation3 [shape = 's32[2]{0}', space=sflag, size = 0x8, scoped, tag = 'scoped memory for atrous_bottleneck_nhwc.7']
    %8 = vsyncpa [#allocation3], 0
    %s9 = scalar_lea.sflag [#allocation3], 1
    %10 = vsyncpa %s9, 0
    loop: start=0, step=1, limit=4
    $region2: #{atrous_bottleneck_nhwc.7} parent=1 // loop_pre_header
      _
    $region3: #{atrous_bottleneck_nhwc.7} parent=1 // loop_header
      %s12 = sphi 0, %s16
      %p13 = scmp.ge.s32.totalorder %s12, 4
      %s19 = sphi 0, %s31
      %s20 = sphi 0, %s27
      %s21 = sphi 0, %s19
      %s22 = sphi 0, %s20
      %s23 = sphi 0, %s21
      %s24 = sphi 0, %s22
      %s36 = sphi 0, %s38
      %s39 = sphi 0, %s36
      %s40 = sphi 0, %s39
      %s56 = sphi 0, %s40
      %s64 = sphi 0, %s66
      %s67 = sphi 0, %s64
      %s68 = sphi 0, %s67
      %s84 = sphi 0, %s68
      %s88 = sphi 0, %s88
      %s90 = sphi 0, %s88
      %s91 = sphi 0, %s90
      %s105 = sphi 0, %s91
      %s113 = sphi 0, %s115
      %s116 = sphi 0, %s113
      %s117 = sphi 0, %s116
      %s133 = sphi 0, %s117
    $region4: #{atrous_bottleneck_nhwc.7} parent=1 // loop_header_branch
      %15 = sbr.rel (%p13) target = $region8
    $region5: #{atrous_bottleneck_nhwc.7} parent=1 // loop_body
      %s17 = ssub.s32 %s12, 1
      %s18 = ssub.s32 %s12, 2
      %s25 = sadd.s32 1, %s20
      %p26 = scmp.ge.s32.totalorder %s25, 1
      %s27 = scalar_select %p26, 0, %s25
      %s28 = sadd.s32 1, %s19
      %s29 = scalar_select %p26, %s28, %s19
      %p30 = scmp.ge.s32.totalorder %s29, 2
      %s31 = scalar_select %p30, 0, %s29
      %s32 = ssub.s32 %s19, %s31
      %s33 = ssub.s32 %s20, %s27
      %s34 = sor.u32 %s32, %s33
      %p35 = scmp.eq.s32.totalorder %s34, 0
      %s37 = sadd.s32 %s36, 1
      %s38 = scalar_select %p35, %s36, %s37
      %p41 = pneg %p35
      %p42 = scmp.eq.s32.totalorder %s12, 1
      %p43 = por %p41, %p42
      %p44 = scmp.ne.s32.totalorder %s36, %s39
      %p45 = scmp.eq.s32.totalorder %s12, 0
      %p46 = por %p44, %p45
      %p47 = scmp.ne.s32.totalorder %s36, %s39
      %p48 = scmp.eq.s32.totalorder %s17, 1
      %p49 = por %p47, %p48
      %p50 = scmp.ne.s32.totalorder %s39, %s40
      %p51 = scmp.eq.s32.totalorder %s17, 0
      %p52 = por %p50, %p51
      %p53 = scmp.ne.s32.totalorder %s39, %s40
      %p54 = scmp.eq.s32.totalorder %s18, 1
      %p55 = por %p53, %p54
      %p57 = scmp.ne.s32.totalorder %s40, %s56
      %p58 = scmp.eq.s32.totalorder %s18, 0
      %p59 = por %p57, %p58
      %s60 = ssub.s32 %s19, %s31
      %s61 = ssub.s32 %s20, %s27
      %s62 = sor.u32 %s60, %s61
      %p63 = scmp.eq.s32.totalorder %s62, 0
      %s65 = sadd.s32 %s64, 1
      %s66 = scalar_select %p63, %s64, %s65
      %p69 = pneg %p63
      %p70 = scmp.eq.s32.totalorder %s12, 1
      %p71 = por %p69, %p70
      %p72 = scmp.ne.s32.totalorder %s64, %s67
      %p73 = scmp.eq.s32.totalorder %s12, 0
      %p74 = por %p72, %p73
      %p75 = scmp.ne.s32.totalorder %s64, %s67
      %p76 = scmp.eq.s32.totalorder %s17, 1
      %p77 = por %p75, %p76
      %p78 = scmp.ne.s32.totalorder %s67, %s68
      %p79 = scmp.eq.s32.totalorder %s17, 0
      %p80 = por %p78, %p79
      %p81 = scmp.ne.s32.totalorder %s67, %s68
      %p82 = scmp.eq.s32.totalorder %s18, 1
      %p83 = por %p81, %p82
      %p85 = scmp.ne.s32.totalorder %s68, %s84
      %p86 = scmp.eq.s32.totalorder %s18, 0
      %p87 = por %p85, %p86
      %s89 = sadd.s32 %s88, 1
      %p92 = scmp.eq.s32.totalorder %s12, 1
      %p93 = scmp.ne.s32.totalorder %s88, %s90
      %p94 = scmp.eq.s32.totalorder %s12, 0
      %p95 = por %p93, %p94
      %p96 = scmp.ne.s32.totalorder %s88, %s90
      %p97 = scmp.eq.s32.totalorder %s17, 1
      %p98 = por %p96, %p97
      %p99 = scmp.ne.s32.totalorder %s90, %s91
      %p100 = scmp.eq.s32.totalorder %s17, 0
      %p101 = por %p99, %p100
      %p102 = scmp.ne.s32.totalorder %s90, %s91
      %p103 = scmp.eq.s32.totalorder %s18, 1
      %p104 = por %p102, %p103
      %p106 = scmp.ne.s32.totalorder %s91, %s105
      %p107 = scmp.eq.s32.totalorder %s18, 0
      %p108 = por %p106, %p107
      %s109 = ssub.s32 %s19, %s31
      %s110 = ssub.s32 %s20, %s27
      %s111 = sor.u32 %s109, %s110
      %p112 = scmp.eq.s32.totalorder %s111, 0
      %s114 = sadd.s32 %s113, 1
      %s115 = scalar_select %p112, %s113, %s114
      %p118 = pneg %p112
      %p119 = scmp.eq.s32.totalorder %s12, 1
      %p120 = por %p118, %p119
      %p121 = scmp.ne.s32.totalorder %s113, %s116
      %p122 = scmp.eq.s32.totalorder %s12, 0
      %p123 = por %p121, %p122
      %p124 = scmp.ne.s32.totalorder %s113, %s116
      %p125 = scmp.eq.s32.totalorder %s17, 1
      %p126 = por %p124, %p125
      %p127 = scmp.ne.s32.totalorder %s116, %s117
      %p128 = scmp.eq.s32.totalorder %s17, 0
      %p129 = por %p127, %p128
      %p130 = scmp.ne.s32.totalorder %s116, %s117
      %p131 = scmp.eq.s32.totalorder %s18, 1
      %p132 = por %p130, %p131
      %p134 = scmp.ne.s32.totalorder %s117, %s133
      %p135 = scmp.eq.s32.totalorder %s18, 0
      %p136 = por %p134, %p135
      %p137 = scmp.le.s32.totalorder 1, %s12
      %p138 = scmp.lt.s32.totalorder %s12, 3
      %p139 = pnand %p137, %p138
      %p140 = pneg %p139
      // Predicated region
      $region9: #{atrous_bottleneck_nhwc.7} parent=5 // pred_check
        _
      $region10: #{atrous_bottleneck_nhwc.7} parent=5 // pred_check_branch
        %142 = sbr.rel (%p139) target = $region12
      $region11: #{atrous_bottleneck_nhwc.7} parent=5 // pred_region
        %s143 = ssub.s32 %s12, 1
        // Predicated region
        $region13: #{atrous_bottleneck_nhwc.7} parent=11 // pred_check
          %p144 = pneg %p101
        $region14: #{atrous_bottleneck_nhwc.7} parent=11 // pred_check_branch
          %146 = sbr.rel (%p144) target = $region16
        $region15: #{atrous_bottleneck_nhwc.7} parent=11 // pred_region
          _
        $region16: #{atrous_bottleneck_nhwc.7} parent=11 // pred_fallthru
          _
      $region12: #{atrous_bottleneck_nhwc.7} parent=5 // pred_fallthru
        _
      %p147 = scmp.lt.s32.totalorder %s12, 2
      // Predicated region
      $region17: #{atrous_bottleneck_nhwc.7} parent=5 // pred_check
        %p148 = pneg %p147
      $region18: #{atrous_bottleneck_nhwc.7} parent=5 // pred_check_branch
        %150 = sbr.rel (%p148) target = $region20
      $region19: #{atrous_bottleneck_nhwc.7} parent=5 // pred_region
        // Predicated region
        $region21: #{atrous_bottleneck_nhwc.7} parent=19 // pred_check
          %p151 = pneg %p46
        $region22: #{atrous_bottleneck_nhwc.7} parent=19 // pred_check_branch
          %153 = sbr.rel (%p151) target = $region24
        $region23: #{atrous_bottleneck_nhwc.7} parent=19 // pred_region
          %s154 = smul.u32 16, %s20
          %p155 = scmp.lt.s32.totalorder %s19, 1
          %s156 = scalar_select %p155, %s19, 1
          %p157 = scmp.lt.s32.totalorder %s154, 15
          %s158 = scalar_select %p157, %s154, 15
          %s159 = smul.addr %s158, 2
          %s160 = smul.addr %s156, 32
          %s161 = sadd.s32 %s159, %s160
          %s162 = smul.addr %s161, 8
          %s163 = scalar_lea.vmem %s0, %s162
          %s164 = smul.u32 16, %s20
        $region24: #{atrous_bottleneck_nhwc.7} parent=19 // pred_fallthru
          _
        // Predicated region
        $region25: #{atrous_bottleneck_nhwc.7} parent=19 // pred_check
          %p165 = pneg %p74
        $region26: #{atrous_bottleneck_nhwc.7} parent=19 // pred_check_branch
          %167 = sbr.rel (%p165) target = $region28
        $region27: #{atrous_bottleneck_nhwc.7} parent=19 // pred_region
          %s168 = smul.u32 16, %s20
          %p169 = scmp.lt.s32.totalorder %s19, 1
          %s170 = scalar_select %p169, %s19, 1
          %p171 = scmp.lt.s32.totalorder %s168, 15
          %s172 = scalar_select %p171, %s168, 15
          %s173 = smul.addr %s172, 2
          %s174 = smul.addr %s170, 32
          %s175 = sadd.s32 %s173, %s174
          %s176 = smul.addr %s175, 8
          %s177 = scalar_lea.vmem %s1, %s176
          %s178 = smul.u32 16, %s20
        $region28: #{atrous_bottleneck_nhwc.7} parent=19 // pred_fallthru
          _
      $region20: #{atrous_bottleneck_nhwc.7} parent=5 // pred_fallthru
        _
      %p179 = scmp.le.s32.totalorder 1, %s12
      %p180 = scmp.lt.s32.totalorder %s12, 3
      %p181 = pnand %p179, %p180
      %p182 = pneg %p181
      // Predicated region
      $region29: #{atrous_bottleneck_nhwc.7} parent=5 // pred_check
        _
      $region30: #{atrous_bottleneck_nhwc.7} parent=5 // pred_check_branch
        %184 = sbr.rel (%p181) target = $region32
      $region31: #{atrous_bottleneck_nhwc.7} parent=5 // pred_region
        %s185 = ssub.s32 %s12, 1
        %s186 = smul.u32 16, %s22
        %p187 = scmp.lt.s32.totalorder %s21, 1
        %s188 = scalar_select %p187, %s21, 1
        %p189 = scmp.lt.s32.totalorder %s186, 15
        %s190 = scalar_select %p189, %s186, 15
        %s191 = smul.addr %s190, 2
        %s192 = smul.addr %s188, 32
        %s193 = sadd.s32 %s191, %s192
        %s194 = smul.addr %s193, 8
        %s195 = scalar_lea.vmem %s0, %s194
        %p196 = pneg %p52
        %p197 = pneg %p49
        %s198 = smul.u32 16, %s22
        %p199 = scmp.lt.s32.totalorder %s21, 1
        %s200 = scalar_select %p199, %s21, 1
        %p201 = scmp.lt.s32.totalorder %s198, 15
        %s202 = scalar_select %p201, %s198, 15
        %s203 = smul.addr %s202, 2
        %s204 = smul.addr %s200, 32
        %s205 = sadd.s32 %s203, %s204
        %s206 = smul.addr %s205, 8
        %s207 = scalar_lea.vmem %s1, %s206
        %p208 = pneg %p80
        %p209 = pneg %p77
        %p210 = pneg %p101
        %p211 = pneg %p98
        %p212 = pneg %p129
        %p213 = pneg %p126
        %s214 = sand.u32 %s116, 1
        %s215 = scalar_lea.sflag [#allocation3], %s214
        %s216 = sand.u32 %s116, 1
        %s217 = smul.addr %s216, 256
        %s218 = scalar_lea.vmem [#allocation2], %s217
        %s219 = smul.u32 16, %s22
        %p220 = scmp.lt.s32.totalorder %s21, 1
        %s221 = scalar_select %p220, %s21, 1
        %p222 = scmp.lt.s32.totalorder %s219, 15
        %s223 = scalar_select %p222, %s219, 15
        %s224 = smul.addr %s223, 2
        %s225 = smul.addr %s221, 32
        %s226 = sadd.s32 %s224, %s225
        %s227 = smul.addr %s226, 8
        %s228 = scalar_lea.vmem %s0, %s227
        %s229 = smul.u32 16, %s22
        %s230 = smul.u32 16, %s22
        %p231 = scmp.lt.s32.totalorder %s21, 1
        %s232 = scalar_select %p231, %s21, 1
        %p233 = scmp.lt.s32.totalorder %s230, 15
        %s234 = scalar_select %p233, %s230, 15
        %s235 = smul.addr %s234, 2
        %s236 = smul.addr %s232, 32
        %s237 = sadd.s32 %s235, %s236
        %s238 = smul.addr %s237, 8
        %s239 = scalar_lea.vmem %s1, %s238
        %s240 = smul.u32 16, %s22
        %s241 = smul.u32 16, %s22
        %v242 = vld [vmem:[%s2] sm:$0x3]
        %v243 = vld [vmem:[%s228] sm:$0xff]
        %v244 = vld [vmem:[%s228 + $0x8] sm:$0xff]
        %v245 = vld [vmem:[%s228 + $0x10] sm:$0xff]
        %v246 = vld [vmem:[%s228 + $0x18] sm:$0xff]
        %v247 = vld [vmem:[%s228 + $0x20] sm:$0xff]
        %v248 = vld [vmem:[%s228 + $0x28] sm:$0xff]
        %v249 = vld [vmem:[%s228 + $0x30] sm:$0xff]
        %v250 = vld [vmem:[%s228 + $0x38] sm:$0xff]
        %v251 = vld [vmem:[%s228 + $0x40] sm:$0xff]
        %v252 = vld [vmem:[%s228 + $0x48] sm:$0xff]
        %v253 = vld [vmem:[%s228 + $0x50] sm:$0xff]
        %v254 = vld [vmem:[%s228 + $0x58] sm:$0xff]
        %v255 = vld [vmem:[%s228 + $0x60] sm:$0xff]
        %v256 = vld [vmem:[%s228 + $0x68] sm:$0xff]
        %v257 = vld [vmem:[%s228 + $0x70] sm:$0xff]
        %v258 = vld [vmem:[%s228 + $0x78] sm:$0xff]
        %v259 = vld [vmem:[%s228 + $0x80] sm:$0xff]
        %v260 = vld [vmem:[%s228 + $0x88] sm:$0xff]
        %v261 = vld [vmem:[%s228 + $0x90] sm:$0xff]
        %v262 = vld [vmem:[%s228 + $0x98] sm:$0xff]
        %v263 = vld [vmem:[%s228 + $0xa0] sm:$0xff]
        %v264 = vld [vmem:[%s228 + $0xa8] sm:$0xff]
        %v265 = vld [vmem:[%s228 + $0xb0] sm:$0xff]
        %v266 = vld [vmem:[%s228 + $0xb8] sm:$0xff]
        %v267 = vld [vmem:[%s228 + $0xc0] sm:$0xff]
        %v268 = vld [vmem:[%s228 + $0xc8] sm:$0xff]
        %v269 = vld [vmem:[%s228 + $0xd0] sm:$0xff]
        %v270 = vld [vmem:[%s228 + $0xd8] sm:$0xff]
        %v271 = vld [vmem:[%s228 + $0xe0] sm:$0xff]
        %v272 = vld [vmem:[%s228 + $0xe8] sm:$0xff]
        %v273 = vld [vmem:[%s228 + $0xf0] sm:$0xff]
        %v274 = vld [vmem:[%s228 + $0xf8] sm:$0xff]
        %v275 = vlaneseq
        %v276 = vshrl.u32 %v275, 7
        %v277 = vsub.s32 0, %v276
        %v278 = vrot.slane %v242, %v277
        %v279 = vmul.f32 %v243, %v278
        %v280 = vmul.f32 %v244, %v278
        %v281 = vmul.f32 %v245, %v278
        %v282 = vmul.f32 %v246, %v278
        %v283 = vmul.f32 %v247, %v278
        %v284 = vmul.f32 %v248, %v278
        %v285 = vmul.f32 %v249, %v278
        %v286 = vmul.f32 %v250, %v278
        %v287 = vmul.f32 %v251, %v278
        %v288 = vmul.f32 %v252, %v278
        %v289 = vmul.f32 %v253, %v278
        %v290 = vmul.f32 %v254, %v278
        %v291 = vmul.f32 %v255, %v278
        %v292 = vmul.f32 %v256, %v278
        %v293 = vmul.f32 %v257, %v278
        %v294 = vmul.f32 %v258, %v278
        %v295 = vmul.f32 %v259, %v278
        %v296 = vmul.f32 %v260, %v278
        %v297 = vmul.f32 %v261, %v278
        %v298 = vmul.f32 %v262, %v278
        %v299 = vmul.f32 %v263, %v278
        %v300 = vmul.f32 %v264, %v278
        %v301 = vmul.f32 %v265, %v278
        %v302 = vmul.f32 %v266, %v278
        %v303 = vmul.f32 %v267, %v278
        %v304 = vmul.f32 %v268, %v278
        %v305 = vmul.f32 %v269, %v278
        %v306 = vmul.f32 %v270, %v278
        %v307 = vmul.f32 %v271, %v278
        %v308 = vmul.f32 %v272, %v278
        %v309 = vmul.f32 %v273, %v278
        %v310 = vmul.f32 %v274, %v278
        %v311 = vlaneseq
        %v312 = vshrl.u32 %v311, 7
        %v313 = vsub.s32 1, %v312
        %v314 = vrot.slane %v242, %v313
        %v315 = vadd.f32 %v279, %v314
        %v316 = vadd.f32 %v280, %v314
        %v317 = vadd.f32 %v281, %v314
        %v318 = vadd.f32 %v282, %v314
        %v319 = vadd.f32 %v283, %v314
        %v320 = vadd.f32 %v284, %v314
        %v321 = vadd.f32 %v285, %v314
        %v322 = vadd.f32 %v286, %v314
        %v323 = vadd.f32 %v287, %v314
        %v324 = vadd.f32 %v288, %v314
        %v325 = vadd.f32 %v289, %v314
        %v326 = vadd.f32 %v290, %v314
        %v327 = vadd.f32 %v291, %v314
        %v328 = vadd.f32 %v292, %v314
        %v329 = vadd.f32 %v293, %v314
        %v330 = vadd.f32 %v294, %v314
        %v331 = vadd.f32 %v295, %v314
        %v332 = vadd.f32 %v296, %v314
        %v333 = vadd.f32 %v297, %v314
        %v334 = vadd.f32 %v298, %v314
        %v335 = vadd.f32 %v299, %v314
        %v336 = vadd.f32 %v300, %v314
        %v337 = vadd.f32 %v301, %v314
        %v338 = vadd.f32 %v302, %v314
        %v339 = vadd.f32 %v303, %v314
        %v340 = vadd.f32 %v304, %v314
        %v341 = vadd.f32 %v305, %v314
        %v342 = vadd.f32 %v306, %v314
        %v343 = vadd.f32 %v307, %v314
        %v344 = vadd.f32 %v308, %v314
        %v345 = vadd.f32 %v309, %v314
        %v346 = vadd.f32 %v310, %v314
        %v347 = vld [vmem:[%s239] sm:$0xff]
        %v348 = vld [vmem:[%s239 + $0x8] sm:$0xff]
        %v349 = vld [vmem:[%s239 + $0x10] sm:$0xff]
        %v350 = vld [vmem:[%s239 + $0x18] sm:$0xff]
        %v351 = vld [vmem:[%s239 + $0x20] sm:$0xff]
        %v352 = vld [vmem:[%s239 + $0x28] sm:$0xff]
        %v353 = vld [vmem:[%s239 + $0x30] sm:$0xff]
        %v354 = vld [vmem:[%s239 + $0x38] sm:$0xff]
        %v355 = vld [vmem:[%s239 + $0x40] sm:$0xff]
        %v356 = vld [vmem:[%s239 + $0x48] sm:$0xff]
        %v357 = vld [vmem:[%s239 + $0x50] sm:$0xff]
        %v358 = vld [vmem:[%s239 + $0x58] sm:$0xff]
        %v359 = vld [vmem:[%s239 + $0x60] sm:$0xff]
        %v360 = vld [vmem:[%s239 + $0x68] sm:$0xff]
        %v361 = vld [vmem:[%s239 + $0x70] sm:$0xff]
        %v362 = vld [vmem:[%s239 + $0x78] sm:$0xff]
        %v363 = vld [vmem:[%s239 + $0x80] sm:$0xff]
        %v364 = vld [vmem:[%s239 + $0x88] sm:$0xff]
        %v365 = vld [vmem:[%s239 + $0x90] sm:$0xff]
        %v366 = vld [vmem:[%s239 + $0x98] sm:$0xff]
        %v367 = vld [vmem:[%s239 + $0xa0] sm:$0xff]
        %v368 = vld [vmem:[%s239 + $0xa8] sm:$0xff]
        %v369 = vld [vmem:[%s239 + $0xb0] sm:$0xff]
        %v370 = vld [vmem:[%s239 + $0xb8] sm:$0xff]
        %v371 = vld [vmem:[%s239 + $0xc0] sm:$0xff]
        %v372 = vld [vmem:[%s239 + $0xc8] sm:$0xff]
        %v373 = vld [vmem:[%s239 + $0xd0] sm:$0xff]
        %v374 = vld [vmem:[%s239 + $0xd8] sm:$0xff]
        %v375 = vld [vmem:[%s239 + $0xe0] sm:$0xff]
        %v376 = vld [vmem:[%s239 + $0xe8] sm:$0xff]
        %v377 = vld [vmem:[%s239 + $0xf0] sm:$0xff]
        %v378 = vld [vmem:[%s239 + $0xf8] sm:$0xff]
        %v379 = vadd.f32 %v315, %v347
        %v380 = vadd.f32 %v316, %v348
        %v381 = vadd.f32 %v317, %v349
        %v382 = vadd.f32 %v318, %v350
        %v383 = vadd.f32 %v319, %v351
        %v384 = vadd.f32 %v320, %v352
        %v385 = vadd.f32 %v321, %v353
        %v386 = vadd.f32 %v322, %v354
        %v387 = vadd.f32 %v323, %v355
        %v388 = vadd.f32 %v324, %v356
        %v389 = vadd.f32 %v325, %v357
        %v390 = vadd.f32 %v326, %v358
        %v391 = vadd.f32 %v327, %v359
        %v392 = vadd.f32 %v328, %v360
        %v393 = vadd.f32 %v329, %v361
        %v394 = vadd.f32 %v330, %v362
        %v395 = vadd.f32 %v331, %v363
        %v396 = vadd.f32 %v332, %v364
        %v397 = vadd.f32 %v333, %v365
        %v398 = vadd.f32 %v334, %v366
        %v399 = vadd.f32 %v335, %v367
        %v400 = vadd.f32 %v336, %v368
        %v401 = vadd.f32 %v337, %v369
        %v402 = vadd.f32 %v338, %v370
        %v403 = vadd.f32 %v339, %v371
        %v404 = vadd.f32 %v340, %v372
        %v405 = vadd.f32 %v341, %v373
        %v406 = vadd.f32 %v342, %v374
        %v407 = vadd.f32 %v343, %v375
        %v408 = vadd.f32 %v344, %v376
        %v409 = vadd.f32 %v345, %v377
        %v410 = vadd.f32 %v346, %v378
        %v411 = vmax.f32 %v379, 0.0
        %v412 = vmax.f32 %v380, 0.0
        %v413 = vmax.f32 %v381, 0.0
        %v414 = vmax.f32 %v382, 0.0
        %v415 = vmax.f32 %v383, 0.0
        %v416 = vmax.f32 %v384, 0.0
        %v417 = vmax.f32 %v385, 0.0
        %v418 = vmax.f32 %v386, 0.0
        %v419 = vmax.f32 %v387, 0.0
        %v420 = vmax.f32 %v388, 0.0
        %v421 = vmax.f32 %v389, 0.0
        %v422 = vmax.f32 %v390, 0.0
        %v423 = vmax.f32 %v391, 0.0
        %v424 = vmax.f32 %v392, 0.0
        %v425 = vmax.f32 %v393, 0.0
        %v426 = vmax.f32 %v394, 0.0
        %v427 = vmax.f32 %v395, 0.0
        %v428 = vmax.f32 %v396, 0.0
        %v429 = vmax.f32 %v397, 0.0
        %v430 = vmax.f32 %v398, 0.0
        %v431 = vmax.f32 %v399, 0.0
        %v432 = vmax.f32 %v400, 0.0
        %v433 = vmax.f32 %v401, 0.0
        %v434 = vmax.f32 %v402, 0.0
        %v435 = vmax.f32 %v403, 0.0
        %v436 = vmax.f32 %v404, 0.0
        %v437 = vmax.f32 %v405, 0.0
        %v438 = vmax.f32 %v406, 0.0
        %v439 = vmax.f32 %v407, 0.0
        %v440 = vmax.f32 %v408, 0.0
        %v441 = vmax.f32 %v409, 0.0
        %v442 = vmax.f32 %v410, 0.0
        %vm443 = vcmask 130048
        %444 = vst.msk [vmem:[%s218] sm:$0xff] %vm443, %v411
        %445 = vst.msk [vmem:[%s218 + $0x8] sm:$0xff] %vm443, %v412
        %446 = vst.msk [vmem:[%s218 + $0x10] sm:$0xff] %vm443, %v413
        %447 = vst.msk [vmem:[%s218 + $0x18] sm:$0xff] %vm443, %v414
        %448 = vst.msk [vmem:[%s218 + $0x20] sm:$0xff] %vm443, %v415
        %449 = vst.msk [vmem:[%s218 + $0x28] sm:$0xff] %vm443, %v416
        %450 = vst.msk [vmem:[%s218 + $0x30] sm:$0xff] %vm443, %v417
        %451 = vst.msk [vmem:[%s218 + $0x38] sm:$0xff] %vm443, %v418
        %452 = vst.msk [vmem:[%s218 + $0x40] sm:$0xff] %vm443, %v419
        %453 = vst.msk [vmem:[%s218 + $0x48] sm:$0xff] %vm443, %v420
        %454 = vst.msk [vmem:[%s218 + $0x50] sm:$0xff] %vm443, %v421
        %455 = vst.msk [vmem:[%s218 + $0x58] sm:$0xff] %vm443, %v422
        %456 = vst.msk [vmem:[%s218 + $0x60] sm:$0xff] %vm443, %v423
        %457 = vst.msk [vmem:[%s218 + $0x68] sm:$0xff] %vm443, %v424
        %458 = vst.msk [vmem:[%s218 + $0x70] sm:$0xff] %vm443, %v425
        %459 = vst.msk [vmem:[%s218 + $0x78] sm:$0xff] %vm443, %v426
        %460 = vst.msk [vmem:[%s218 + $0x80] sm:$0xff] %vm443, %v427
        %461 = vst.msk [vmem:[%s218 + $0x88] sm:$0xff] %vm443, %v428
        %462 = vst.msk [vmem:[%s218 + $0x90] sm:$0xff] %vm443, %v429
        %463 = vst.msk [vmem:[%s218 + $0x98] sm:$0xff] %vm443, %v430
        %464 = vst.msk [vmem:[%s218 + $0xa0] sm:$0xff] %vm443, %v431
        %465 = vst.msk [vmem:[%s218 + $0xa8] sm:$0xff] %vm443, %v432
        %466 = vst.msk [vmem:[%s218 + $0xb0] sm:$0xff] %vm443, %v433
        %467 = vst.msk [vmem:[%s218 + $0xb8] sm:$0xff] %vm443, %v434
        %468 = vst.msk [vmem:[%s218 + $0xc0] sm:$0xff] %vm443, %v435
        %469 = vst.msk [vmem:[%s218 + $0xc8] sm:$0xff] %vm443, %v436
        %470 = vst.msk [vmem:[%s218 + $0xd0] sm:$0xff] %vm443, %v437
        %471 = vst.msk [vmem:[%s218 + $0xd8] sm:$0xff] %vm443, %v438
        %472 = vst.msk [vmem:[%s218 + $0xe0] sm:$0xff] %vm443, %v439
        %473 = vst.msk [vmem:[%s218 + $0xe8] sm:$0xff] %vm443, %v440
        %474 = vst.msk [vmem:[%s218 + $0xf0] sm:$0xff] %vm443, %v441
        %475 = vst.msk [vmem:[%s218 + $0xf8] sm:$0xff] %vm443, %v442
        %s476 = sand.u32 %s116, 1
        %s477 = scalar_lea.sflag [#allocation3], %s476
        %s478 = sand.u32 %s116, 1
        %s479 = smul.addr %s478, 256
        %s480 = scalar_lea.vmem [#allocation2], %s479
        // Predicated region
        $region33: #{atrous_bottleneck_nhwc.7} parent=31 // pred_check
          %p481 = pneg %p126
        $region34: #{atrous_bottleneck_nhwc.7} parent=31 // pred_check_branch
          %483 = sbr.rel (%p481) target = $region36
        $region35: #{atrous_bottleneck_nhwc.7} parent=31 // pred_region
          %s484 = smul.u32 16, %s22
          %s486 = ssub.s32 4096, 4096
          %487 = vsyncadd %s477, %s486
          %s488 = smul.addr %s484, 2
          %s489 = smul.addr %s21, 32
          %s490 = sadd.s32 %s488, %s489
          %s491 = smul.addr %s490, 128
          %s492 = scalar_lea.hbm %s3, %s491
          %s493 = sshll.u32 %s480, 4
          %s494 = int_to_ptr.vmem [resolvable:$true] %s493
          %499 = dma.vmem_to_hbm [thread:$0]  %s494, 4096, %s492, %s477, 128, 128, 8
        $region36: #{atrous_bottleneck_nhwc.7} parent=31 // pred_fallthru
          _
      $region32: #{atrous_bottleneck_nhwc.7} parent=5 // pred_fallthru
        _
      %p500 = scmp.le.s32.totalorder 2, %s12
      // Predicated region
      $region37: #{atrous_bottleneck_nhwc.7} parent=5 // pred_check
        %p501 = pneg %p500
      $region38: #{atrous_bottleneck_nhwc.7} parent=5 // pred_check_branch
        %503 = sbr.rel (%p501) target = $region40
      $region39: #{atrous_bottleneck_nhwc.7} parent=5 // pred_region
        %s504 = ssub.s32 %s12, 2
        // Predicated region
        $region41: #{atrous_bottleneck_nhwc.7} parent=39 // pred_check
          %p505 = pneg %p132
        $region42: #{atrous_bottleneck_nhwc.7} parent=39 // pred_check_branch
          %507 = sbr.rel (%p505) target = $region44
        $region43: #{atrous_bottleneck_nhwc.7} parent=39 // pred_region
          %s508 = sand.u32 %s117, 1
          %s509 = scalar_lea.sflag [#allocation3], %s508
          %s510 = sand.u32 %s117, 1
          %s511 = smul.addr %s510, 256
          %s512 = scalar_lea.vmem [#allocation2], %s511
          %513 = dma.done %s509, 4096
        $region44: #{atrous_bottleneck_nhwc.7} parent=39 // pred_fallthru
          _
      $region40: #{atrous_bottleneck_nhwc.7} parent=5 // pred_fallthru
        _
    $region6: #{atrous_bottleneck_nhwc.7} parent=1 // loop_footer
      %s16 = sadd.s32 1, %s12
    $region7: #{atrous_bottleneck_nhwc.7} parent=1 // loop_footer_branch
      %11 = sbr.rel target = $region3
    $region8: #{atrous_bottleneck_nhwc.7} parent=1 // loop_exit
      _
    %514 = vsyncpa [#allocation3], 1
    %s515 = scalar_lea.sflag [#allocation3], 1
    %516 = vsyncpa %s515, 1

// kernel: atrous_bottleneck_nhwc.6
$region0: #{atrous_bottleneck_nhwc.6}
  #allocation0 [shape = 'u32[]', space=smem, size = 0x4, offset = 0x4, fixed_abs, tag = 'smem constant byte address 0x4 - core index']
  #allocation1 [shape = 'u32[144,128]{1,0:T(1,128)}', space=vmem, size = 0x12000, scoped, tag = 'internal scratch']
  %s0 = inlined_call_operand.vmem [shape: f32[2,16,16,4], index: 0, kind: input, shape index: {}]
  %s1 = inlined_call_operand.vmem [shape: f32[2,4], index: 1, kind: input, shape index: {}]
  %s2 = inlined_call_operand.vmem [shape: f32[4,16], index: 2, kind: input, shape index: {}]
  %s3 = inlined_call_operand.vmem [shape: f32[2,16,16,16], index: 3, kind: output, shape index: {0}]
  %s4 = inlined_call_operand.vmem [shape: f32[2,1,2,16], index: 4, kind: output, shape index: {1}]
  %5 = xla_tuple %s3, %s4
  %s6 = sld [smem:[#allocation0]]
  $region53: #{atrous_bottleneck_nhwc.6} parent=0
    _
  %s8 = ssub.s32 1, %s6
  %s9 = scalar_select 0, %s8, %s6
  loop: start=0, step=1, limit=4
  $region2: #{atrous_bottleneck_nhwc.6} parent=0 // loop_pre_header
    _
  $region3: #{atrous_bottleneck_nhwc.6} parent=0 // loop_header
    %s11 = sphi 0, %s15
    %p12 = scmp.ge.s32.totalorder %s11, 4
    %s18 = sphi 0, %s30
    %s19 = sphi 0, %s26
    %s20 = sphi 0, %s18
    %s21 = sphi 0, %s19
    %s22 = sphi 0, %s20
    %s23 = sphi 0, %s21
    %s35 = sphi 0, %s37
    %s38 = sphi 0, %s35
    %s39 = sphi 0, %s38
    %s55 = sphi 0, %s39
    %s59 = sphi 0, %s59
    %s61 = sphi 0, %s59
    %s62 = sphi 0, %s61
    %s76 = sphi 0, %s62
    %s80 = sphi 0, %s80
    %s82 = sphi 0, %s80
    %s83 = sphi 0, %s82
    %s97 = sphi 0, %s83
    %s105 = sphi 0, %s107
    %s108 = sphi 0, %s105
    %s109 = sphi 0, %s108
    %s125 = sphi 0, %s109
    %s133 = sphi 0, %s135
    %s136 = sphi 0, %s133
    %s137 = sphi 0, %s136
    %s153 = sphi 0, %s137
  $region4: #{atrous_bottleneck_nhwc.6} parent=0 // loop_header_branch
    %14 = sbr.rel (%p12) target = $region8
  $region5: #{atrous_bottleneck_nhwc.6} parent=0 // loop_body
    %s16 = ssub.s32 %s11, 1
    %s17 = ssub.s32 %s11, 2
    %s24 = sadd.s32 1, %s19
    %p25 = scmp.ge.s32.totalorder %s24, 1
    %s26 = scalar_select %p25, 0, %s24
    %s27 = sadd.s32 1, %s18
    %s28 = scalar_select %p25, %s27, %s18
    %p29 = scmp.ge.s32.totalorder %s28, 2
    %s30 = scalar_select %p29, 0, %s28
    %s31 = ssub.s32 %s18, %s30
    %s32 = ssub.s32 %s19, %s26
    %s33 = sor.u32 %s31, %s32
    %p34 = scmp.eq.s32.totalorder %s33, 0
    %s36 = sadd.s32 %s35, 1
    %s37 = scalar_select %p34, %s35, %s36
    %p40 = pneg %p34
    %p41 = scmp.eq.s32.totalorder %s11, 1
    %p42 = por %p40, %p41
    %p43 = scmp.ne.s32.totalorder %s35, %s38
    %p44 = scmp.eq.s32.totalorder %s11, 0
    %p45 = por %p43, %p44
    %p46 = scmp.ne.s32.totalorder %s35, %s38
    %p47 = scmp.eq.s32.totalorder %s16, 1
    %p48 = por %p46, %p47
    %p49 = scmp.ne.s32.totalorder %s38, %s39
    %p50 = scmp.eq.s32.totalorder %s16, 0
    %p51 = por %p49, %p50
    %p52 = scmp.ne.s32.totalorder %s38, %s39
    %p53 = scmp.eq.s32.totalorder %s17, 1
    %p54 = por %p52, %p53
    %p56 = scmp.ne.s32.totalorder %s39, %s55
    %p57 = scmp.eq.s32.totalorder %s17, 0
    %p58 = por %p56, %p57
    %s60 = sadd.s32 %s59, 1
    %p63 = scmp.eq.s32.totalorder %s11, 1
    %p64 = scmp.ne.s32.totalorder %s59, %s61
    %p65 = scmp.eq.s32.totalorder %s11, 0
    %p66 = por %p64, %p65
    %p67 = scmp.ne.s32.totalorder %s59, %s61
    %p68 = scmp.eq.s32.totalorder %s16, 1
    %p69 = por %p67, %p68
    %p70 = scmp.ne.s32.totalorder %s61, %s62
    %p71 = scmp.eq.s32.totalorder %s16, 0
    %p72 = por %p70, %p71
    %p73 = scmp.ne.s32.totalorder %s61, %s62
    %p74 = scmp.eq.s32.totalorder %s17, 1
    %p75 = por %p73, %p74
    %p77 = scmp.ne.s32.totalorder %s62, %s76
    %p78 = scmp.eq.s32.totalorder %s17, 0
    %p79 = por %p77, %p78
    %s81 = sadd.s32 %s80, 1
    %p84 = scmp.eq.s32.totalorder %s11, 1
    %p85 = scmp.ne.s32.totalorder %s80, %s82
    %p86 = scmp.eq.s32.totalorder %s11, 0
    %p87 = por %p85, %p86
    %p88 = scmp.ne.s32.totalorder %s80, %s82
    %p89 = scmp.eq.s32.totalorder %s16, 1
    %p90 = por %p88, %p89
    %p91 = scmp.ne.s32.totalorder %s82, %s83
    %p92 = scmp.eq.s32.totalorder %s16, 0
    %p93 = por %p91, %p92
    %p94 = scmp.ne.s32.totalorder %s82, %s83
    %p95 = scmp.eq.s32.totalorder %s17, 1
    %p96 = por %p94, %p95
    %p98 = scmp.ne.s32.totalorder %s83, %s97
    %p99 = scmp.eq.s32.totalorder %s17, 0
    %p100 = por %p98, %p99
    %s101 = ssub.s32 %s18, %s30
    %s102 = ssub.s32 %s19, %s26
    %s103 = sor.u32 %s101, %s102
    %p104 = scmp.eq.s32.totalorder %s103, 0
    %s106 = sadd.s32 %s105, 1
    %s107 = scalar_select %p104, %s105, %s106
    %p110 = pneg %p104
    %p111 = scmp.eq.s32.totalorder %s11, 1
    %p112 = por %p110, %p111
    %p113 = scmp.ne.s32.totalorder %s105, %s108
    %p114 = scmp.eq.s32.totalorder %s11, 0
    %p115 = por %p113, %p114
    %p116 = scmp.ne.s32.totalorder %s105, %s108
    %p117 = scmp.eq.s32.totalorder %s16, 1
    %p118 = por %p116, %p117
    %p119 = scmp.ne.s32.totalorder %s108, %s109
    %p120 = scmp.eq.s32.totalorder %s16, 0
    %p121 = por %p119, %p120
    %p122 = scmp.ne.s32.totalorder %s108, %s109
    %p123 = scmp.eq.s32.totalorder %s17, 1
    %p124 = por %p122, %p123
    %p126 = scmp.ne.s32.totalorder %s109, %s125
    %p127 = scmp.eq.s32.totalorder %s17, 0
    %p128 = por %p126, %p127
    %s129 = ssub.s32 %s18, %s30
    %s130 = ssub.s32 %s19, %s26
    %s131 = sor.u32 %s129, %s130
    %p132 = scmp.eq.s32.totalorder %s131, 0
    %s134 = sadd.s32 %s133, 1
    %s135 = scalar_select %p132, %s133, %s134
    %p138 = pneg %p132
    %p139 = scmp.eq.s32.totalorder %s11, 1
    %p140 = por %p138, %p139
    %p141 = scmp.ne.s32.totalorder %s133, %s136
    %p142 = scmp.eq.s32.totalorder %s11, 0
    %p143 = por %p141, %p142
    %p144 = scmp.ne.s32.totalorder %s133, %s136
    %p145 = scmp.eq.s32.totalorder %s16, 1
    %p146 = por %p144, %p145
    %p147 = scmp.ne.s32.totalorder %s136, %s137
    %p148 = scmp.eq.s32.totalorder %s16, 0
    %p149 = por %p147, %p148
    %p150 = scmp.ne.s32.totalorder %s136, %s137
    %p151 = scmp.eq.s32.totalorder %s17, 1
    %p152 = por %p150, %p151
    %p154 = scmp.ne.s32.totalorder %s137, %s153
    %p155 = scmp.eq.s32.totalorder %s17, 0
    %p156 = por %p154, %p155
    %p157 = scmp.le.s32.totalorder 1, %s11
    %p158 = scmp.lt.s32.totalorder %s11, 3
    %p159 = pnand %p157, %p158
    %p160 = pneg %p159
    // Predicated region
    $region9: #{atrous_bottleneck_nhwc.6} parent=5 // pred_check
      _
    $region10: #{atrous_bottleneck_nhwc.6} parent=5 // pred_check_branch
      %162 = sbr.rel (%p159) target = $region12
    $region11: #{atrous_bottleneck_nhwc.6} parent=5 // pred_region
      %s163 = ssub.s32 %s11, 1
      // Predicated region
      $region13: #{atrous_bottleneck_nhwc.6} parent=11 // pred_check
        %p164 = pneg %p72
      $region14: #{atrous_bottleneck_nhwc.6} parent=11 // pred_check_branch
        %166 = sbr.rel (%p164) target = $region16
      $region15: #{atrous_bottleneck_nhwc.6} parent=11 // pred_region
        _
      $region16: #{atrous_bottleneck_nhwc.6} parent=11 // pred_fallthru
        _
      // Predicated region
      $region17: #{atrous_bottleneck_nhwc.6} parent=11 // pred_check
        %p167 = pneg %p93
      $region18: #{atrous_bottleneck_nhwc.6} parent=11 // pred_check_branch
        %169 = sbr.rel (%p167) target = $region20
      $region19: #{atrous_bottleneck_nhwc.6} parent=11 // pred_region
        _
      $region20: #{atrous_bottleneck_nhwc.6} parent=11 // pred_fallthru
        _
    $region12: #{atrous_bottleneck_nhwc.6} parent=5 // pred_fallthru
      _
    %p170 = scmp.lt.s32.totalorder %s11, 2
    // Predicated region
    $region21: #{atrous_bottleneck_nhwc.6} parent=5 // pred_check
      %p171 = pneg %p170
    $region22: #{atrous_bottleneck_nhwc.6} parent=5 // pred_check_branch
      %173 = sbr.rel (%p171) target = $region24
    $region23: #{atrous_bottleneck_nhwc.6} parent=5 // pred_region
      // Predicated region
      $region25: #{atrous_bottleneck_nhwc.6} parent=23 // pred_check
        %p174 = pneg %p45
      $region26: #{atrous_bottleneck_nhwc.6} parent=23 // pred_check_branch
        %176 = sbr.rel (%p174) target = $region28
      $region27: #{atrous_bottleneck_nhwc.6} parent=23 // pred_region
        %s177 = smul.u32 16, %s19
        %p178 = scmp.lt.s32.totalorder %s18, 1
        %s179 = scalar_select %p178, %s18, 1
        %p180 = scmp.lt.s32.totalorder %s177, 15
        %s181 = scalar_select %p180, %s177, 15
        %s182 = smul.addr %s181, 2
        %s183 = smul.addr %s179, 32
        %s184 = sadd.s32 %s182, %s183
        %s185 = smul.addr %s184, 8
        %s186 = scalar_lea.vmem %s0, %s185
        %s187 = smul.u32 16, %s19
      $region28: #{atrous_bottleneck_nhwc.6} parent=23 // pred_fallthru
        _
    $region24: #{atrous_bottleneck_nhwc.6} parent=5 // pred_fallthru
      _
    %p188 = scmp.le.s32.totalorder 1, %s11
    %p189 = scmp.lt.s32.totalorder %s11, 3
    %p190 = pnand %p188, %p189
    %p191 = pneg %p190
    // Predicated region
    $region29: #{atrous_bottleneck_nhwc.6} parent=5 // pred_check
      _
    $region30: #{atrous_bottleneck_nhwc.6} parent=5 // pred_check_branch
      %193 = sbr.rel (%p190) target = $region32
    $region31: #{atrous_bottleneck_nhwc.6} parent=5 // pred_region
      %s194 = ssub.s32 %s11, 1
      %s195 = smul.u32 16, %s21
      %p196 = scmp.lt.s32.totalorder %s20, 1
      %s197 = scalar_select %p196, %s20, 1
      %p198 = scmp.lt.s32.totalorder %s195, 15
      %s199 = scalar_select %p198, %s195, 15
      %s200 = smul.addr %s199, 2
      %s201 = smul.addr %s197, 32
      %s202 = sadd.s32 %s200, %s201
      %s203 = smul.addr %s202, 8
      %s204 = scalar_lea.vmem %s0, %s203
      %p205 = pneg %p51
      %p206 = pneg %p48
      %p207 = pneg %p72
      %p208 = pneg %p69
      %p209 = pneg %p93
      %p210 = pneg %p90
      %p211 = pneg %p121
      %p212 = pneg %p118
      %s213 = smul.u32 16, %s21
      %p214 = scmp.lt.s32.totalorder %s20, 1
      %s215 = scalar_select %p214, %s20, 1
      %p216 = scmp.lt.s32.totalorder %s213, 15
      %s217 = scalar_select %p216, %s213, 15
      %s218 = smul.addr %s217, 2
      %s219 = smul.addr %s215, 32
      %s220 = sadd.s32 %s218, %s219
      %s221 = smul.addr %s220, 8
      %s222 = scalar_lea.vmem %s3, %s221
      %p223 = pneg %p149
      %p224 = pneg %p146
      %p225 = scmp.lt.s32.totalorder %s20, 1
      %s226 = scalar_select %p225, %s20, 1
      %p227 = scmp.lt.s32.totalorder %s21, 0
      %s228 = scalar_select %p227, %s21, 0
      %s229 = sadd.s32 %s228, %s226
      %s230 = smul.addr %s229, 2
      %s231 = scalar_lea.vmem %s4, %s230
      %s232 = smul.u32 16, %s21
      %p233 = scmp.lt.s32.totalorder %s20, 1
      %s234 = scalar_select %p233, %s20, 1
      %p235 = scmp.lt.s32.totalorder %s232, 15
      %s236 = scalar_select %p235, %s232, 15
      %s237 = smul.addr %s236, 2
      %s238 = smul.addr %s234, 32
      %s239 = sadd.s32 %s237, %s238
      %s240 = smul.addr %s239, 8
      %s241 = scalar_lea.vmem %s0, %s240
      %s242 = smul.u32 16, %s21
      %s243 = smul.u32 16, %s21
      %p244 = scmp.lt.s32.totalorder %s20, 1
      %s245 = scalar_select %p244, %s20, 1
      %p246 = scmp.lt.s32.totalorder %s243, 15
      %s247 = scalar_select %p246, %s243, 15
      %s248 = smul.addr %s247, 2
      %s249 = smul.addr %s245, 32
      %s250 = sadd.s32 %s248, %s249
      %s251 = smul.addr %s250, 8
      %s252 = scalar_lea.vmem %s3, %s251
      %s253 = smul.u32 16, %s21
      %p254 = scmp.lt.s32.totalorder %s20, 1
      %s255 = scalar_select %p254, %s20, 1
      %p256 = scmp.lt.s32.totalorder %s21, 0
      %s257 = scalar_select %p256, %s21, 0
      %s258 = sadd.s32 %s257, %s255
      %s259 = smul.addr %s258, 2
      %s260 = scalar_lea.vmem %s4, %s259
      %v261 = vld [vmem:[%s1] sm:$0x3]
      %v262 = vld [vmem:[%s241] sm:$0xff]
      %v263 = vld [vmem:[%s241 + $0x8] sm:$0xff]
      %v264 = vld [vmem:[%s241 + $0x10] sm:$0xff]
      %v265 = vld [vmem:[%s241 + $0x18] sm:$0xff]
      %v266 = vld [vmem:[%s241 + $0x20] sm:$0xff]
      %v267 = vld [vmem:[%s241 + $0x28] sm:$0xff]
      %v268 = vld [vmem:[%s241 + $0x30] sm:$0xff]
      %v269 = vld [vmem:[%s241 + $0x38] sm:$0xff]
      %v270 = vld [vmem:[%s241 + $0x40] sm:$0xff]
      %v271 = vld [vmem:[%s241 + $0x48] sm:$0xff]
      %v272 = vld [vmem:[%s241 + $0x50] sm:$0xff]
      %v273 = vld [vmem:[%s241 + $0x58] sm:$0xff]
      %v274 = vld [vmem:[%s241 + $0x60] sm:$0xff]
      %v275 = vld [vmem:[%s241 + $0x68] sm:$0xff]
      %v276 = vld [vmem:[%s241 + $0x70] sm:$0xff]
      %v277 = vld [vmem:[%s241 + $0x78] sm:$0xff]
      %v278 = vld [vmem:[%s241 + $0x80] sm:$0xff]
      %v279 = vld [vmem:[%s241 + $0x88] sm:$0xff]
      %v280 = vld [vmem:[%s241 + $0x90] sm:$0xff]
      %v281 = vld [vmem:[%s241 + $0x98] sm:$0xff]
      %v282 = vld [vmem:[%s241 + $0xa0] sm:$0xff]
      %v283 = vld [vmem:[%s241 + $0xa8] sm:$0xff]
      %v284 = vld [vmem:[%s241 + $0xb0] sm:$0xff]
      %v285 = vld [vmem:[%s241 + $0xb8] sm:$0xff]
      %v286 = vld [vmem:[%s241 + $0xc0] sm:$0xff]
      %v287 = vld [vmem:[%s241 + $0xc8] sm:$0xff]
      %v288 = vld [vmem:[%s241 + $0xd0] sm:$0xff]
      %v289 = vld [vmem:[%s241 + $0xd8] sm:$0xff]
      %v290 = vld [vmem:[%s241 + $0xe0] sm:$0xff]
      %v291 = vld [vmem:[%s241 + $0xe8] sm:$0xff]
      %v292 = vld [vmem:[%s241 + $0xf0] sm:$0xff]
      %v293 = vld [vmem:[%s241 + $0xf8] sm:$0xff]
      %v294 = vlaneseq
      %v295 = vshrl.u32 %v294, 7
      %v296 = vsub.s32 0, %v295
      %v297 = vrot.slane %v261, %v296
      %v298 = vmul.f32 %v262, %v297
      %v299 = vmul.f32 %v263, %v297
      %v300 = vmul.f32 %v264, %v297
      %v301 = vmul.f32 %v265, %v297
      %v302 = vmul.f32 %v266, %v297
      %v303 = vmul.f32 %v267, %v297
      %v304 = vmul.f32 %v268, %v297
      %v305 = vmul.f32 %v269, %v297
      %v306 = vmul.f32 %v270, %v297
      %v307 = vmul.f32 %v271, %v297
      %v308 = vmul.f32 %v272, %v297
      %v309 = vmul.f32 %v273, %v297
      %v310 = vmul.f32 %v274, %v297
      %v311 = vmul.f32 %v275, %v297
      %v312 = vmul.f32 %v276, %v297
      %v313 = vmul.f32 %v277, %v297
      %v314 = vmul.f32 %v278, %v297
      %v315 = vmul.f32 %v279, %v297
      %v316 = vmul.f32 %v280, %v297
      %v317 = vmul.f32 %v281, %v297
      %v318 = vmul.f32 %v282, %v297
      %v319 = vmul.f32 %v283, %v297
      %v320 = vmul.f32 %v284, %v297
      %v321 = vmul.f32 %v285, %v297
      %v322 = vmul.f32 %v286, %v297
      %v323 = vmul.f32 %v287, %v297
      %v324 = vmul.f32 %v288, %v297
      %v325 = vmul.f32 %v289, %v297
      %v326 = vmul.f32 %v290, %v297
      %v327 = vmul.f32 %v291, %v297
      %v328 = vmul.f32 %v292, %v297
      %v329 = vmul.f32 %v293, %v297
      %v330 = vlaneseq
      %v331 = vshrl.u32 %v330, 7
      %v332 = vsub.s32 1, %v331
      %v333 = vrot.slane %v261, %v332
      %v334 = vadd.f32 %v298, %v333
      %v335 = vadd.f32 %v299, %v333
      %v336 = vadd.f32 %v300, %v333
      %v337 = vadd.f32 %v301, %v333
      %v338 = vadd.f32 %v302, %v333
      %v339 = vadd.f32 %v303, %v333
      %v340 = vadd.f32 %v304, %v333
      %v341 = vadd.f32 %v305, %v333
      %v342 = vadd.f32 %v306, %v333
      %v343 = vadd.f32 %v307, %v333
      %v344 = vadd.f32 %v308, %v333
      %v345 = vadd.f32 %v309, %v333
      %v346 = vadd.f32 %v310, %v333
      %v347 = vadd.f32 %v311, %v333
      %v348 = vadd.f32 %v312, %v333
      %v349 = vadd.f32 %v313, %v333
      %v350 = vadd.f32 %v314, %v333
      %v351 = vadd.f32 %v315, %v333
      %v352 = vadd.f32 %v316, %v333
      %v353 = vadd.f32 %v317, %v333
      %v354 = vadd.f32 %v318, %v333
      %v355 = vadd.f32 %v319, %v333
      %v356 = vadd.f32 %v320, %v333
      %v357 = vadd.f32 %v321, %v333
      %v358 = vadd.f32 %v322, %v333
      %v359 = vadd.f32 %v323, %v333
      %v360 = vadd.f32 %v324, %v333
      %v361 = vadd.f32 %v325, %v333
      %v362 = vadd.f32 %v326, %v333
      %v363 = vadd.f32 %v327, %v333
      %v364 = vadd.f32 %v328, %v333
      %v365 = vadd.f32 %v329, %v333
      %v366 = vmax.f32 %v334, 0.0
      %v367 = vmax.f32 %v335, 0.0
      %v368 = vmax.f32 %v336, 0.0
      %v369 = vmax.f32 %v337, 0.0
      %v370 = vmax.f32 %v338, 0.0
      %v371 = vmax.f32 %v339, 0.0
      %v372 = vmax.f32 %v340, 0.0
      %v373 = vmax.f32 %v341, 0.0
      %v374 = vmax.f32 %v342, 0.0
      %v375 = vmax.f32 %v343, 0.0
      %v376 = vmax.f32 %v344, 0.0
      %v377 = vmax.f32 %v345, 0.0
      %v378 = vmax.f32 %v346, 0.0
      %v379 = vmax.f32 %v347, 0.0
      %v380 = vmax.f32 %v348, 0.0
      %v381 = vmax.f32 %v349, 0.0
      %v382 = vmax.f32 %v350, 0.0
      %v383 = vmax.f32 %v351, 0.0
      %v384 = vmax.f32 %v352, 0.0
      %v385 = vmax.f32 %v353, 0.0
      %v386 = vmax.f32 %v354, 0.0
      %v387 = vmax.f32 %v355, 0.0
      %v388 = vmax.f32 %v356, 0.0
      %v389 = vmax.f32 %v357, 0.0
      %v390 = vmax.f32 %v358, 0.0
      %v391 = vmax.f32 %v359, 0.0
      %v392 = vmax.f32 %v360, 0.0
      %v393 = vmax.f32 %v361, 0.0
      %v394 = vmax.f32 %v362, 0.0
      %v395 = vmax.f32 %v363, 0.0
      %v396 = vmax.f32 %v364, 0.0
      %v397 = vmax.f32 %v365, 0.0
      %v398 = vld [vmem:[%s2] sm:$0xf]
      %vm399 = vcmask 31744
      %v401 = vsel %vm399, %v366, 0
      %v404 = vsel %vm399, %v367, 0
      %v407 = vsel %vm399, %v368, 0
      %v410 = vsel %vm399, %v369, 0
      %v413 = vsel %vm399, %v370, 0
      %v416 = vsel %vm399, %v371, 0
      %v419 = vsel %vm399, %v372, 0
      %v422 = vsel %vm399, %v373, 0
      %v425 = vsel %vm399, %v374, 0
      %v428 = vsel %vm399, %v375, 0
      %v431 = vsel %vm399, %v376, 0
      %v434 = vsel %vm399, %v377, 0
      %v437 = vsel %vm399, %v378, 0
      %v440 = vsel %vm399, %v379, 0
      %v443 = vsel %vm399, %v380, 0
      %v446 = vsel %vm399, %v381, 0
      %v449 = vsel %vm399, %v382, 0
      %v452 = vsel %vm399, %v383, 0
      %v455 = vsel %vm399, %v384, 0
      %v458 = vsel %vm399, %v385, 0
      %v461 = vsel %vm399, %v386, 0
      %v464 = vsel %vm399, %v387, 0
      %v467 = vsel %vm399, %v388, 0
      %v470 = vsel %vm399, %v389, 0
      %v473 = vsel %vm399, %v390, 0
      %v476 = vsel %vm399, %v391, 0
      %v479 = vsel %vm399, %v392, 0
      %v482 = vsel %vm399, %v393, 0
      %v485 = vsel %vm399, %v394, 0
      %v488 = vsel %vm399, %v395, 0
      %v491 = vsel %vm399, %v396, 0
      %v494 = vsel %vm399, %v397, 0
      %vm496 = vcmask 1043456
      %v498 = vsel %vm496, %v398, 0
      %500 = vmatprep.subr.mxu0 0.0
      %501 = vmatpush1.msra.mxu0 %v498
      %502 = vmatprep.subr.mxu0 0.0
      %503 = vmatpush1.msra.mxu0 0.0
      %504 = vmatprep.subr.mxu0 0.0
      %505 = vmatpush1.msra.mxu0 0.0
      %506 = vmatprep.subr.mxu0 0.0
      %507 = vmatpush1.msra.mxu0 0.0
      %508 = vmatprep.subr.mxu0 0.0
      %509 = vmatpush1.msra.mxu0 0.0
      %510 = vmatprep.subr.mxu0 0.0
      %511 = vmatpush1.msra.mxu0 0.0
      %512 = vmatprep.subr.mxu0 0.0
      %513 = vmatpush1.msra.mxu0 0.0
      %514 = vmatprep.subr.mxu0 0.0
      %515 = vmatpush1.msra.mxu0 0.0
      %516 = vmatprep.subr.mxu0 0.0
      %517 = vmatpush1.msra.mxu0 0.0
      %518 = vmatprep.subr.mxu0 0.0
      %519 = vmatpush1.msra.mxu0 0.0
      %520 = vmatprep.subr.mxu0 0.0
      %521 = vmatpush1.msra.mxu0 0.0
      %522 = vmatprep.subr.mxu0 0.0
      %523 = vmatpush1.msra.mxu0 0.0
      %524 = vmatprep.subr.mxu0 0.0
      %525 = vmatpush1.msra.mxu0 0.0
      %526 = vmatprep.subr.mxu0 0.0
      %527 = vmatpush1.msra.mxu0 0.0
      %528 = vmatprep.subr.mxu0 0.0
      %529 = vmatpush1.msra.mxu0 0.0
      %530 = vmatprep.subr.mxu0 0.0
      %531 = vmatpush1.msra.mxu0 0.0
      %532 = vmatprep.subr.mxu0 0.0
      %533 = vmatpush1.msra.mxu0 0.0
      %534 = vmatprep.subr.mxu0 0.0
      %535 = vmatpush1.msra.mxu0 0.0
      %536 = vmatprep.subr.mxu0 0.0
      %537 = vmatpush1.msra.mxu0 0.0
      %538 = vmatprep.subr.mxu0 0.0
      %539 = vmatpush1.msra.mxu0 0.0
      %540 = vmatprep.subr.mxu0 0.0
      %541 = vmatpush1.msra.mxu0 0.0
      %542 = vmatprep.subr.mxu0 0.0
      %543 = vmatpush1.msra.mxu0 0.0
      %544 = vmatprep.subr.mxu0 0.0
      %545 = vmatpush1.msra.mxu0 0.0
      %546 = vmatprep.subr.mxu0 0.0
      %547 = vmatpush1.msra.mxu0 0.0
      %548 = vmatprep.subr.mxu0 0.0
      %549 = vmatpush1.msra.mxu0 0.0
      %550 = vmatprep.subr.mxu0 0.0
      %551 = vmatpush1.msra.mxu0 0.0
      %552 = vmatprep.subr.mxu0 0.0
      %553 = vmatpush1.msra.mxu0 0.0
      %554 = vmatprep.subr.mxu0 0.0
      %555 = vmatpush1.msra.mxu0 0.0
      %556 = vmatprep.subr.mxu0 0.0
      %557 = vmatpush1.msra.mxu0 0.0
      %558 = vmatprep.subr.mxu0 0.0
      %559 = vmatpush1.msra.mxu0 0.0
      %560 = vmatprep.subr.mxu0 0.0
      %561 = vmatpush1.msra.mxu0 0.0
      %562 = vmatprep.subr.mxu0 0.0
      %563 = vmatpush1.msra.mxu0 0.0
      %564 = vmatprep.mubr.f32.mxu0 0.0
      %565 = vmatmul.mubr.f32.gmra.mrb[0].mxu0 %v401
      %v566 = vpop.f32.mrb[0].mxu0
      %v567 = vadd.f32 0.0, %v566
      %v568 = vpop.f32.mrb[0].mxu0
      %569 = vmatprep.mubr.f32.mxu0 0.0
      %570 = vmatmul.mubr.f32.gmra.mrb[0].mxu0 %v404
      %v571 = vpop.f32.mrb[0].mxu0
      %v572 = vadd.f32 0.0, %v571
      %v573 = vpop.f32.mrb[0].mxu0
      %574 = vmatprep.mubr.f32.mxu0 0.0
      %575 = vmatmul.mubr.f32.gmra.mrb[0].mxu0 %v407
      %v576 = vpop.f32.mrb[0].mxu0
      %v577 = vadd.f32 0.0, %v576
      %v578 = vpop.f32.mrb[0].mxu0
      %579 = vmatprep.mubr.f32.mxu0 0.0
      %580 = vmatmul.mubr.f32.gmra.mrb[0].mxu0 %v410
      %v581 = vpop.f32.mrb[0].mxu0
      %v582 = vadd.f32 0.0, %v581
      %v583 = vpop.f32.mrb[0].mxu0
      %584 = vmatprep.mubr.f32.mxu0 0.0
      %585 = vmatmul.mubr.f32.gmra.mrb[0].mxu0 %v413
      %v586 = vpop.f32.mrb[0].mxu0
      %v587 = vadd.f32 0.0, %v586
      %v588 = vpop.f32.mrb[0].mxu0
      %589 = vmatprep.mubr.f32.mxu0 0.0
      %590 = vmatmul.mubr.f32.gmra.mrb[0].mxu0 %v416
      %v591 = vpop.f32.mrb[0].mxu0
      %v592 = vadd.f32 0.0, %v591
      %v593 = vpop.f32.mrb[0].mxu0
      %594 = vmatprep.mubr.f32.mxu0 0.0
      %595 = vmatmul.mubr.f32.gmra.mrb[0].mxu0 %v419
      %v596 = vpop.f32.mrb[0].mxu0
      %v597 = vadd.f32 0.0, %v596
      %v598 = vpop.f32.mrb[0].mxu0
      %599 = vmatprep.mubr.f32.mxu0 0.0
      %600 = vmatmul.mubr.f32.gmra.mrb[0].mxu0 %v422
      %v601 = vpop.f32.mrb[0].mxu0
      %v602 = vadd.f32 0.0, %v601
      %v603 = vpop.f32.mrb[0].mxu0
      %604 = vmatprep.mubr.f32.mxu0 0.0
      %605 = vmatmul.mubr.f32.gmra.mrb[0].mxu0 %v425
      %v606 = vpop.f32.mrb[0].mxu0
      %v607 = vadd.f32 0.0, %v606
      %v608 = vpop.f32.mrb[0].mxu0
      %609 = vmatprep.mubr.f32.mxu0 0.0
      %610 = vmatmul.mubr.f32.gmra.mrb[0].mxu0 %v428
      %v611 = vpop.f32.mrb[0].mxu0
      %v612 = vadd.f32 0.0, %v611
      %v613 = vpop.f32.mrb[0].mxu0
      %614 = vmatprep.mubr.f32.mxu0 0.0
      %615 = vmatmul.mubr.f32.gmra.mrb[0].mxu0 %v431
      %v616 = vpop.f32.mrb[0].mxu0
      %v617 = vadd.f32 0.0, %v616
      %v618 = vpop.f32.mrb[0].mxu0
      %619 = vmatprep.mubr.f32.mxu0 0.0
      %620 = vmatmul.mubr.f32.gmra.mrb[0].mxu0 %v434
      %v621 = vpop.f32.mrb[0].mxu0
      %v622 = vadd.f32 0.0, %v621
      %v623 = vpop.f32.mrb[0].mxu0
      %624 = vmatprep.mubr.f32.mxu0 0.0
      %625 = vmatmul.mubr.f32.gmra.mrb[0].mxu0 %v437
      %v626 = vpop.f32.mrb[0].mxu0
      %v627 = vadd.f32 0.0, %v626
      %v628 = vpop.f32.mrb[0].mxu0
      %629 = vmatprep.mubr.f32.mxu0 0.0
      %630 = vmatmul.mubr.f32.gmra.mrb[0].mxu0 %v440
      %v631 = vpop.f32.mrb[0].mxu0
      %v632 = vadd.f32 0.0, %v631
      %v633 = vpop.f32.mrb[0].mxu0
      %634 = vmatprep.mubr.f32.mxu0 0.0
      %635 = vmatmul.mubr.f32.gmra.mrb[0].mxu0 %v443
      %v636 = vpop.f32.mrb[0].mxu0
      %v637 = vadd.f32 0.0, %v636
      %v638 = vpop.f32.mrb[0].mxu0
      %639 = vmatprep.mubr.f32.mxu0 0.0
      %640 = vmatmul.mubr.f32.gmra.mrb[0].mxu0 %v446
      %v641 = vpop.f32.mrb[0].mxu0
      %v642 = vadd.f32 0.0, %v641
      %v643 = vpop.f32.mrb[0].mxu0
      %644 = vmatprep.mubr.f32.mxu0 0.0
      %645 = vmatmul.mubr.f32.gmra.mrb[0].mxu0 %v449
      %v646 = vpop.f32.mrb[0].mxu0
      %v647 = vadd.f32 0.0, %v646
      %v648 = vpop.f32.mrb[0].mxu0
      %649 = vmatprep.mubr.f32.mxu0 0.0
      %650 = vmatmul.mubr.f32.gmra.mrb[0].mxu0 %v452
      %v651 = vpop.f32.mrb[0].mxu0
      %v652 = vadd.f32 0.0, %v651
      %v653 = vpop.f32.mrb[0].mxu0
      %654 = vmatprep.mubr.f32.mxu0 0.0
      %655 = vmatmul.mubr.f32.gmra.mrb[0].mxu0 %v455
      %v656 = vpop.f32.mrb[0].mxu0
      %v657 = vadd.f32 0.0, %v656
      %v658 = vpop.f32.mrb[0].mxu0
      %659 = vmatprep.mubr.f32.mxu0 0.0
      %660 = vmatmul.mubr.f32.gmra.mrb[0].mxu0 %v458
      %v661 = vpop.f32.mrb[0].mxu0
      %v662 = vadd.f32 0.0, %v661
      %v663 = vpop.f32.mrb[0].mxu0
      %664 = vmatprep.mubr.f32.mxu0 0.0
      %665 = vmatmul.mubr.f32.gmra.mrb[0].mxu0 %v461
      %v666 = vpop.f32.mrb[0].mxu0
      %v667 = vadd.f32 0.0, %v666
      %v668 = vpop.f32.mrb[0].mxu0
      %669 = vmatprep.mubr.f32.mxu0 0.0
      %670 = vmatmul.mubr.f32.gmra.mrb[0].mxu0 %v464
      %v671 = vpop.f32.mrb[0].mxu0
      %v672 = vadd.f32 0.0, %v671
      %v673 = vpop.f32.mrb[0].mxu0
      %674 = vmatprep.mubr.f32.mxu0 0.0
      %675 = vmatmul.mubr.f32.gmra.mrb[0].mxu0 %v467
      %v676 = vpop.f32.mrb[0].mxu0
      %v677 = vadd.f32 0.0, %v676
      %v678 = vpop.f32.mrb[0].mxu0
      %679 = vmatprep.mubr.f32.mxu0 0.0
      %680 = vmatmul.mubr.f32.gmra.mrb[0].mxu0 %v470
      %v681 = vpop.f32.mrb[0].mxu0
      %v682 = vadd.f32 0.0, %v681
      %v683 = vpop.f32.mrb[0].mxu0
      %684 = vmatprep.mubr.f32.mxu0 0.0
      %685 = vmatmul.mubr.f32.gmra.mrb[0].mxu0 %v473
      %v686 = vpop.f32.mrb[0].mxu0
      %v687 = vadd.f32 0.0, %v686
      %v688 = vpop.f32.mrb[0].mxu0
      %689 = vmatprep.mubr.f32.mxu0 0.0
      %690 = vmatmul.mubr.f32.gmra.mrb[0].mxu0 %v476
      %v691 = vpop.f32.mrb[0].mxu0
      %v692 = vadd.f32 0.0, %v691
      %v693 = vpop.f32.mrb[0].mxu0
      %694 = vmatprep.mubr.f32.mxu0 0.0
      %695 = vmatmul.mubr.f32.gmra.mrb[0].mxu0 %v479
      %v696 = vpop.f32.mrb[0].mxu0
      %v697 = vadd.f32 0.0, %v696
      %v698 = vpop.f32.mrb[0].mxu0
      %699 = vmatprep.mubr.f32.mxu0 0.0
      %700 = vmatmul.mubr.f32.gmra.mrb[0].mxu0 %v482
      %v701 = vpop.f32.mrb[0].mxu0
      %v702 = vadd.f32 0.0, %v701
      %v703 = vpop.f32.mrb[0].mxu0
      %704 = vmatprep.mubr.f32.mxu0 0.0
      %705 = vmatmul.mubr.f32.gmra.mrb[0].mxu0 %v485
      %v706 = vpop.f32.mrb[0].mxu0
      %v707 = vadd.f32 0.0, %v706
      %v708 = vpop.f32.mrb[0].mxu0
      %709 = vmatprep.mubr.f32.mxu0 0.0
      %710 = vmatmul.mubr.f32.gmra.mrb[0].mxu0 %v488
      %v711 = vpop.f32.mrb[0].mxu0
      %v712 = vadd.f32 0.0, %v711
      %v713 = vpop.f32.mrb[0].mxu0
      %714 = vmatprep.mubr.f32.mxu0 0.0
      %715 = vmatmul.mubr.f32.gmra.mrb[0].mxu0 %v491
      %v716 = vpop.f32.mrb[0].mxu0
      %v717 = vadd.f32 0.0, %v716
      %v718 = vpop.f32.mrb[0].mxu0
      %719 = vmatprep.mubr.f32.mxu0 0.0
      %720 = vmatmul.mubr.f32.gmra.mrb[0].mxu0 %v494
      %v721 = vpop.f32.mrb[0].mxu0
      %v722 = vadd.f32 0.0, %v721
      %v723 = vpop.f32.mrb[0].mxu0
      %724 = vdwg.mxu0
      %vm725 = vcmask 130048
      %726 = vst.msk [vmem:[%s252] sm:$0xff] %vm725, %v567
      %727 = vst.msk [vmem:[%s252 + $0x8] sm:$0xff] %vm725, %v572
      %728 = vst.msk [vmem:[%s252 + $0x10] sm:$0xff] %vm725, %v577
      %729 = vst.msk [vmem:[%s252 + $0x18] sm:$0xff] %vm725, %v582
      %730 = vst.msk [vmem:[%s252 + $0x20] sm:$0xff] %vm725, %v587
      %731 = vst.msk [vmem:[%s252 + $0x28] sm:$0xff] %vm725, %v592
      %732 = vst.msk [vmem:[%s252 + $0x30] sm:$0xff] %vm725, %v597
      %733 = vst.msk [vmem:[%s252 + $0x38] sm:$0xff] %vm725, %v602
      %734 = vst.msk [vmem:[%s252 + $0x40] sm:$0xff] %vm725, %v607
      %735 = vst.msk [vmem:[%s252 + $0x48] sm:$0xff] %vm725, %v612
      %736 = vst.msk [vmem:[%s252 + $0x50] sm:$0xff] %vm725, %v617
      %737 = vst.msk [vmem:[%s252 + $0x58] sm:$0xff] %vm725, %v622
      %738 = vst.msk [vmem:[%s252 + $0x60] sm:$0xff] %vm725, %v627
      %739 = vst.msk [vmem:[%s252 + $0x68] sm:$0xff] %vm725, %v632
      %740 = vst.msk [vmem:[%s252 + $0x70] sm:$0xff] %vm725, %v637
      %741 = vst.msk [vmem:[%s252 + $0x78] sm:$0xff] %vm725, %v642
      %742 = vst.msk [vmem:[%s252 + $0x80] sm:$0xff] %vm725, %v647
      %743 = vst.msk [vmem:[%s252 + $0x88] sm:$0xff] %vm725, %v652
      %744 = vst.msk [vmem:[%s252 + $0x90] sm:$0xff] %vm725, %v657
      %745 = vst.msk [vmem:[%s252 + $0x98] sm:$0xff] %vm725, %v662
      %746 = vst.msk [vmem:[%s252 + $0xa0] sm:$0xff] %vm725, %v667
      %747 = vst.msk [vmem:[%s252 + $0xa8] sm:$0xff] %vm725, %v672
      %748 = vst.msk [vmem:[%s252 + $0xb0] sm:$0xff] %vm725, %v677
      %749 = vst.msk [vmem:[%s252 + $0xb8] sm:$0xff] %vm725, %v682
      %750 = vst.msk [vmem:[%s252 + $0xc0] sm:$0xff] %vm725, %v687
      %751 = vst.msk [vmem:[%s252 + $0xc8] sm:$0xff] %vm725, %v692
      %752 = vst.msk [vmem:[%s252 + $0xd0] sm:$0xff] %vm725, %v697
      %753 = vst.msk [vmem:[%s252 + $0xd8] sm:$0xff] %vm725, %v702
      %754 = vst.msk [vmem:[%s252 + $0xe0] sm:$0xff] %vm725, %v707
      %755 = vst.msk [vmem:[%s252 + $0xe8] sm:$0xff] %vm725, %v712
      %756 = vst.msk [vmem:[%s252 + $0xf0] sm:$0xff] %vm725, %v717
      %757 = vst.msk [vmem:[%s252 + $0xf8] sm:$0xff] %vm725, %v722
      %v758 = vsel %vm725, %v567, 0.0
      %v759 = vsel %vm725, %v572, 0.0
      %v760 = vadd.f32 %v758, %v759
      %v761 = vsel %vm725, %v577, 0.0
      %v762 = vadd.f32 %v760, %v761
      %v763 = vsel %vm725, %v582, 0.0
      %v764 = vadd.f32 %v762, %v763
      %v765 = vsel %vm725, %v587, 0.0
      %v766 = vadd.f32 %v764, %v765
      %v767 = vsel %vm725, %v592, 0.0
      %v768 = vadd.f32 %v766, %v767
      %v769 = vsel %vm725, %v597, 0.0
      %v770 = vadd.f32 %v768, %v769
      %v771 = vsel %vm725, %v602, 0.0
      %v772 = vadd.f32 %v770, %v771
      %v773 = vsel %vm725, %v607, 0.0
      %v774 = vadd.f32 %v772, %v773
      %v775 = vsel %vm725, %v612, 0.0
      %v776 = vadd.f32 %v774, %v775
      %v777 = vsel %vm725, %v617, 0.0
      %v778 = vadd.f32 %v776, %v777
      %v779 = vsel %vm725, %v622, 0.0
      %v780 = vadd.f32 %v778, %v779
      %v781 = vsel %vm725, %v627, 0.0
      %v782 = vadd.f32 %v780, %v781
      %v783 = vsel %vm725, %v632, 0.0
      %v784 = vadd.f32 %v782, %v783
      %v785 = vsel %vm725, %v637, 0.0
      %v786 = vadd.f32 %v784, %v785
      %v787 = vsel %vm725, %v642, 0.0
      %v788 = vadd.f32 %v786, %v787
      %v789 = vsel %vm725, %v647, 0.0
      %v790 = vadd.f32 %v788, %v789
      %v791 = vsel %vm725, %v652, 0.0
      %v792 = vadd.f32 %v790, %v791
      %v793 = vsel %vm725, %v657, 0.0
      %v794 = vadd.f32 %v792, %v793
      %v795 = vsel %vm725, %v662, 0.0
      %v796 = vadd.f32 %v794, %v795
      %v797 = vsel %vm725, %v667, 0.0
      %v798 = vadd.f32 %v796, %v797
      %v799 = vsel %vm725, %v672, 0.0
      %v800 = vadd.f32 %v798, %v799
      %v801 = vsel %vm725, %v677, 0.0
      %v802 = vadd.f32 %v800, %v801
      %v803 = vsel %vm725, %v682, 0.0
      %v804 = vadd.f32 %v802, %v803
      %v805 = vsel %vm725, %v687, 0.0
      %v806 = vadd.f32 %v804, %v805
      %v807 = vsel %vm725, %v692, 0.0
      %v808 = vadd.f32 %v806, %v807
      %v809 = vsel %vm725, %v697, 0.0
      %v810 = vadd.f32 %v808, %v809
      %v811 = vsel %vm725, %v702, 0.0
      %v812 = vadd.f32 %v810, %v811
      %v813 = vsel %vm725, %v707, 0.0
      %v814 = vadd.f32 %v812, %v813
      %v815 = vsel %vm725, %v712, 0.0
      %v816 = vadd.f32 %v814, %v815
      %v817 = vsel %vm725, %v717, 0.0
      %v818 = vadd.f32 %v816, %v817
      %v819 = vsel %vm725, %v722, 0.0
      %v820 = vadd.f32 %v818, %v819
      %v821 = vrot.slane %v820, 4
      %v822 = vadd.f32 %v820, %v821
      %v823 = vrot.slane %v822, 2
      %v824 = vadd.f32 %v822, %v823
      %v825 = vrot.slane %v824, 1
      %v826 = vadd.f32 %v824, %v825
      %v827 = vmul.f32 %v567, %v567
      %v828 = vmul.f32 %v572, %v572
      %v829 = vmul.f32 %v577, %v577
      %v830 = vmul.f32 %v582, %v582
      %v831 = vmul.f32 %v587, %v587
      %v832 = vmul.f32 %v592, %v592
      %v833 = vmul.f32 %v597, %v597
      %v834 = vmul.f32 %v602, %v602
      %v835 = vmul.f32 %v607, %v607
      %v836 = vmul.f32 %v612, %v612
      %v837 = vmul.f32 %v617, %v617
      %v838 = vmul.f32 %v622, %v622
      %v839 = vmul.f32 %v627, %v627
      %v840 = vmul.f32 %v632, %v632
      %v841 = vmul.f32 %v637, %v637
      %v842 = vmul.f32 %v642, %v642
      %v843 = vmul.f32 %v647, %v647
      %v844 = vmul.f32 %v652, %v652
      %v845 = vmul.f32 %v657, %v657
      %v846 = vmul.f32 %v662, %v662
      %v847 = vmul.f32 %v667, %v667
      %v848 = vmul.f32 %v672, %v672
      %v849 = vmul.f32 %v677, %v677
      %v850 = vmul.f32 %v682, %v682
      %v851 = vmul.f32 %v687, %v687
      %v852 = vmul.f32 %v692, %v692
      %v853 = vmul.f32 %v697, %v697
      %v854 = vmul.f32 %v702, %v702
      %v855 = vmul.f32 %v707, %v707
      %v856 = vmul.f32 %v712, %v712
      %v857 = vmul.f32 %v717, %v717
      %v858 = vmul.f32 %v722, %v722
      %v859 = vsel %vm725, %v827, 0.0
      %v860 = vsel %vm725, %v828, 0.0
      %v861 = vadd.f32 %v859, %v860
      %v862 = vsel %vm725, %v829, 0.0
      %v863 = vadd.f32 %v861, %v862
      %v864 = vsel %vm725, %v830, 0.0
      %v865 = vadd.f32 %v863, %v864
      %v866 = vsel %vm725, %v831, 0.0
      %v867 = vadd.f32 %v865, %v866
      %v868 = vsel %vm725, %v832, 0.0
      %v869 = vadd.f32 %v867, %v868
      %v870 = vsel %vm725, %v833, 0.0
      %v871 = vadd.f32 %v869, %v870
      %v872 = vsel %vm725, %v834, 0.0
      %v873 = vadd.f32 %v871, %v872
      %v874 = vsel %vm725, %v835, 0.0
      %v875 = vadd.f32 %v873, %v874
      %v876 = vsel %vm725, %v836, 0.0
      %v877 = vadd.f32 %v875, %v876
      %v878 = vsel %vm725, %v837, 0.0
      %v879 = vadd.f32 %v877, %v878
      %v880 = vsel %vm725, %v838, 0.0
      %v881 = vadd.f32 %v879, %v880
      %v882 = vsel %vm725, %v839, 0.0
      %v883 = vadd.f32 %v881, %v882
      %v884 = vsel %vm725, %v840, 0.0
      %v885 = vadd.f32 %v883, %v884
      %v886 = vsel %vm725, %v841, 0.0
      %v887 = vadd.f32 %v885, %v886
      %v888 = vsel %vm725, %v842, 0.0
      %v889 = vadd.f32 %v887, %v888
      %v890 = vsel %vm725, %v843, 0.0
      %v891 = vadd.f32 %v889, %v890
      %v892 = vsel %vm725, %v844, 0.0
      %v893 = vadd.f32 %v891, %v892
      %v894 = vsel %vm725, %v845, 0.0
      %v895 = vadd.f32 %v893, %v894
      %v896 = vsel %vm725, %v846, 0.0
      %v897 = vadd.f32 %v895, %v896
      %v898 = vsel %vm725, %v847, 0.0
      %v899 = vadd.f32 %v897, %v898
      %v900 = vsel %vm725, %v848, 0.0
      %v901 = vadd.f32 %v899, %v900
      %v902 = vsel %vm725, %v849, 0.0
      %v903 = vadd.f32 %v901, %v902
      %v904 = vsel %vm725, %v850, 0.0
      %v905 = vadd.f32 %v903, %v904
      %v906 = vsel %vm725, %v851, 0.0
      %v907 = vadd.f32 %v905, %v906
      %v908 = vsel %vm725, %v852, 0.0
      %v909 = vadd.f32 %v907, %v908
      %v910 = vsel %vm725, %v853, 0.0
      %v911 = vadd.f32 %v909, %v910
      %v912 = vsel %vm725, %v854, 0.0
      %v913 = vadd.f32 %v911, %v912
      %v914 = vsel %vm725, %v855, 0.0
      %v915 = vadd.f32 %v913, %v914
      %v916 = vsel %vm725, %v856, 0.0
      %v917 = vadd.f32 %v915, %v916
      %v918 = vsel %vm725, %v857, 0.0
      %v919 = vadd.f32 %v917, %v918
      %v920 = vsel %vm725, %v858, 0.0
      %v921 = vadd.f32 %v919, %v920
      %v922 = vrot.slane %v921, 4
      %v923 = vadd.f32 %v921, %v922
      %v924 = vrot.slane %v923, 2
      %v925 = vadd.f32 %v923, %v924
      %v926 = vrot.slane %v925, 1
      %v927 = vadd.f32 %v925, %v926
      %vm928 = vcmask 1040384
      %v929 = vsel %vm928, %v826, %v927
      %vm930 = vcmask 123904
      %931 = vst.msk [vmem:[%s260] sm:$0x3] %vm930, %v929
      %s932 = smul.u32 16, %s21
      %p933 = scmp.lt.s32.totalorder %s20, 1
      %s934 = scalar_select %p933, %s20, 1
      %p935 = scmp.lt.s32.totalorder %s932, 15
      %s936 = scalar_select %p935, %s932, 15
      %s937 = smul.addr %s936, 2
      %s938 = smul.addr %s934, 32
      %s939 = sadd.s32 %s937, %s938
      %s940 = smul.addr %s939, 8
      %s941 = scalar_lea.vmem %s3, %s940
      %p942 = scmp.lt.s32.totalorder %s20, 1
      %s943 = scalar_select %p942, %s20, 1
      %p944 = scmp.lt.s32.totalorder %s21, 0
      %s945 = scalar_select %p944, %s21, 0
      %s946 = sadd.s32 %s945, %s943
      %s947 = smul.addr %s946, 2
      %s948 = scalar_lea.vmem %s4, %s947
      // Predicated region
      $region33: #{atrous_bottleneck_nhwc.6} parent=31 // pred_check
        %p949 = pneg %p118
      $region34: #{atrous_bottleneck_nhwc.6} parent=31 // pred_check_branch
        %951 = sbr.rel (%p949) target = $region36
      $region35: #{atrous_bottleneck_nhwc.6} parent=31 // pred_region
        %s952 = smul.u32 16, %s21
      $region36: #{atrous_bottleneck_nhwc.6} parent=31 // pred_fallthru
        _
      // Predicated region
      $region37: #{atrous_bottleneck_nhwc.6} parent=31 // pred_check
        %p953 = pneg %p146
      $region38: #{atrous_bottleneck_nhwc.6} parent=31 // pred_check_branch
        %955 = sbr.rel (%p953) target = $region40
      $region39: #{atrous_bottleneck_nhwc.6} parent=31 // pred_region
        _
      $region40: #{atrous_bottleneck_nhwc.6} parent=31 // pred_fallthru
        _
    $region32: #{atrous_bottleneck_nhwc.6} parent=5 // pred_fallthru
      _
    %p956 = scmp.le.s32.totalorder 2, %s11
    // Predicated region
    $region41: #{atrous_bottleneck_nhwc.6} parent=5 // pred_check
      %p957 = pneg %p956
    $region42: #{atrous_bottleneck_nhwc.6} parent=5 // pred_check_branch
      %959 = sbr.rel (%p957) target = $region44
    $region43: #{atrous_bottleneck_nhwc.6} parent=5 // pred_region
      %s960 = ssub.s32 %s11, 2
      // Predicated region
      $region45: #{atrous_bottleneck_nhwc.6} parent=43 // pred_check
        %p961 = pneg %p124
      $region46: #{atrous_bottleneck_nhwc.6} parent=43 // pred_check_branch
        %963 = sbr.rel (%p961) target = $region48
      $region47: #{atrous_bottleneck_nhwc.6} parent=43 // pred_region
        %s964 = smul.u32 16, %s23
        %p965 = scmp.lt.s32.totalorder %s22, 1
        %s966 = scalar_select %p965, %s22, 1
        %p967 = scmp.lt.s32.totalorder %s964, 15
        %s968 = scalar_select %p967, %s964, 15
        %s969 = smul.addr %s968, 2
        %s970 = smul.addr %s966, 32
        %s971 = sadd.s32 %s969, %s970
        %s972 = smul.addr %s971, 8
        %s973 = scalar_lea.vmem %s3, %s972
      $region48: #{atrous_bottleneck_nhwc.6} parent=43 // pred_fallthru
        _
      // Predicated region
      $region49: #{atrous_bottleneck_nhwc.6} parent=43 // pred_check
        %p974 = pneg %p152
      $region50: #{atrous_bottleneck_nhwc.6} parent=43 // pred_check_branch
        %976 = sbr.rel (%p974) target = $region52
      $region51: #{atrous_bottleneck_nhwc.6} parent=43 // pred_region
        %p977 = scmp.lt.s32.totalorder %s22, 1
        %s978 = scalar_select %p977, %s22, 1
        %p979 = scmp.lt.s32.totalorder %s23, 0
        %s980 = scalar_select %p979, %s23, 0
        %s981 = sadd.s32 %s980, %s978
        %s982 = smul.addr %s981, 2
        %s983 = scalar_lea.vmem %s4, %s982
      $region52: #{atrous_bottleneck_nhwc.6} parent=43 // pred_fallthru
        _
    $region44: #{atrous_bottleneck_nhwc.6} parent=5 // pred_fallthru
      _
  $region6: #{atrous_bottleneck_nhwc.6} parent=0 // loop_footer
    %s15 = sadd.s32 1, %s11
  $region7: #{atrous_bottleneck_nhwc.6} parent=0 // loop_footer_branch
    %10 = sbr.rel target = $region3
  $region8: #{atrous_bottleneck_nhwc.6} parent=0 // loop_exit
    _

// kernel: atrous_bottleneck_nhwc.5
$region0: #{atrous_bottleneck_nhwc.5}
  #allocation0 [shape = 'u32[]', space=smem, size = 0x4, offset = 0x4, fixed_abs, tag = 'smem constant byte address 0x4 - core index']
  #allocation1 [shape = 'u32[144,128]{1,0:T(1,128)}', space=vmem, size = 0x12000, scoped, tag = 'internal scratch']
  #allocation2 [shape = 'f32[20,26,4]{2,1,0:T(8,128)}', space=vmem, size = 0x50000, scoped, tag = 'scratch operand']
  %s0 = inlined_call_operand.vmem [shape: f32[2,16,16,4], index: 0, kind: input, shape index: {}, may-alias: {0,1,2}]
  %s1 = inlined_call_operand.vmem [shape: f32[2,16,16,4], index: 1, kind: input, shape index: {}, may-alias: {0,1,2}]
  %s2 = inlined_call_operand.vmem [shape: f32[2,16,16,4], index: 2, kind: input, shape index: {}, may-alias: {0,1,2}]
  %s3 = inlined_call_operand.vmem [shape: f32[2,4], index: 3, kind: input, shape index: {}]
  %s4 = inlined_call_operand.vmem [shape: f32[9,4,4], index: 4, kind: input, shape index: {}]
  %s5 = inlined_call_operand.vmem [shape: f32[2,16,16,4], index: 5, kind: output, shape index: {0}]
  %s6 = inlined_call_operand.vmem [shape: f32[2,1,2,4], index: 6, kind: output, shape index: {1}]
  %7 = xla_tuple %s5, %s6
  %s8 = sld [smem:[#allocation0]]
  $region61: #{atrous_bottleneck_nhwc.5} parent=0
    _
  %s10 = ssub.s32 1, %s8
  %s11 = scalar_select 0, %s10, %s8
  loop: start=0, step=1, limit=4
  $region2: #{atrous_bottleneck_nhwc.5} parent=0 // loop_pre_header
    _
  $region3: #{atrous_bottleneck_nhwc.5} parent=0 // loop_header
    %s13 = sphi 0, %s17
    %p14 = scmp.ge.s32.totalorder %s13, 4
    %s20 = sphi 0, %s32
    %s21 = sphi 0, %s28
    %s22 = sphi 0, %s20
    %s23 = sphi 0, %s21
    %s24 = sphi 0, %s22
    %s25 = sphi 0, %s23
    %s45 = sphi 0, %s47
    %s48 = sphi 0, %s45
    %s49 = sphi 0, %s48
    %s65 = sphi 0, %s49
    %s73 = sphi 0, %s75
    %s76 = sphi 0, %s73
    %s77 = sphi 0, %s76
    %s93 = sphi 0, %s77
    %s109 = sphi 0, %s111
    %s112 = sphi 0, %s109
    %s113 = sphi 0, %s112
    %s129 = sphi 0, %s113
    %s133 = sphi 0, %s133
    %s135 = sphi 0, %s133
    %s136 = sphi 0, %s135
    %s150 = sphi 0, %s136
    %s154 = sphi 0, %s154
    %s156 = sphi 0, %s154
    %s157 = sphi 0, %s156
    %s171 = sphi 0, %s157
    %s179 = sphi 0, %s181
    %s182 = sphi 0, %s179
    %s183 = sphi 0, %s182
    %s199 = sphi 0, %s183
    %s207 = sphi 0, %s209
    %s210 = sphi 0, %s207
    %s211 = sphi 0, %s210
    %s227 = sphi 0, %s211
  $region4: #{atrous_bottleneck_nhwc.5} parent=0 // loop_header_branch
    %16 = sbr.rel (%p14) target = $region8
  $region5: #{atrous_bottleneck_nhwc.5} parent=0 // loop_body
    %s18 = ssub.s32 %s13, 1
    %s19 = ssub.s32 %s13, 2
    %s26 = sadd.s32 1, %s21
    %p27 = scmp.ge.s32.totalorder %s26, 1
    %s28 = scalar_select %p27, 0, %s26
    %s29 = sadd.s32 1, %s20
    %s30 = scalar_select %p27, %s29, %s20
    %p31 = scmp.ge.s32.totalorder %s30, 2
    %s32 = scalar_select %p31, 0, %s30
    %s33 = smul.u32 %s21, 8
    %s34 = ssub.s32 %s33, 1
    %p35 = scmp.gt.s32.totalorder %s34, 0
    %s36 = scalar_select %p35, %s34, 0
    %s37 = smul.u32 %s28, 8
    %s38 = ssub.s32 %s37, 1
    %p39 = scmp.gt.s32.totalorder %s38, 0
    %s40 = scalar_select %p39, %s38, 0
    %s41 = ssub.s32 %s20, %s32
    %s42 = ssub.s32 %s36, %s40
    %s43 = sor.u32 %s41, %s42
    %p44 = scmp.eq.s32.totalorder %s43, 0
    %s46 = sadd.s32 %s45, 1
    %s47 = scalar_select %p44, %s45, %s46
    %p50 = pneg %p44
    %p51 = scmp.eq.s32.totalorder %s13, 1
    %p52 = por %p50, %p51
    %p53 = scmp.ne.s32.totalorder %s45, %s48
    %p54 = scmp.eq.s32.totalorder %s13, 0
    %p55 = por %p53, %p54
    %p56 = scmp.ne.s32.totalorder %s45, %s48
    %p57 = scmp.eq.s32.totalorder %s18, 1
    %p58 = por %p56, %p57
    %p59 = scmp.ne.s32.totalorder %s48, %s49
    %p60 = scmp.eq.s32.totalorder %s18, 0
    %p61 = por %p59, %p60
    %p62 = scmp.ne.s32.totalorder %s48, %s49
    %p63 = scmp.eq.s32.totalorder %s19, 1
    %p64 = por %p62, %p63
    %p66 = scmp.ne.s32.totalorder %s49, %s65
    %p67 = scmp.eq.s32.totalorder %s19, 0
    %p68 = por %p66, %p67
    %s69 = ssub.s32 %s20, %s32
    %s70 = ssub.s32 %s21, %s28
    %s71 = sor.u32 %s69, %s70
    %p72 = scmp.eq.s32.totalorder %s71, 0
    %s74 = sadd.s32 %s73, 1
    %s75 = scalar_select %p72, %s73, %s74
    %p78 = pneg %p72
    %p79 = scmp.eq.s32.totalorder %s13, 1
    %p80 = por %p78, %p79
    %p81 = scmp.ne.s32.totalorder %s73, %s76
    %p82 = scmp.eq.s32.totalorder %s13, 0
    %p83 = por %p81, %p82
    %p84 = scmp.ne.s32.totalorder %s73, %s76
    %p85 = scmp.eq.s32.totalorder %s18, 1
    %p86 = por %p84, %p85
    %p87 = scmp.ne.s32.totalorder %s76, %s77
    %p88 = scmp.eq.s32.totalorder %s18, 0
    %p89 = por %p87, %p88
    %p90 = scmp.ne.s32.totalorder %s76, %s77
    %p91 = scmp.eq.s32.totalorder %s19, 1
    %p92 = por %p90, %p91
    %p94 = scmp.ne.s32.totalorder %s77, %s93
    %p95 = scmp.eq.s32.totalorder %s19, 0
    %p96 = por %p94, %p95
    %s97 = sadd.s32 %s21, 1
    %s98 = smul.u32 %s97, 8
    %p99 = scmp.lt.s32.totalorder %s98, 7
    %s100 = scalar_select %p99, %s98, 7
    %s101 = sadd.s32 %s28, 1
    %s102 = smul.u32 %s101, 8
    %p103 = scmp.lt.s32.totalorder %s102, 7
    %s104 = scalar_select %p103, %s102, 7
    %s105 = ssub.s32 %s20, %s32
    %s106 = ssub.s32 %s100, %s104
    %s107 = sor.u32 %s105, %s106
    %p108 = scmp.eq.s32.totalorder %s107, 0
    %s110 = sadd.s32 %s109, 1
    %s111 = scalar_select %p108, %s109, %s110
    %p114 = pneg %p108
    %p115 = scmp.eq.s32.totalorder %s13, 1
    %p116 = por %p114, %p115
    %p117 = scmp.ne.s32.totalorder %s109, %s112
    %p118 = scmp.eq.s32.totalorder %s13, 0
    %p119 = por %p117, %p118
    %p120 = scmp.ne.s32.totalorder %s109, %s112
    %p121 = scmp.eq.s32.totalorder %s18, 1
    %p122 = por %p120, %p121
    %p123 = scmp.ne.s32.totalorder %s112, %s113
    %p124 = scmp.eq.s32.totalorder %s18, 0
    %p125 = por %p123, %p124
    %p126 = scmp.ne.s32.totalorder %s112, %s113
    %p127 = scmp.eq.s32.totalorder %s19, 1
    %p128 = por %p126, %p127
    %p130 = scmp.ne.s32.totalorder %s113, %s129
    %p131 = scmp.eq.s32.totalorder %s19, 0
    %p132 = por %p130, %p131
    %s134 = sadd.s32 %s133, 1
    %p137 = scmp.eq.s32.totalorder %s13, 1
    %p138 = scmp.ne.s32.totalorder %s133, %s135
    %p139 = scmp.eq.s32.totalorder %s13, 0
    %p140 = por %p138, %p139
    %p141 = scmp.ne.s32.totalorder %s133, %s135
    %p142 = scmp.eq.s32.totalorder %s18, 1
    %p143 = por %p141, %p142
    %p144 = scmp.ne.s32.totalorder %s135, %s136
    %p145 = scmp.eq.s32.totalorder %s18, 0
    %p146 = por %p144, %p145
    %p147 = scmp.ne.s32.totalorder %s135, %s136
    %p148 = scmp.eq.s32.totalorder %s19, 1
    %p149 = por %p147, %p148
    %p151 = scmp.ne.s32.totalorder %s136, %s150
    %p152 = scmp.eq.s32.totalorder %s19, 0
    %p153 = por %p151, %p152
    %s155 = sadd.s32 %s154, 1
    %p158 = scmp.eq.s32.totalorder %s13, 1
    %p159 = scmp.ne.s32.totalorder %s154, %s156
    %p160 = scmp.eq.s32.totalorder %s13, 0
    %p161 = por %p159, %p160
    %p162 = scmp.ne.s32.totalorder %s154, %s156
    %p163 = scmp.eq.s32.totalorder %s18, 1
    %p164 = por %p162, %p163
    %p165 = scmp.ne.s32.totalorder %s156, %s157
    %p166 = scmp.eq.s32.totalorder %s18, 0
    %p167 = por %p165, %p166
    %p168 = scmp.ne.s32.totalorder %s156, %s157
    %p169 = scmp.eq.s32.totalorder %s19, 1
    %p170 = por %p168, %p169
    %p172 = scmp.ne.s32.totalorder %s157, %s171
    %p173 = scmp.eq.s32.totalorder %s19, 0
    %p174 = por %p172, %p173
    %s175 = ssub.s32 %s20, %s32
    %s176 = ssub.s32 %s21, %s28
    %s177 = sor.u32 %s175, %s176
    %p178 = scmp.eq.s32.totalorder %s177, 0
    %s180 = sadd.s32 %s179, 1
    %s181 = scalar_select %p178, %s179, %s180
    %p184 = pneg %p178
    %p185 = scmp.eq.s32.totalorder %s13, 1
    %p186 = por %p184, %p185
    %p187 = scmp.ne.s32.totalorder %s179, %s182
    %p188 = scmp.eq.s32.totalorder %s13, 0
    %p189 = por %p187, %p188
    %p190 = scmp.ne.s32.totalorder %s179, %s182
    %p191 = scmp.eq.s32.totalorder %s18, 1
    %p192 = por %p190, %p191
    %p193 = scmp.ne.s32.totalorder %s182, %s183
    %p194 = scmp.eq.s32.totalorder %s18, 0
    %p195 = por %p193, %p194
    %p196 = scmp.ne.s32.totalorder %s182, %s183
    %p197 = scmp.eq.s32.totalorder %s19, 1
    %p198 = por %p196, %p197
    %p200 = scmp.ne.s32.totalorder %s183, %s199
    %p201 = scmp.eq.s32.totalorder %s19, 0
    %p202 = por %p200, %p201
    %s203 = ssub.s32 %s20, %s32
    %s204 = ssub.s32 %s21, %s28
    %s205 = sor.u32 %s203, %s204
    %p206 = scmp.eq.s32.totalorder %s205, 0
    %s208 = sadd.s32 %s207, 1
    %s209 = scalar_select %p206, %s207, %s208
    %p212 = pneg %p206
    %p213 = scmp.eq.s32.totalorder %s13, 1
    %p214 = por %p212, %p213
    %p215 = scmp.ne.s32.totalorder %s207, %s210
    %p216 = scmp.eq.s32.totalorder %s13, 0
    %p217 = por %p215, %p216
    %p218 = scmp.ne.s32.totalorder %s207, %s210
    %p219 = scmp.eq.s32.totalorder %s18, 1
    %p220 = por %p218, %p219
    %p221 = scmp.ne.s32.totalorder %s210, %s211
    %p222 = scmp.eq.s32.totalorder %s18, 0
    %p223 = por %p221, %p222
    %p224 = scmp.ne.s32.totalorder %s210, %s211
    %p225 = scmp.eq.s32.totalorder %s19, 1
    %p226 = por %p224, %p225
    %p228 = scmp.ne.s32.totalorder %s211, %s227
    %p229 = scmp.eq.s32.totalorder %s19, 0
    %p230 = por %p228, %p229
    %p231 = scmp.le.s32.totalorder 1, %s13
    %p232 = scmp.lt.s32.totalorder %s13, 3
    %p233 = pnand %p231, %p232
    %p234 = pneg %p233
    // Predicated region
    $region9: #{atrous_bottleneck_nhwc.5} parent=5 // pred_check
      _
    $region10: #{atrous_bottleneck_nhwc.5} parent=5 // pred_check_branch
      %236 = sbr.rel (%p233) target = $region12
    $region11: #{atrous_bottleneck_nhwc.5} parent=5 // pred_region
      %s237 = ssub.s32 %s13, 1
      // Predicated region
      $region13: #{atrous_bottleneck_nhwc.5} parent=11 // pred_check
        %p238 = pneg %p146
      $region14: #{atrous_bottleneck_nhwc.5} parent=11 // pred_check_branch
        %240 = sbr.rel (%p238) target = $region16
      $region15: #{atrous_bottleneck_nhwc.5} parent=11 // pred_region
        _
      $region16: #{atrous_bottleneck_nhwc.5} parent=11 // pred_fallthru
        _
      // Predicated region
      $region17: #{atrous_bottleneck_nhwc.5} parent=11 // pred_check
        %p241 = pneg %p167
      $region18: #{atrous_bottleneck_nhwc.5} parent=11 // pred_check_branch
        %243 = sbr.rel (%p241) target = $region20
      $region19: #{atrous_bottleneck_nhwc.5} parent=11 // pred_region
        _
      $region20: #{atrous_bottleneck_nhwc.5} parent=11 // pred_fallthru
        _
    $region12: #{atrous_bottleneck_nhwc.5} parent=5 // pred_fallthru
      _
    %p244 = scmp.lt.s32.totalorder %s13, 2
    // Predicated region
    $region21: #{atrous_bottleneck_nhwc.5} parent=5 // pred_check
      %p245 = pneg %p244
    $region22: #{atrous_bottleneck_nhwc.5} parent=5 // pred_check_branch
      %247 = sbr.rel (%p245) target = $region24
    $region23: #{atrous_bottleneck_nhwc.5} parent=5 // pred_region
      // Predicated region
      $region25: #{atrous_bottleneck_nhwc.5} parent=23 // pred_check
        %p248 = pneg %p55
      $region26: #{atrous_bottleneck_nhwc.5} parent=23 // pred_check_branch
        %250 = sbr.rel (%p248) target = $region28
      $region27: #{atrous_bottleneck_nhwc.5} parent=23 // pred_region
        %s251 = smul.u32 %s21, 8
        %s252 = ssub.s32 %s251, 1
        %p253 = scmp.gt.s32.totalorder %s252, 0
        %s254 = scalar_select %p253, %s252, 0
        %s255 = smul.u32 2, %s254
        %p256 = scmp.lt.s32.totalorder %s20, 1
        %s257 = scalar_select %p256, %s20, 1
        %p258 = scmp.lt.s32.totalorder %s255, 15
        %s259 = scalar_select %p258, %s255, 15
        %s260 = smul.addr %s259, 2
        %s261 = smul.addr %s257, 32
        %s262 = sadd.s32 %s260, %s261
        %s263 = smul.addr %s262, 8
        %s264 = scalar_lea.vmem %s0, %s263
        %s265 = smul.u32 %s21, 8
        %s266 = ssub.s32 %s265, 1
        %p267 = scmp.gt.s32.totalorder %s266, 0
        %s268 = scalar_select %p267, %s266, 0
        %s269 = smul.u32 2, %s268
      $region28: #{atrous_bottleneck_nhwc.5} parent=23 // pred_fallthru
        _
      // Predicated region
      $region29: #{atrous_bottleneck_nhwc.5} parent=23 // pred_check
        %p270 = pneg %p83
      $region30: #{atrous_bottleneck_nhwc.5} parent=23 // pred_check_branch
        %272 = sbr.rel (%p270) target = $region32
      $region31: #{atrous_bottleneck_nhwc.5} parent=23 // pred_region
        %s273 = smul.u32 16, %s21
        %p274 = scmp.lt.s32.totalorder %s20, 1
        %s275 = scalar_select %p274, %s20, 1
        %p276 = scmp.lt.s32.totalorder %s273, 15
        %s277 = scalar_select %p276, %s273, 15
        %s278 = smul.addr %s277, 2
        %s279 = smul.addr %s275, 32
        %s280 = sadd.s32 %s278, %s279
        %s281 = smul.addr %s280, 8
        %s282 = scalar_lea.vmem %s1, %s281
        %s283 = smul.u32 16, %s21
      $region32: #{atrous_bottleneck_nhwc.5} parent=23 // pred_fallthru
        _
      // Predicated region
      $region33: #{atrous_bottleneck_nhwc.5} parent=23 // pred_check
        %p284 = pneg %p119
      $region34: #{atrous_bottleneck_nhwc.5} parent=23 // pred_check_branch
        %286 = sbr.rel (%p284) target = $region36
      $region35: #{atrous_bottleneck_nhwc.5} parent=23 // pred_region
        %s287 = sadd.s32 %s21, 1
        %s288 = smul.u32 %s287, 8
        %p289 = scmp.lt.s32.totalorder %s288, 7
        %s290 = scalar_select %p289, %s288, 7
        %s291 = smul.u32 2, %s290
        %p292 = scmp.lt.s32.totalorder %s20, 1
        %s293 = scalar_select %p292, %s20, 1
        %p294 = scmp.lt.s32.totalorder %s291, 15
        %s295 = scalar_select %p294, %s291, 15
        %s296 = smul.addr %s295, 2
        %s297 = smul.addr %s293, 32
        %s298 = sadd.s32 %s296, %s297
        %s299 = smul.addr %s298, 8
        %s300 = scalar_lea.vmem %s2, %s299
        %s301 = sadd.s32 %s21, 1
        %s302 = smul.u32 %s301, 8
        %p303 = scmp.lt.s32.totalorder %s302, 7
        %s304 = scalar_select %p303, %s302, 7
        %s305 = smul.u32 2, %s304
      $region36: #{atrous_bottleneck_nhwc.5} parent=23 // pred_fallthru
        _
    $region24: #{atrous_bottleneck_nhwc.5} parent=5 // pred_fallthru
      _
    %p306 = scmp.le.s32.totalorder 1, %s13
    %p307 = scmp.lt.s32.totalorder %s13, 3
    %p308 = pnand %p306, %p307
    %p309 = pneg %p308
    // Predicated region
    $region37: #{atrous_bottleneck_nhwc.5} parent=5 // pred_check
      _
    $region38: #{atrous_bottleneck_nhwc.5} parent=5 // pred_check_branch
      %311 = sbr.rel (%p308) target = $region40
    $region39: #{atrous_bottleneck_nhwc.5} parent=5 // pred_region
      %s312 = ssub.s32 %s13, 1
      %s313 = smul.u32 %s23, 8
      %s314 = ssub.s32 %s313, 1
      %p315 = scmp.gt.s32.totalorder %s314, 0
      %s316 = scalar_select %p315, %s314, 0
      %s317 = smul.u32 2, %s316
      %p318 = scmp.lt.s32.totalorder %s22, 1
      %s319 = scalar_select %p318, %s22, 1
      %p320 = scmp.lt.s32.totalorder %s317, 15
      %s321 = scalar_select %p320, %s317, 15
      %s322 = smul.addr %s321, 2
      %s323 = smul.addr %s319, 32
      %s324 = sadd.s32 %s322, %s323
      %s325 = smul.addr %s324, 8
      %s326 = scalar_lea.vmem %s0, %s325
      %p327 = pneg %p61
      %p328 = pneg %p58
      %s329 = smul.u32 16, %s23
      %p330 = scmp.lt.s32.totalorder %s22, 1
      %s331 = scalar_select %p330, %s22, 1
      %p332 = scmp.lt.s32.totalorder %s329, 15
      %s333 = scalar_select %p332, %s329, 15
      %s334 = smul.addr %s333, 2
      %s335 = smul.addr %s331, 32
      %s336 = sadd.s32 %s334, %s335
      %s337 = smul.addr %s336, 8
      %s338 = scalar_lea.vmem %s1, %s337
      %p339 = pneg %p89
      %p340 = pneg %p86
      %s341 = sadd.s32 %s23, 1
      %s342 = smul.u32 %s341, 8
      %p343 = scmp.lt.s32.totalorder %s342, 7
      %s344 = scalar_select %p343, %s342, 7
      %s345 = smul.u32 2, %s344
      %p346 = scmp.lt.s32.totalorder %s22, 1
      %s347 = scalar_select %p346, %s22, 1
      %p348 = scmp.lt.s32.totalorder %s345, 15
      %s349 = scalar_select %p348, %s345, 15
      %s350 = smul.addr %s349, 2
      %s351 = smul.addr %s347, 32
      %s352 = sadd.s32 %s350, %s351
      %s353 = smul.addr %s352, 8
      %s354 = scalar_lea.vmem %s2, %s353
      %p355 = pneg %p125
      %p356 = pneg %p122
      %p357 = pneg %p146
      %p358 = pneg %p143
      %p359 = pneg %p167
      %p360 = pneg %p164
      %p361 = pneg %p195
      %p362 = pneg %p192
      %s363 = smul.u32 16, %s23
      %p364 = scmp.lt.s32.totalorder %s22, 1
      %s365 = scalar_select %p364, %s22, 1
      %p366 = scmp.lt.s32.totalorder %s363, 15
      %s367 = scalar_select %p366, %s363, 15
      %s368 = smul.addr %s367, 2
      %s369 = smul.addr %s365, 32
      %s370 = sadd.s32 %s368, %s369
      %s371 = smul.addr %s370, 8
      %s372 = scalar_lea.vmem %s5, %s371
      %p373 = pneg %p223
      %p374 = pneg %p220
      %p375 = scmp.lt.s32.totalorder %s22, 1
      %s376 = scalar_select %p375, %s22, 1
      %p377 = scmp.lt.s32.totalorder %s23, 0
      %s378 = scalar_select %p377, %s23, 0
      %s379 = sadd.s32 %s378, %s376
      %s380 = smul.addr %s379, 2
      %s381 = scalar_lea.vmem %s6, %s380
      %s382 = smul.u32 %s23, 8
      %s383 = ssub.s32 %s382, 1
      %p384 = scmp.gt.s32.totalorder %s383, 0
      %s385 = scalar_select %p384, %s383, 0
      %s386 = smul.u32 2, %s385
      %p387 = scmp.lt.s32.totalorder %s22, 1
      %s388 = scalar_select %p387, %s22, 1
      %p389 = scmp.lt.s32.totalorder %s386, 15
      %s390 = scalar_select %p389, %s386, 15
      %s391 = smul.addr %s390, 2
      %s392 = smul.addr %s388, 32
      %s393 = sadd.s32 %s391, %s392
      %s394 = smul.addr %s393, 8
      %s395 = scalar_lea.vmem %s0, %s394
      %s396 = smul.u32 %s23, 8
      %s397 = ssub.s32 %s396, 1
      %p398 = scmp.gt.s32.totalorder %s397, 0
      %s399 = scalar_select %p398, %s397, 0
      %s400 = smul.u32 2, %s399
      %s401 = smul.u32 16, %s23
      %p402 = scmp.lt.s32.totalorder %s22, 1
      %s403 = scalar_select %p402, %s22, 1
      %p404 = scmp.lt.s32.totalorder %s401, 15
      %s405 = scalar_select %p404, %s401, 15
      %s406 = smul.addr %s405, 2
      %s407 = smul.addr %s403, 32
      %s408 = sadd.s32 %s406, %s407
      %s409 = smul.addr %s408, 8
      %s410 = scalar_lea.vmem %s1, %s409
      %s411 = smul.u32 16, %s23
      %s412 = sadd.s32 %s23, 1
      %s413 = smul.u32 %s412, 8
      %p414 = scmp.lt.s32.totalorder %s413, 7
      %s415 = scalar_select %p414, %s413, 7
      %s416 = smul.u32 2, %s415
      %p417 = scmp.lt.s32.totalorder %s22, 1
      %s418 = scalar_select %p417, %s22, 1
      %p419 = scmp.lt.s32.totalorder %s416, 15
      %s420 = scalar_select %p419, %s416, 15
      %s421 = smul.addr %s420, 2
      %s422 = smul.addr %s418, 32
      %s423 = sadd.s32 %s421, %s422
      %s424 = smul.addr %s423, 8
      %s425 = scalar_lea.vmem %s2, %s424
      %s426 = sadd.s32 %s23, 1
      %s427 = smul.u32 %s426, 8
      %p428 = scmp.lt.s32.totalorder %s427, 7
      %s429 = scalar_select %p428, %s427, 7
      %s430 = smul.u32 2, %s429
      %s431 = smul.u32 16, %s23
      %p432 = scmp.lt.s32.totalorder %s22, 1
      %s433 = scalar_select %p432, %s22, 1
      %p434 = scmp.lt.s32.totalorder %s431, 15
      %s435 = scalar_select %p434, %s431, 15
      %s436 = smul.addr %s435, 2
      %s437 = smul.addr %s433, 32
      %s438 = sadd.s32 %s436, %s437
      %s439 = smul.addr %s438, 8
      %s440 = scalar_lea.vmem %s5, %s439
      %s441 = smul.u32 16, %s23
      %p442 = scmp.lt.s32.totalorder %s22, 1
      %s443 = scalar_select %p442, %s22, 1
      %p444 = scmp.lt.s32.totalorder %s23, 0
      %s445 = scalar_select %p444, %s23, 0
      %s446 = sadd.s32 %s445, %s443
      %s447 = smul.addr %s446, 2
      %s448 = scalar_lea.vmem %s6, %s447
      %v449 = vld [vmem:[%s3] sm:$0x3]
      %vm450 = vcmask 25600
      %451 = vst.msk [vmem:[#allocation2 + $0x6] sm:$0x3] %vm450, 0.0
      %452 = vst.msk [vmem:[#allocation2 + $0x26] sm:$0x3] %vm450, 0.0
      %453 = vst.msk [vmem:[#allocation2 + $0x46] sm:$0x3] %vm450, 0.0
      %454 = vst.msk [vmem:[#allocation2 + $0x66] sm:$0x3] %vm450, 0.0
      %455 = vst.msk [vmem:[#allocation2 + $0x86] sm:$0x3] %vm450, 0.0
      %456 = vst.msk [vmem:[#allocation2 + $0xa6] sm:$0x3] %vm450, 0.0
      %457 = vst.msk [vmem:[#allocation2 + $0xc6] sm:$0x3] %vm450, 0.0
      %458 = vst.msk [vmem:[#allocation2 + $0xe6] sm:$0x3] %vm450, 0.0
      %459 = vst.msk [vmem:[#allocation2 + $0x106] sm:$0x3] %vm450, 0.0
      %460 = vst.msk [vmem:[#allocation2 + $0x126] sm:$0x3] %vm450, 0.0
      %461 = vst.msk [vmem:[#allocation2 + $0x146] sm:$0x3] %vm450, 0.0
      %462 = vst.msk [vmem:[#allocation2 + $0x166] sm:$0x3] %vm450, 0.0
      %463 = vst.msk [vmem:[#allocation2 + $0x186] sm:$0x3] %vm450, 0.0
      %464 = vst.msk [vmem:[#allocation2 + $0x1a6] sm:$0x3] %vm450, 0.0
      %465 = vst.msk [vmem:[#allocation2 + $0x1c6] sm:$0x3] %vm450, 0.0
      %466 = vst.msk [vmem:[#allocation2 + $0x1e6] sm:$0x3] %vm450, 0.0
      %467 = vst.msk [vmem:[#allocation2 + $0x206] sm:$0x3] %vm450, 0.0
      %468 = vst.msk [vmem:[#allocation2 + $0x226] sm:$0x3] %vm450, 0.0
      %469 = vst.msk [vmem:[#allocation2 + $0x246] sm:$0x3] %vm450, 0.0
      %470 = vst.msk [vmem:[#allocation2 + $0x266] sm:$0x3] %vm450, 0.0
      %471 = vst.msk [vmem:[#allocation2 + $0x18] sm:$0x3] %vm450, 0.0
      %472 = vst.msk [vmem:[#allocation2 + $0x38] sm:$0x3] %vm450, 0.0
      %473 = vst.msk [vmem:[#allocation2 + $0x58] sm:$0x3] %vm450, 0.0
      %474 = vst.msk [vmem:[#allocation2 + $0x78] sm:$0x3] %vm450, 0.0
      %475 = vst.msk [vmem:[#allocation2 + $0x98] sm:$0x3] %vm450, 0.0
      %476 = vst.msk [vmem:[#allocation2 + $0xb8] sm:$0x3] %vm450, 0.0
      %477 = vst.msk [vmem:[#allocation2 + $0xd8] sm:$0x3] %vm450, 0.0
      %478 = vst.msk [vmem:[#allocation2 + $0xf8] sm:$0x3] %vm450, 0.0
      %479 = vst.msk [vmem:[#allocation2 + $0x118] sm:$0x3] %vm450, 0.0
      %480 = vst.msk [vmem:[#allocation2 + $0x138] sm:$0x3] %vm450, 0.0
      %481 = vst.msk [vmem:[#allocation2 + $0x158] sm:$0x3] %vm450, 0.0
      %482 = vst.msk [vmem:[#allocation2 + $0x178] sm:$0x3] %vm450, 0.0
      %483 = vst.msk [vmem:[#allocation2 + $0x198] sm:$0x3] %vm450, 0.0
      %484 = vst.msk [vmem:[#allocation2 + $0x1b8] sm:$0x3] %vm450, 0.0
      %485 = vst.msk [vmem:[#allocation2 + $0x1d8] sm:$0x3] %vm450, 0.0
      %486 = vst.msk [vmem:[#allocation2 + $0x1f8] sm:$0x3] %vm450, 0.0
      %487 = vst.msk [vmem:[#allocation2 + $0x218] sm:$0x3] %vm450, 0.0
      %488 = vst.msk [vmem:[#allocation2 + $0x238] sm:$0x3] %vm450, 0.0
      %489 = vst.msk [vmem:[#allocation2 + $0x258] sm:$0x3] %vm450, 0.0
      %490 = vst.msk [vmem:[#allocation2 + $0x278] sm:$0x3] %vm450, 0.0
      %p491 = scmp.gt.s32.totalorder %s23, 0
      %v492 = vld [vmem:[%s395] sm:$0xff]
      %v493 = vld [vmem:[%s395 + $0x8] sm:$0xff]
      %v494 = vld [vmem:[%s395 + $0x10] sm:$0xff]
      %v495 = vld [vmem:[%s395 + $0x18] sm:$0xff]
      %v496 = vlaneseq
      %v497 = vshrl.u32 %v496, 7
      %v498 = vsub.s32 0, %v497
      %v499 = vrot.slane %v449, %v498
      %v500 = vmul.f32 %v492, %v499
      %v501 = vmul.f32 %v493, %v499
      %v502 = vmul.f32 %v494, %v499
      %v503 = vmul.f32 %v495, %v499
      %v504 = vlaneseq
      %v505 = vshrl.u32 %v504, 7
      %v506 = vsub.s32 1, %v505
      %v507 = vrot.slane %v449, %v506
      %v508 = vadd.f32 %v500, %v507
      %v509 = vadd.f32 %v501, %v507
      %v510 = vadd.f32 %v502, %v507
      %v511 = vadd.f32 %v503, %v507
      %v512 = vmax.f32 %v508, 0.0
      %v513 = vmax.f32 %v509, 0.0
      %v514 = vmax.f32 %v510, 0.0
      %v515 = vmax.f32 %v511, 0.0
      %s516 = scalar_select %p491, 1, 0
      %v517 = vstv %s516
      %vm518 = vcmp.eq.s32.totalorder %v517, 1
      %v519 = vsel %vm518, %v512, 0.0
      %v520 = vsel %vm518, %v513, 0.0
      %v521 = vsel %vm518, %v514, 0.0
      %v522 = vsel %vm518, %v515, 0.0
      %vm523 = vcmask 31744
      %524 = vst.msk [vmem:[#allocation2 + $0x8] sm:$0xff] %vm523, %v519
      %525 = vst.msk [vmem:[#allocation2 + $0x10] sm:$0xff] %vm523, %v520
      %526 = vst.msk [vmem:[#allocation2 + $0x28] sm:$0xff] %vm523, %v521
      %527 = vst.msk [vmem:[#allocation2 + $0x30] sm:$0xff] %vm523, %v522
      %p528 = scmp.lt.s32.totalorder %s23, 0
      %v529 = vld [vmem:[%s425] sm:$0xff]
      %v530 = vld [vmem:[%s425 + $0x8] sm:$0xff]
      %v531 = vld [vmem:[%s425 + $0x10] sm:$0xff]
      %v532 = vld [vmem:[%s425 + $0x18] sm:$0xff]
      %v533 = vmul.f32 %v529, %v499
      %v534 = vmul.f32 %v530, %v499
      %v535 = vmul.f32 %v531, %v499
      %v536 = vmul.f32 %v532, %v499
      %v537 = vadd.f32 %v533, %v507
      %v538 = vadd.f32 %v534, %v507
      %v539 = vadd.f32 %v535, %v507
      %v540 = vadd.f32 %v536, %v507
      %v541 = vmax.f32 %v537, 0.0
      %v542 = vmax.f32 %v538, 0.0
      %v543 = vmax.f32 %v539, 0.0
      %v544 = vmax.f32 %v540, 0.0
      %s545 = scalar_select %p528, 1, 0
      %v546 = vstv %s545
      %vm547 = vcmp.eq.s32.totalorder %v546, 1
      %v548 = vsel %vm547, %v541, 0.0
      %v549 = vsel %vm547, %v542, 0.0
      %v550 = vsel %vm547, %v543, 0.0
      %v551 = vsel %vm547, %v544, 0.0
      %s552 = scalar_lea.vmem [#allocation2], 576
      %553 = vst.msk [vmem:[%s552 + $0x8] sm:$0xff] %vm523, %v548
      %554 = vst.msk [vmem:[%s552 + $0x10] sm:$0xff] %vm523, %v549
      %555 = vst.msk [vmem:[%s552 + $0x28] sm:$0xff] %vm523, %v550
      %556 = vst.msk [vmem:[%s552 + $0x30] sm:$0xff] %vm523, %v551
      %v557 = vld [vmem:[%s410] sm:$0xff]
      %v558 = vld [vmem:[%s410 + $0x8] sm:$0xff]
      %v559 = vld [vmem:[%s410 + $0x10] sm:$0xff]
      %v560 = vld [vmem:[%s410 + $0x18] sm:$0xff]
      %v561 = vld [vmem:[%s410 + $0x20] sm:$0xff]
      %v562 = vld [vmem:[%s410 + $0x28] sm:$0xff]
      %v563 = vld [vmem:[%s410 + $0x30] sm:$0xff]
      %v564 = vld [vmem:[%s410 + $0x38] sm:$0xff]
      %v565 = vld [vmem:[%s410 + $0x40] sm:$0xff]
      %v566 = vld [vmem:[%s410 + $0x48] sm:$0xff]
      %v567 = vld [vmem:[%s410 + $0x50] sm:$0xff]
      %v568 = vld [vmem:[%s410 + $0x58] sm:$0xff]
      %v569 = vld [vmem:[%s410 + $0x60] sm:$0xff]
      %v570 = vld [vmem:[%s410 + $0x68] sm:$0xff]
      %v571 = vld [vmem:[%s410 + $0x70] sm:$0xff]
      %v572 = vld [vmem:[%s410 + $0x78] sm:$0xff]
      %v573 = vld [vmem:[%s410 + $0x80] sm:$0xff]
      %v574 = vld [vmem:[%s410 + $0x88] sm:$0xff]
      %v575 = vld [vmem:[%s410 + $0x90] sm:$0xff]
      %v576 = vld [vmem:[%s410 + $0x98] sm:$0xff]
      %v577 = vld [vmem:[%s410 + $0xa0] sm:$0xff]
      %v578 = vld [vmem:[%s410 + $0xa8] sm:$0xff]
      %v579 = vld [vmem:[%s410 + $0xb0] sm:$0xff]
      %v580 = vld [vmem:[%s410 + $0xb8] sm:$0xff]
      %v581 = vld [vmem:[%s410 + $0xc0] sm:$0xff]
      %v582 = vld [vmem:[%s410 + $0xc8] sm:$0xff]
      %v583 = vld [vmem:[%s410 + $0xd0] sm:$0xff]
      %v584 = vld [vmem:[%s410 + $0xd8] sm:$0xff]
      %v585 = vld [vmem:[%s410 + $0xe0] sm:$0xff]
      %v586 = vld [vmem:[%s410 + $0xe8] sm:$0xff]
      %v587 = vld [vmem:[%s410 + $0xf0] sm:$0xff]
      %v588 = vld [vmem:[%s410 + $0xf8] sm:$0xff]
      %v589 = vmul.f32 %v557, %v499
      %v590 = vmul.f32 %v558, %v499
      %v591 = vmul.f32 %v559, %v499
      %v592 = vmul.f32 %v560, %v499
      %v593 = vmul.f32 %v561, %v499
      %v594 = vmul.f32 %v562, %v499
      %v595 = vmul.f32 %v563, %v499
      %v596 = vmul.f32 %v564, %v499
      %v597 = vmul.f32 %v565, %v499
      %v598 = vmul.f32 %v566, %v499
      %v599 = vmul.f32 %v567, %v499
      %v600 = vmul.f32 %v568, %v499
      %v601 = vmul.f32 %v569, %v499
      %v602 = vmul.f32 %v570, %v499
      %v603 = vmul.f32 %v571, %v499
      %v604 = vmul.f32 %v572, %v499
      %v605 = vmul.f32 %v573, %v499
      %v606 = vmul.f32 %v574, %v499
      %v607 = vmul.f32 %v575, %v499
      %v608 = vmul.f32 %v576, %v499
      %v609 = vmul.f32 %v577, %v499
      %v610 = vmul.f32 %v578, %v499
      %v611 = vmul.f32 %v579, %v499
      %v612 = vmul.f32 %v580, %v499
      %v613 = vmul.f32 %v581, %v499
      %v614 = vmul.f32 %v582, %v499
      %v615 = vmul.f32 %v583, %v499
      %v616 = vmul.f32 %v584, %v499
      %v617 = vmul.f32 %v585, %v499
      %v618 = vmul.f32 %v586, %v499
      %v619 = vmul.f32 %v587, %v499
      %v620 = vmul.f32 %v588, %v499
      %v621 = vadd.f32 %v589, %v507
      %v622 = vadd.f32 %v590, %v507
      %v623 = vadd.f32 %v591, %v507
      %v624 = vadd.f32 %v592, %v507
      %v625 = vadd.f32 %v593, %v507
      %v626 = vadd.f32 %v594, %v507
      %v627 = vadd.f32 %v595, %v507
      %v628 = vadd.f32 %v596, %v507
      %v629 = vadd.f32 %v597, %v507
      %v630 = vadd.f32 %v598, %v507
      %v631 = vadd.f32 %v599, %v507
      %v632 = vadd.f32 %v600, %v507
      %v633 = vadd.f32 %v601, %v507
      %v634 = vadd.f32 %v602, %v507
      %v635 = vadd.f32 %v603, %v507
      %v636 = vadd.f32 %v604, %v507
      %v637 = vadd.f32 %v605, %v507
      %v638 = vadd.f32 %v606, %v507
      %v639 = vadd.f32 %v607, %v507
      %v640 = vadd.f32 %v608, %v507
      %v641 = vadd.f32 %v609, %v507
      %v642 = vadd.f32 %v610, %v507
      %v643 = vadd.f32 %v611, %v507
      %v644 = vadd.f32 %v612, %v507
      %v645 = vadd.f32 %v613, %v507
      %v646 = vadd.f32 %v614, %v507
      %v647 = vadd.f32 %v615, %v507
      %v648 = vadd.f32 %v616, %v507
      %v649 = vadd.f32 %v617, %v507
      %v650 = vadd.f32 %v618, %v507
      %v651 = vadd.f32 %v619, %v507
      %v652 = vadd.f32 %v620, %v507
      %v653 = vmax.f32 %v621, 0.0
      %v654 = vmax.f32 %v622, 0.0
      %v655 = vmax.f32 %v623, 0.0
      %v656 = vmax.f32 %v624, 0.0
      %v657 = vmax.f32 %v625, 0.0
      %v658 = vmax.f32 %v626, 0.0
      %v659 = vmax.f32 %v627, 0.0
      %v660 = vmax.f32 %v628, 0.0
      %v661 = vmax.f32 %v629, 0.0
      %v662 = vmax.f32 %v630, 0.0
      %v663 = vmax.f32 %v631, 0.0
      %v664 = vmax.f32 %v632, 0.0
      %v665 = vmax.f32 %v633, 0.0
      %v666 = vmax.f32 %v634, 0.0
      %v667 = vmax.f32 %v635, 0.0
      %v668 = vmax.f32 %v636, 0.0
      %v669 = vmax.f32 %v637, 0.0
      %v670 = vmax.f32 %v638, 0.0
      %v671 = vmax.f32 %v639, 0.0
      %v672 = vmax.f32 %v640, 0.0
      %v673 = vmax.f32 %v641, 0.0
      %v674 = vmax.f32 %v642, 0.0
      %v675 = vmax.f32 %v643, 0.0
      %v676 = vmax.f32 %v644, 0.0
      %v677 = vmax.f32 %v645, 0.0
      %v678 = vmax.f32 %v646, 0.0
      %v679 = vmax.f32 %v647, 0.0
      %v680 = vmax.f32 %v648, 0.0
      %v681 = vmax.f32 %v649, 0.0
      %v682 = vmax.f32 %v650, 0.0
      %v683 = vmax.f32 %v651, 0.0
      %v684 = vmax.f32 %v652, 0.0
      %s685 = scalar_lea.vmem [#allocation2], 64
      %686 = vst.msk [vmem:[%s685 + $0x8] sm:$0xff] %vm523, %v653
      %687 = vst.msk [vmem:[%s685 + $0x10] sm:$0xff] %vm523, %v654
      %688 = vst.msk [vmem:[%s685 + $0x28] sm:$0xff] %vm523, %v655
      %689 = vst.msk [vmem:[%s685 + $0x30] sm:$0xff] %vm523, %v656
      %690 = vst.msk [vmem:[%s685 + $0x48] sm:$0xff] %vm523, %v657
      %691 = vst.msk [vmem:[%s685 + $0x50] sm:$0xff] %vm523, %v658
      %692 = vst.msk [vmem:[%s685 + $0x68] sm:$0xff] %vm523, %v659
      %693 = vst.msk [vmem:[%s685 + $0x70] sm:$0xff] %vm523, %v660
      %694 = vst.msk [vmem:[%s685 + $0x88] sm:$0xff] %vm523, %v661
      %695 = vst.msk [vmem:[%s685 + $0x90] sm:$0xff] %vm523, %v662
      %696 = vst.msk [vmem:[%s685 + $0xa8] sm:$0xff] %vm523, %v663
      %697 = vst.msk [vmem:[%s685 + $0xb0] sm:$0xff] %vm523, %v664
      %698 = vst.msk [vmem:[%s685 + $0xc8] sm:$0xff] %vm523, %v665
      %699 = vst.msk [vmem:[%s685 + $0xd0] sm:$0xff] %vm523, %v666
      %700 = vst.msk [vmem:[%s685 + $0xe8] sm:$0xff] %vm523, %v667
      %701 = vst.msk [vmem:[%s685 + $0xf0] sm:$0xff] %vm523, %v668
      %702 = vst.msk [vmem:[%s685 + $0x108] sm:$0xff] %vm523, %v669
      %703 = vst.msk [vmem:[%s685 + $0x110] sm:$0xff] %vm523, %v670
      %704 = vst.msk [vmem:[%s685 + $0x128] sm:$0xff] %vm523, %v671
      %705 = vst.msk [vmem:[%s685 + $0x130] sm:$0xff] %vm523, %v672
      %706 = vst.msk [vmem:[%s685 + $0x148] sm:$0xff] %vm523, %v673
      %707 = vst.msk [vmem:[%s685 + $0x150] sm:$0xff] %vm523, %v674
      %708 = vst.msk [vmem:[%s685 + $0x168] sm:$0xff] %vm523, %v675
      %709 = vst.msk [vmem:[%s685 + $0x170] sm:$0xff] %vm523, %v676
      %710 = vst.msk [vmem:[%s685 + $0x188] sm:$0xff] %vm523, %v677
      %711 = vst.msk [vmem:[%s685 + $0x190] sm:$0xff] %vm523, %v678
      %712 = vst.msk [vmem:[%s685 + $0x1a8] sm:$0xff] %vm523, %v679
      %713 = vst.msk [vmem:[%s685 + $0x1b0] sm:$0xff] %vm523, %v680
      %714 = vst.msk [vmem:[%s685 + $0x1c8] sm:$0xff] %vm523, %v681
      %715 = vst.msk [vmem:[%s685 + $0x1d0] sm:$0xff] %vm523, %v682
      %716 = vst.msk [vmem:[%s685 + $0x1e8] sm:$0xff] %vm523, %v683
      %717 = vst.msk [vmem:[%s685 + $0x1f0] sm:$0xff] %vm523, %v684
      %v718 = vld [vmem:[#allocation2 + $0x6] sm:$0xff]
      %v719 = vld [vmem:[#allocation2 + $0xe] sm:$0xff]
      %v720 = vld [vmem:[#allocation2 + $0x26] sm:$0xff]
      %v721 = vld [vmem:[#allocation2 + $0x2e] sm:$0xff]
      %v722 = vld [vmem:[#allocation2 + $0x46] sm:$0xff]
      %v723 = vld [vmem:[#allocation2 + $0x4e] sm:$0xff]
      %v724 = vld [vmem:[#allocation2 + $0x66] sm:$0xff]
      %v725 = vld [vmem:[#allocation2 + $0x6e] sm:$0xff]
      %v726 = vld [vmem:[#allocation2 + $0x86] sm:$0xff]
      %v727 = vld [vmem:[#allocation2 + $0x8e] sm:$0xff]
      %v728 = vld [vmem:[#allocation2 + $0xa6] sm:$0xff]
      %v729 = vld [vmem:[#allocation2 + $0xae] sm:$0xff]
      %v730 = vld [vmem:[#allocation2 + $0xc6] sm:$0xff]
      %v731 = vld [vmem:[#allocation2 + $0xce] sm:$0xff]
      %v732 = vld [vmem:[#allocation2 + $0xe6] sm:$0xff]
      %v733 = vld [vmem:[#allocation2 + $0xee] sm:$0xff]
      %v734 = vld [vmem:[#allocation2 + $0x106] sm:$0xff]
      %v735 = vld [vmem:[#allocation2 + $0x10e] sm:$0xff]
      %v736 = vld [vmem:[#allocation2 + $0x126] sm:$0xff]
      %v737 = vld [vmem:[#allocation2 + $0x12e] sm:$0xff]
      %v738 = vld [vmem:[#allocation2 + $0x146] sm:$0xff]
      %v739 = vld [vmem:[#allocation2 + $0x14e] sm:$0xff]
      %v740 = vld [vmem:[#allocation2 + $0x166] sm:$0xff]
      %v741 = vld [vmem:[#allocation2 + $0x16e] sm:$0xff]
      %v742 = vld [vmem:[#allocation2 + $0x186] sm:$0xff]
      %v743 = vld [vmem:[#allocation2 + $0x18e] sm:$0xff]
      %v744 = vld [vmem:[#allocation2 + $0x1a6] sm:$0xff]
      %v745 = vld [vmem:[#allocation2 + $0x1ae] sm:$0xff]
      %v746 = vld [vmem:[#allocation2 + $0x1c6] sm:$0xff]
      %v747 = vld [vmem:[#allocation2 + $0x1ce] sm:$0xff]
      %v748 = vld [vmem:[#allocation2 + $0x1e6] sm:$0xff]
      %v749 = vld [vmem:[#allocation2 + $0x1ee] sm:$0xff]
      %v750 = vld [vmem:[#allocation2 + $0x8] sm:$0xff]
      %v751 = vld [vmem:[#allocation2 + $0x10] sm:$0xff]
      %v752 = vld [vmem:[#allocation2 + $0x28] sm:$0xff]
      %v753 = vld [vmem:[#allocation2 + $0x30] sm:$0xff]
      %v754 = vld [vmem:[#allocation2 + $0x48] sm:$0xff]
      %v755 = vld [vmem:[#allocation2 + $0x50] sm:$0xff]
      %v756 = vld [vmem:[#allocation2 + $0x68] sm:$0xff]
      %v757 = vld [vmem:[#allocation2 + $0x70] sm:$0xff]
      %v758 = vld [vmem:[#allocation2 + $0x88] sm:$0xff]
      %v759 = vld [vmem:[#allocation2 + $0x90] sm:$0xff]
      %v760 = vld [vmem:[#allocation2 + $0xa8] sm:$0xff]
      %v761 = vld [vmem:[#allocation2 + $0xb0] sm:$0xff]
      %v762 = vld [vmem:[#allocation2 + $0xc8] sm:$0xff]
      %v763 = vld [vmem:[#allocation2 + $0xd0] sm:$0xff]
      %v764 = vld [vmem:[#allocation2 + $0xe8] sm:$0xff]
      %v765 = vld [vmem:[#allocation2 + $0xf0] sm:$0xff]
      %v766 = vld [vmem:[#allocation2 + $0x108] sm:$0xff]
      %v767 = vld [vmem:[#allocation2 + $0x110] sm:$0xff]
      %v768 = vld [vmem:[#allocation2 + $0x128] sm:$0xff]
      %v769 = vld [vmem:[#allocation2 + $0x130] sm:$0xff]
      %v770 = vld [vmem:[#allocation2 + $0x148] sm:$0xff]
      %v771 = vld [vmem:[#allocation2 + $0x150] sm:$0xff]
      %v772 = vld [vmem:[#allocation2 + $0x168] sm:$0xff]
      %v773 = vld [vmem:[#allocation2 + $0x170] sm:$0xff]
      %v774 = vld [vmem:[#allocation2 + $0x188] sm:$0xff]
      %v775 = vld [vmem:[#allocation2 + $0x190] sm:$0xff]
      %v776 = vld [vmem:[#allocation2 + $0x1a8] sm:$0xff]
      %v777 = vld [vmem:[#allocation2 + $0x1b0] sm:$0xff]
      %v778 = vld [vmem:[#allocation2 + $0x1c8] sm:$0xff]
      %v779 = vld [vmem:[#allocation2 + $0x1d0] sm:$0xff]
      %v780 = vld [vmem:[#allocation2 + $0x1e8] sm:$0xff]
      %v781 = vld [vmem:[#allocation2 + $0x1f0] sm:$0xff]
      %v782 = vld [vmem:[#allocation2 + $0xa] sm:$0xff]
      %v783 = vld [vmem:[#allocation2 + $0x12] sm:$0xff]
      %v784 = vld [vmem:[#allocation2 + $0x2a] sm:$0xff]
      %v785 = vld [vmem:[#allocation2 + $0x32] sm:$0xff]
      %v786 = vld [vmem:[#allocation2 + $0x4a] sm:$0xff]
      %v787 = vld [vmem:[#allocation2 + $0x52] sm:$0xff]
      %v788 = vld [vmem:[#allocation2 + $0x6a] sm:$0xff]
      %v789 = vld [vmem:[#allocation2 + $0x72] sm:$0xff]
      %v790 = vld [vmem:[#allocation2 + $0x8a] sm:$0xff]
      %v791 = vld [vmem:[#allocation2 + $0x92] sm:$0xff]
      %v792 = vld [vmem:[#allocation2 + $0xaa] sm:$0xff]
      %v793 = vld [vmem:[#allocation2 + $0xb2] sm:$0xff]
      %v794 = vld [vmem:[#allocation2 + $0xca] sm:$0xff]
      %v795 = vld [vmem:[#allocation2 + $0xd2] sm:$0xff]
      %v796 = vld [vmem:[#allocation2 + $0xea] sm:$0xff]
      %v797 = vld [vmem:[#allocation2 + $0xf2] sm:$0xff]
      %v798 = vld [vmem:[#allocation2 + $0x10a] sm:$0xff]
      %v799 = vld [vmem:[#allocation2 + $0x112] sm:$0xff]
      %v800 = vld [vmem:[#allocation2 + $0x12a] sm:$0xff]
      %v801 = vld [vmem:[#allocation2 + $0x132] sm:$0xff]
      %v802 = vld [vmem:[#allocation2 + $0x14a] sm:$0xff]
      %v803 = vld [vmem:[#allocation2 + $0x152] sm:$0xff]
      %v804 = vld [vmem:[#allocation2 + $0x16a] sm:$0xff]
      %v805 = vld [vmem:[#allocation2 + $0x172] sm:$0xff]
      %v806 = vld [vmem:[#allocation2 + $0x18a] sm:$0xff]
      %v807 = vld [vmem:[#allocation2 + $0x192] sm:$0xff]
      %v808 = vld [vmem:[#allocation2 + $0x1aa] sm:$0xff]
      %v809 = vld [vmem:[#allocation2 + $0x1b2] sm:$0xff]
      %v810 = vld [vmem:[#allocation2 + $0x1ca] sm:$0xff]
      %v811 = vld [vmem:[#allocation2 + $0x1d2] sm:$0xff]
      %v812 = vld [vmem:[#allocation2 + $0x1ea] sm:$0xff]
      %v813 = vld [vmem:[#allocation2 + $0x1f2] sm:$0xff]
      %v814 = vld [vmem:[%s685 + $0x6] sm:$0xff]
      %v815 = vld [vmem:[%s685 + $0xe] sm:$0xff]
      %v816 = vld [vmem:[%s685 + $0x26] sm:$0xff]
      %v817 = vld [vmem:[%s685 + $0x2e] sm:$0xff]
      %v818 = vld [vmem:[%s685 + $0x46] sm:$0xff]
      %v819 = vld [vmem:[%s685 + $0x4e] sm:$0xff]
      %v820 = vld [vmem:[%s685 + $0x66] sm:$0xff]
      %v821 = vld [vmem:[%s685 + $0x6e] sm:$0xff]
      %v822 = vld [vmem:[%s685 + $0x86] sm:$0xff]
      %v823 = vld [vmem:[%s685 + $0x8e] sm:$0xff]
      %v824 = vld [vmem:[%s685 + $0xa6] sm:$0xff]
      %v825 = vld [vmem:[%s685 + $0xae] sm:$0xff]
      %v826 = vld [vmem:[%s685 + $0xc6] sm:$0xff]
      %v827 = vld [vmem:[%s685 + $0xce] sm:$0xff]
      %v828 = vld [vmem:[%s685 + $0xe6] sm:$0xff]
      %v829 = vld [vmem:[%s685 + $0xee] sm:$0xff]
      %v830 = vld [vmem:[%s685 + $0x106] sm:$0xff]
      %v831 = vld [vmem:[%s685 + $0x10e] sm:$0xff]
      %v832 = vld [vmem:[%s685 + $0x126] sm:$0xff]
      %v833 = vld [vmem:[%s685 + $0x12e] sm:$0xff]
      %v834 = vld [vmem:[%s685 + $0x146] sm:$0xff]
      %v835 = vld [vmem:[%s685 + $0x14e] sm:$0xff]
      %v836 = vld [vmem:[%s685 + $0x166] sm:$0xff]
      %v837 = vld [vmem:[%s685 + $0x16e] sm:$0xff]
      %v838 = vld [vmem:[%s685 + $0x186] sm:$0xff]
      %v839 = vld [vmem:[%s685 + $0x18e] sm:$0xff]
      %v840 = vld [vmem:[%s685 + $0x1a6] sm:$0xff]
      %v841 = vld [vmem:[%s685 + $0x1ae] sm:$0xff]
      %v842 = vld [vmem:[%s685 + $0x1c6] sm:$0xff]
      %v843 = vld [vmem:[%s685 + $0x1ce] sm:$0xff]
      %v844 = vld [vmem:[%s685 + $0x1e6] sm:$0xff]
      %v845 = vld [vmem:[%s685 + $0x1ee] sm:$0xff]
      %v846 = vld [vmem:[%s685 + $0x8] sm:$0xff]
      %v847 = vld [vmem:[%s685 + $0x10] sm:$0xff]
      %v848 = vld [vmem:[%s685 + $0x28] sm:$0xff]
      %v849 = vld [vmem:[%s685 + $0x30] sm:$0xff]
      %v850 = vld [vmem:[%s685 + $0x48] sm:$0xff]
      %v851 = vld [vmem:[%s685 + $0x50] sm:$0xff]
      %v852 = vld [vmem:[%s685 + $0x68] sm:$0xff]
      %v853 = vld [vmem:[%s685 + $0x70] sm:$0xff]
      %v854 = vld [vmem:[%s685 + $0x88] sm:$0xff]
      %v855 = vld [vmem:[%s685 + $0x90] sm:$0xff]
      %v856 = vld [vmem:[%s685 + $0xa8] sm:$0xff]
      %v857 = vld [vmem:[%s685 + $0xb0] sm:$0xff]
      %v858 = vld [vmem:[%s685 + $0xc8] sm:$0xff]
      %v859 = vld [vmem:[%s685 + $0xd0] sm:$0xff]
      %v860 = vld [vmem:[%s685 + $0xe8] sm:$0xff]
      %v861 = vld [vmem:[%s685 + $0xf0] sm:$0xff]
      %v862 = vld [vmem:[%s685 + $0x108] sm:$0xff]
      %v863 = vld [vmem:[%s685 + $0x110] sm:$0xff]
      %v864 = vld [vmem:[%s685 + $0x128] sm:$0xff]
      %v865 = vld [vmem:[%s685 + $0x130] sm:$0xff]
      %v866 = vld [vmem:[%s685 + $0x148] sm:$0xff]
      %v867 = vld [vmem:[%s685 + $0x150] sm:$0xff]
      %v868 = vld [vmem:[%s685 + $0x168] sm:$0xff]
      %v869 = vld [vmem:[%s685 + $0x170] sm:$0xff]
      %v870 = vld [vmem:[%s685 + $0x188] sm:$0xff]
      %v871 = vld [vmem:[%s685 + $0x190] sm:$0xff]
      %v872 = vld [vmem:[%s685 + $0x1a8] sm:$0xff]
      %v873 = vld [vmem:[%s685 + $0x1b0] sm:$0xff]
      %v874 = vld [vmem:[%s685 + $0x1c8] sm:$0xff]
      %v875 = vld [vmem:[%s685 + $0x1d0] sm:$0xff]
      %v876 = vld [vmem:[%s685 + $0x1e8] sm:$0xff]
      %v877 = vld [vmem:[%s685 + $0x1f0] sm:$0xff]
      %v878 = vld [vmem:[%s685 + $0xa] sm:$0xff]
      %v879 = vld [vmem:[%s685 + $0x12] sm:$0xff]
      %v880 = vld [vmem:[%s685 + $0x2a] sm:$0xff]
      %v881 = vld [vmem:[%s685 + $0x32] sm:$0xff]
      %v882 = vld [vmem:[%s685 + $0x4a] sm:$0xff]
      %v883 = vld [vmem:[%s685 + $0x52] sm:$0xff]
      %v884 = vld [vmem:[%s685 + $0x6a] sm:$0xff]
      %v885 = vld [vmem:[%s685 + $0x72] sm:$0xff]
      %v886 = vld [vmem:[%s685 + $0x8a] sm:$0xff]
      %v887 = vld [vmem:[%s685 + $0x92] sm:$0xff]
      %v888 = vld [vmem:[%s685 + $0xaa] sm:$0xff]
      %v889 = vld [vmem:[%s685 + $0xb2] sm:$0xff]
      %v890 = vld [vmem:[%s685 + $0xca] sm:$0xff]
      %v891 = vld [vmem:[%s685 + $0xd2] sm:$0xff]
      %v892 = vld [vmem:[%s685 + $0xea] sm:$0xff]
      %v893 = vld [vmem:[%s685 + $0xf2] sm:$0xff]
      %v894 = vld [vmem:[%s685 + $0x10a] sm:$0xff]
      %v895 = vld [vmem:[%s685 + $0x112] sm:$0xff]
      %v896 = vld [vmem:[%s685 + $0x12a] sm:$0xff]
      %v897 = vld [vmem:[%s685 + $0x132] sm:$0xff]
      %v898 = vld [vmem:[%s685 + $0x14a] sm:$0xff]
      %v899 = vld [vmem:[%s685 + $0x152] sm:$0xff]
      %v900 = vld [vmem:[%s685 + $0x16a] sm:$0xff]
      %v901 = vld [vmem:[%s685 + $0x172] sm:$0xff]
      %v902 = vld [vmem:[%s685 + $0x18a] sm:$0xff]
      %v903 = vld [vmem:[%s685 + $0x192] sm:$0xff]
      %v904 = vld [vmem:[%s685 + $0x1aa] sm:$0xff]
      %v905 = vld [vmem:[%s685 + $0x1b2] sm:$0xff]
      %v906 = vld [vmem:[%s685 + $0x1ca] sm:$0xff]
      %v907 = vld [vmem:[%s685 + $0x1d2] sm:$0xff]
      %v908 = vld [vmem:[%s685 + $0x1ea] sm:$0xff]
      %v909 = vld [vmem:[%s685 + $0x1f2] sm:$0xff]
      %s910 = scalar_lea.vmem [#allocation2], 128
      %v911 = vld [vmem:[%s910 + $0x6] sm:$0xff]
      %v912 = vld [vmem:[%s910 + $0xe] sm:$0xff]
      %v913 = vld [vmem:[%s910 + $0x26] sm:$0xff]
      %v914 = vld [vmem:[%s910 + $0x2e] sm:$0xff]
      %v915 = vld [vmem:[%s910 + $0x46] sm:$0xff]
      %v916 = vld [vmem:[%s910 + $0x4e] sm:$0xff]
      %v917 = vld [vmem:[%s910 + $0x66] sm:$0xff]
      %v918 = vld [vmem:[%s910 + $0x6e] sm:$0xff]
      %v919 = vld [vmem:[%s910 + $0x86] sm:$0xff]
      %v920 = vld [vmem:[%s910 + $0x8e] sm:$0xff]
      %v921 = vld [vmem:[%s910 + $0xa6] sm:$0xff]
      %v922 = vld [vmem:[%s910 + $0xae] sm:$0xff]
      %v923 = vld [vmem:[%s910 + $0xc6] sm:$0xff]
      %v924 = vld [vmem:[%s910 + $0xce] sm:$0xff]
      %v925 = vld [vmem:[%s910 + $0xe6] sm:$0xff]
      %v926 = vld [vmem:[%s910 + $0xee] sm:$0xff]
      %v927 = vld [vmem:[%s910 + $0x106] sm:$0xff]
      %v928 = vld [vmem:[%s910 + $0x10e] sm:$0xff]
      %v929 = vld [vmem:[%s910 + $0x126] sm:$0xff]
      %v930 = vld [vmem:[%s910 + $0x12e] sm:$0xff]
      %v931 = vld [vmem:[%s910 + $0x146] sm:$0xff]
      %v932 = vld [vmem:[%s910 + $0x14e] sm:$0xff]
      %v933 = vld [vmem:[%s910 + $0x166] sm:$0xff]
      %v934 = vld [vmem:[%s910 + $0x16e] sm:$0xff]
      %v935 = vld [vmem:[%s910 + $0x186] sm:$0xff]
      %v936 = vld [vmem:[%s910 + $0x18e] sm:$0xff]
      %v937 = vld [vmem:[%s910 + $0x1a6] sm:$0xff]
      %v938 = vld [vmem:[%s910 + $0x1ae] sm:$0xff]
      %v939 = vld [vmem:[%s910 + $0x1c6] sm:$0xff]
      %v940 = vld [vmem:[%s910 + $0x1ce] sm:$0xff]
      %v941 = vld [vmem:[%s910 + $0x1e6] sm:$0xff]
      %v942 = vld [vmem:[%s910 + $0x1ee] sm:$0xff]
      %v943 = vld [vmem:[%s910 + $0x8] sm:$0xff]
      %v944 = vld [vmem:[%s910 + $0x10] sm:$0xff]
      %v945 = vld [vmem:[%s910 + $0x28] sm:$0xff]
      %v946 = vld [vmem:[%s910 + $0x30] sm:$0xff]
      %v947 = vld [vmem:[%s910 + $0x48] sm:$0xff]
      %v948 = vld [vmem:[%s910 + $0x50] sm:$0xff]
      %v949 = vld [vmem:[%s910 + $0x68] sm:$0xff]
      %v950 = vld [vmem:[%s910 + $0x70] sm:$0xff]
      %v951 = vld [vmem:[%s910 + $0x88] sm:$0xff]
      %v952 = vld [vmem:[%s910 + $0x90] sm:$0xff]
      %v953 = vld [vmem:[%s910 + $0xa8] sm:$0xff]
      %v954 = vld [vmem:[%s910 + $0xb0] sm:$0xff]
      %v955 = vld [vmem:[%s910 + $0xc8] sm:$0xff]
      %v956 = vld [vmem:[%s910 + $0xd0] sm:$0xff]
      %v957 = vld [vmem:[%s910 + $0xe8] sm:$0xff]
      %v958 = vld [vmem:[%s910 + $0xf0] sm:$0xff]
      %v959 = vld [vmem:[%s910 + $0x108] sm:$0xff]
      %v960 = vld [vmem:[%s910 + $0x110] sm:$0xff]
      %v961 = vld [vmem:[%s910 + $0x128] sm:$0xff]
      %v962 = vld [vmem:[%s910 + $0x130] sm:$0xff]
      %v963 = vld [vmem:[%s910 + $0x148] sm:$0xff]
      %v964 = vld [vmem:[%s910 + $0x150] sm:$0xff]
      %v965 = vld [vmem:[%s910 + $0x168] sm:$0xff]
      %v966 = vld [vmem:[%s910 + $0x170] sm:$0xff]
      %v967 = vld [vmem:[%s910 + $0x188] sm:$0xff]
      %v968 = vld [vmem:[%s910 + $0x190] sm:$0xff]
      %v969 = vld [vmem:[%s910 + $0x1a8] sm:$0xff]
      %v970 = vld [vmem:[%s910 + $0x1b0] sm:$0xff]
      %v971 = vld [vmem:[%s910 + $0x1c8] sm:$0xff]
      %v972 = vld [vmem:[%s910 + $0x1d0] sm:$0xff]
      %v973 = vld [vmem:[%s910 + $0x1e8] sm:$0xff]
      %v974 = vld [vmem:[%s910 + $0x1f0] sm:$0xff]
      %v975 = vld [vmem:[%s910 + $0xa] sm:$0xff]
      %v976 = vld [vmem:[%s910 + $0x12] sm:$0xff]
      %v977 = vld [vmem:[%s910 + $0x2a] sm:$0xff]
      %v978 = vld [vmem:[%s910 + $0x32] sm:$0xff]
      %v979 = vld [vmem:[%s910 + $0x4a] sm:$0xff]
      %v980 = vld [vmem:[%s910 + $0x52] sm:$0xff]
      %v981 = vld [vmem:[%s910 + $0x6a] sm:$0xff]
      %v982 = vld [vmem:[%s910 + $0x72] sm:$0xff]
      %v983 = vld [vmem:[%s910 + $0x8a] sm:$0xff]
      %v984 = vld [vmem:[%s910 + $0x92] sm:$0xff]
      %v985 = vld [vmem:[%s910 + $0xaa] sm:$0xff]
      %v986 = vld [vmem:[%s910 + $0xb2] sm:$0xff]
      %v987 = vld [vmem:[%s910 + $0xca] sm:$0xff]
      %v988 = vld [vmem:[%s910 + $0xd2] sm:$0xff]
      %v989 = vld [vmem:[%s910 + $0xea] sm:$0xff]
      %v990 = vld [vmem:[%s910 + $0xf2] sm:$0xff]
      %v991 = vld [vmem:[%s910 + $0x10a] sm:$0xff]
      %v992 = vld [vmem:[%s910 + $0x112] sm:$0xff]
      %v993 = vld [vmem:[%s910 + $0x12a] sm:$0xff]
      %v994 = vld [vmem:[%s910 + $0x132] sm:$0xff]
      %v995 = vld [vmem:[%s910 + $0x14a] sm:$0xff]
      %v996 = vld [vmem:[%s910 + $0x152] sm:$0xff]
      %v997 = vld [vmem:[%s910 + $0x16a] sm:$0xff]
      %v998 = vld [vmem:[%s910 + $0x172] sm:$0xff]
      %v999 = vld [vmem:[%s910 + $0x18a] sm:$0xff]
      %v1000 = vld [vmem:[%s910 + $0x192] sm:$0xff]
      %v1001 = vld [vmem:[%s910 + $0x1aa] sm:$0xff]
      %v1002 = vld [vmem:[%s910 + $0x1b2] sm:$0xff]
      %v1003 = vld [vmem:[%s910 + $0x1ca] sm:$0xff]
      %v1004 = vld [vmem:[%s910 + $0x1d2] sm:$0xff]
      %v1005 = vld [vmem:[%s910 + $0x1ea] sm:$0xff]
      %v1006 = vld [vmem:[%s910 + $0x1f2] sm:$0xff]
      %1039 = vrot.lane.b32.xlu0 %v750, 4
      %v1040 = vpop.permute.xlu0 %1039
      %1041 = vrot.lane.b32.xlu0 %v751, 4
      %v1042 = vpop.permute.xlu0 %1041
      %1043 = vrot.lane.b32.xlu0 %v752, 4
      %v1044 = vpop.permute.xlu0 %1043
      %1045 = vrot.lane.b32.xlu0 %v753, 4
      %v1046 = vpop.permute.xlu0 %1045
      %1047 = vrot.lane.b32.xlu0 %v754, 4
      %v1048 = vpop.permute.xlu0 %1047
      %1049 = vrot.lane.b32.xlu0 %v755, 4
      %v1050 = vpop.permute.xlu0 %1049
      %1051 = vrot.lane.b32.xlu0 %v756, 4
      %v1052 = vpop.permute.xlu0 %1051
      %1053 = vrot.lane.b32.xlu0 %v757, 4
      %v1054 = vpop.permute.xlu0 %1053
      %1055 = vrot.lane.b32.xlu0 %v758, 4
      %v1056 = vpop.permute.xlu0 %1055
      %1057 = vrot.lane.b32.xlu0 %v759, 4
      %v1058 = vpop.permute.xlu0 %1057
      %1059 = vrot.lane.b32.xlu0 %v760, 4
      %v1060 = vpop.permute.xlu0 %1059
      %1061 = vrot.lane.b32.xlu0 %v761, 4
      %v1062 = vpop.permute.xlu0 %1061
      %1063 = vrot.lane.b32.xlu0 %v762, 4
      %v1064 = vpop.permute.xlu0 %1063
      %1065 = vrot.lane.b32.xlu0 %v763, 4
      %v1066 = vpop.permute.xlu0 %1065
      %1067 = vrot.lane.b32.xlu0 %v764, 4
      %v1068 = vpop.permute.xlu0 %1067
      %1069 = vrot.lane.b32.xlu0 %v765, 4
      %v1070 = vpop.permute.xlu0 %1069
      %1071 = vrot.lane.b32.xlu0 %v766, 4
      %v1072 = vpop.permute.xlu0 %1071
      %1073 = vrot.lane.b32.xlu0 %v767, 4
      %v1074 = vpop.permute.xlu0 %1073
      %1075 = vrot.lane.b32.xlu0 %v768, 4
      %v1076 = vpop.permute.xlu0 %1075
      %1077 = vrot.lane.b32.xlu0 %v769, 4
      %v1078 = vpop.permute.xlu0 %1077
      %1079 = vrot.lane.b32.xlu0 %v770, 4
      %v1080 = vpop.permute.xlu0 %1079
      %1081 = vrot.lane.b32.xlu0 %v771, 4
      %v1082 = vpop.permute.xlu0 %1081
      %1083 = vrot.lane.b32.xlu0 %v772, 4
      %v1084 = vpop.permute.xlu0 %1083
      %1085 = vrot.lane.b32.xlu0 %v773, 4
      %v1086 = vpop.permute.xlu0 %1085
      %1087 = vrot.lane.b32.xlu0 %v774, 4
      %v1088 = vpop.permute.xlu0 %1087
      %1089 = vrot.lane.b32.xlu0 %v775, 4
      %v1090 = vpop.permute.xlu0 %1089
      %1091 = vrot.lane.b32.xlu0 %v776, 4
      %v1092 = vpop.permute.xlu0 %1091
      %1093 = vrot.lane.b32.xlu0 %v777, 4
      %v1094 = vpop.permute.xlu0 %1093
      %1095 = vrot.lane.b32.xlu0 %v778, 4
      %v1096 = vpop.permute.xlu0 %1095
      %1097 = vrot.lane.b32.xlu0 %v779, 4
      %v1098 = vpop.permute.xlu0 %1097
      %1099 = vrot.lane.b32.xlu0 %v780, 4
      %v1100 = vpop.permute.xlu0 %1099
      %1101 = vrot.lane.b32.xlu0 %v781, 4
      %v1102 = vpop.permute.xlu0 %1101
      %1167 = vrot.lane.b32.xlu0 %v782, 8
      %v1168 = vpop.permute.xlu0 %1167
      %1169 = vrot.lane.b32.xlu0 %v783, 8
      %v1170 = vpop.permute.xlu0 %1169
      %1171 = vrot.lane.b32.xlu0 %v784, 8
      %v1172 = vpop.permute.xlu0 %1171
      %1173 = vrot.lane.b32.xlu0 %v785, 8
      %v1174 = vpop.permute.xlu0 %1173
      %1175 = vrot.lane.b32.xlu0 %v786, 8
      %v1176 = vpop.permute.xlu0 %1175
      %1177 = vrot.lane.b32.xlu0 %v787, 8
      %v1178 = vpop.permute.xlu0 %1177
      %1179 = vrot.lane.b32.xlu0 %v788, 8
      %v1180 = vpop.permute.xlu0 %1179
      %1181 = vrot.lane.b32.xlu0 %v789, 8
      %v1182 = vpop.permute.xlu0 %1181
      %1183 = vrot.lane.b32.xlu0 %v790, 8
      %v1184 = vpop.permute.xlu0 %1183
      %1185 = vrot.lane.b32.xlu0 %v791, 8
      %v1186 = vpop.permute.xlu0 %1185
      %1187 = vrot.lane.b32.xlu0 %v792, 8
      %v1188 = vpop.permute.xlu0 %1187
      %1189 = vrot.lane.b32.xlu0 %v793, 8
      %v1190 = vpop.permute.xlu0 %1189
      %1191 = vrot.lane.b32.xlu0 %v794, 8
      %v1192 = vpop.permute.xlu0 %1191
      %1193 = vrot.lane.b32.xlu0 %v795, 8
      %v1194 = vpop.permute.xlu0 %1193
      %1195 = vrot.lane.b32.xlu0 %v796, 8
      %v1196 = vpop.permute.xlu0 %1195
      %1197 = vrot.lane.b32.xlu0 %v797, 8
      %v1198 = vpop.permute.xlu0 %1197
      %1199 = vrot.lane.b32.xlu0 %v798, 8
      %v1200 = vpop.permute.xlu0 %1199
      %1201 = vrot.lane.b32.xlu0 %v799, 8
      %v1202 = vpop.permute.xlu0 %1201
      %1203 = vrot.lane.b32.xlu0 %v800, 8
      %v1204 = vpop.permute.xlu0 %1203
      %1205 = vrot.lane.b32.xlu0 %v801, 8
      %v1206 = vpop.permute.xlu0 %1205
      %1207 = vrot.lane.b32.xlu0 %v802, 8
      %v1208 = vpop.permute.xlu0 %1207
      %1209 = vrot.lane.b32.xlu0 %v803, 8
      %v1210 = vpop.permute.xlu0 %1209
      %1211 = vrot.lane.b32.xlu0 %v804, 8
      %v1212 = vpop.permute.xlu0 %1211
      %1213 = vrot.lane.b32.xlu0 %v805, 8
      %v1214 = vpop.permute.xlu0 %1213
      %1215 = vrot.lane.b32.xlu0 %v806, 8
      %v1216 = vpop.permute.xlu0 %1215
      %1217 = vrot.lane.b32.xlu0 %v807, 8
      %v1218 = vpop.permute.xlu0 %1217
      %1219 = vrot.lane.b32.xlu0 %v808, 8
      %v1220 = vpop.permute.xlu0 %1219
      %1221 = vrot.lane.b32.xlu0 %v809, 8
      %v1222 = vpop.permute.xlu0 %1221
      %1223 = vrot.lane.b32.xlu0 %v810, 8
      %v1224 = vpop.permute.xlu0 %1223
      %1225 = vrot.lane.b32.xlu0 %v811, 8
      %v1226 = vpop.permute.xlu0 %1225
      %1227 = vrot.lane.b32.xlu0 %v812, 8
      %v1228 = vpop.permute.xlu0 %1227
      %1229 = vrot.lane.b32.xlu0 %v813, 8
      %v1230 = vpop.permute.xlu0 %1229
      %1295 = vrot.lane.b32.xlu0 %v814, 12
      %v1296 = vpop.permute.xlu0 %1295
      %1297 = vrot.lane.b32.xlu0 %v815, 12
      %v1298 = vpop.permute.xlu0 %1297
      %1299 = vrot.lane.b32.xlu0 %v816, 12
      %v1300 = vpop.permute.xlu0 %1299
      %1301 = vrot.lane.b32.xlu0 %v817, 12
      %v1302 = vpop.permute.xlu0 %1301
      %1303 = vrot.lane.b32.xlu0 %v818, 12
      %v1304 = vpop.permute.xlu0 %1303
      %1305 = vrot.lane.b32.xlu0 %v819, 12
      %v1306 = vpop.permute.xlu0 %1305
      %1307 = vrot.lane.b32.xlu0 %v820, 12
      %v1308 = vpop.permute.xlu0 %1307
      %1309 = vrot.lane.b32.xlu0 %v821, 12
      %v1310 = vpop.permute.xlu0 %1309
      %1311 = vrot.lane.b32.xlu0 %v822, 12
      %v1312 = vpop.permute.xlu0 %1311
      %1313 = vrot.lane.b32.xlu0 %v823, 12
      %v1314 = vpop.permute.xlu0 %1313
      %1315 = vrot.lane.b32.xlu0 %v824, 12
      %v1316 = vpop.permute.xlu0 %1315
      %1317 = vrot.lane.b32.xlu0 %v825, 12
      %v1318 = vpop.permute.xlu0 %1317
      %1319 = vrot.lane.b32.xlu0 %v826, 12
      %v1320 = vpop.permute.xlu0 %1319
      %1321 = vrot.lane.b32.xlu0 %v827, 12
      %v1322 = vpop.permute.xlu0 %1321
      %1323 = vrot.lane.b32.xlu0 %v828, 12
      %v1324 = vpop.permute.xlu0 %1323
      %1325 = vrot.lane.b32.xlu0 %v829, 12
      %v1326 = vpop.permute.xlu0 %1325
      %1327 = vrot.lane.b32.xlu0 %v830, 12
      %v1328 = vpop.permute.xlu0 %1327
      %1329 = vrot.lane.b32.xlu0 %v831, 12
      %v1330 = vpop.permute.xlu0 %1329
      %1331 = vrot.lane.b32.xlu0 %v832, 12
      %v1332 = vpop.permute.xlu0 %1331
      %1333 = vrot.lane.b32.xlu0 %v833, 12
      %v1334 = vpop.permute.xlu0 %1333
      %1335 = vrot.lane.b32.xlu0 %v834, 12
      %v1336 = vpop.permute.xlu0 %1335
      %1337 = vrot.lane.b32.xlu0 %v835, 12
      %v1338 = vpop.permute.xlu0 %1337
      %1339 = vrot.lane.b32.xlu0 %v836, 12
      %v1340 = vpop.permute.xlu0 %1339
      %1341 = vrot.lane.b32.xlu0 %v837, 12
      %v1342 = vpop.permute.xlu0 %1341
      %1343 = vrot.lane.b32.xlu0 %v838, 12
      %v1344 = vpop.permute.xlu0 %1343
      %1345 = vrot.lane.b32.xlu0 %v839, 12
      %v1346 = vpop.permute.xlu0 %1345
      %1347 = vrot.lane.b32.xlu0 %v840, 12
      %v1348 = vpop.permute.xlu0 %1347
      %1349 = vrot.lane.b32.xlu0 %v841, 12
      %v1350 = vpop.permute.xlu0 %1349
      %1351 = vrot.lane.b32.xlu0 %v842, 12
      %v1352 = vpop.permute.xlu0 %1351
      %1353 = vrot.lane.b32.xlu0 %v843, 12
      %v1354 = vpop.permute.xlu0 %1353
      %1355 = vrot.lane.b32.xlu0 %v844, 12
      %v1356 = vpop.permute.xlu0 %1355
      %1357 = vrot.lane.b32.xlu0 %v845, 12
      %v1358 = vpop.permute.xlu0 %1357
      %1423 = vrot.lane.b32.xlu0 %v846, 16
      %v1424 = vpop.permute.xlu0 %1423
      %1425 = vrot.lane.b32.xlu0 %v847, 16
      %v1426 = vpop.permute.xlu0 %1425
      %1427 = vrot.lane.b32.xlu0 %v848, 16
      %v1428 = vpop.permute.xlu0 %1427
      %1429 = vrot.lane.b32.xlu0 %v849, 16
      %v1430 = vpop.permute.xlu0 %1429
      %1431 = vrot.lane.b32.xlu0 %v850, 16
      %v1432 = vpop.permute.xlu0 %1431
      %1433 = vrot.lane.b32.xlu0 %v851, 16
      %v1434 = vpop.permute.xlu0 %1433
      %1435 = vrot.lane.b32.xlu0 %v852, 16
      %v1436 = vpop.permute.xlu0 %1435
      %1437 = vrot.lane.b32.xlu0 %v853, 16
      %v1438 = vpop.permute.xlu0 %1437
      %1439 = vrot.lane.b32.xlu0 %v854, 16
      %v1440 = vpop.permute.xlu0 %1439
      %1441 = vrot.lane.b32.xlu0 %v855, 16
      %v1442 = vpop.permute.xlu0 %1441
      %1443 = vrot.lane.b32.xlu0 %v856, 16
      %v1444 = vpop.permute.xlu0 %1443
      %1445 = vrot.lane.b32.xlu0 %v857, 16
      %v1446 = vpop.permute.xlu0 %1445
      %1447 = vrot.lane.b32.xlu0 %v858, 16
      %v1448 = vpop.permute.xlu0 %1447
      %1449 = vrot.lane.b32.xlu0 %v859, 16
      %v1450 = vpop.permute.xlu0 %1449
      %1451 = vrot.lane.b32.xlu0 %v860, 16
      %v1452 = vpop.permute.xlu0 %1451
      %1453 = vrot.lane.b32.xlu0 %v861, 16
      %v1454 = vpop.permute.xlu0 %1453
      %1455 = vrot.lane.b32.xlu0 %v862, 16
      %v1456 = vpop.permute.xlu0 %1455
      %1457 = vrot.lane.b32.xlu0 %v863, 16
      %v1458 = vpop.permute.xlu0 %1457
      %1459 = vrot.lane.b32.xlu0 %v864, 16
      %v1460 = vpop.permute.xlu0 %1459
      %1461 = vrot.lane.b32.xlu0 %v865, 16
      %v1462 = vpop.permute.xlu0 %1461
      %1463 = vrot.lane.b32.xlu0 %v866, 16
      %v1464 = vpop.permute.xlu0 %1463
      %1465 = vrot.lane.b32.xlu0 %v867, 16
      %v1466 = vpop.permute.xlu0 %1465
      %1467 = vrot.lane.b32.xlu0 %v868, 16
      %v1468 = vpop.permute.xlu0 %1467
      %1469 = vrot.lane.b32.xlu0 %v869, 16
      %v1470 = vpop.permute.xlu0 %1469
      %1471 = vrot.lane.b32.xlu0 %v870, 16
      %v1472 = vpop.permute.xlu0 %1471
      %1473 = vrot.lane.b32.xlu0 %v871, 16
      %v1474 = vpop.permute.xlu0 %1473
      %1475 = vrot.lane.b32.xlu0 %v872, 16
      %v1476 = vpop.permute.xlu0 %1475
      %1477 = vrot.lane.b32.xlu0 %v873, 16
      %v1478 = vpop.permute.xlu0 %1477
      %1479 = vrot.lane.b32.xlu0 %v874, 16
      %v1480 = vpop.permute.xlu0 %1479
      %1481 = vrot.lane.b32.xlu0 %v875, 16
      %v1482 = vpop.permute.xlu0 %1481
      %1483 = vrot.lane.b32.xlu0 %v876, 16
      %v1484 = vpop.permute.xlu0 %1483
      %1485 = vrot.lane.b32.xlu0 %v877, 16
      %v1486 = vpop.permute.xlu0 %1485
      %1551 = vrot.lane.b32.xlu0 %v878, 20
      %v1552 = vpop.permute.xlu0 %1551
      %1553 = vrot.lane.b32.xlu0 %v879, 20
      %v1554 = vpop.permute.xlu0 %1553
      %1555 = vrot.lane.b32.xlu0 %v880, 20
      %v1556 = vpop.permute.xlu0 %1555
      %1557 = vrot.lane.b32.xlu0 %v881, 20
      %v1558 = vpop.permute.xlu0 %1557
      %1559 = vrot.lane.b32.xlu0 %v882, 20
      %v1560 = vpop.permute.xlu0 %1559
      %1561 = vrot.lane.b32.xlu0 %v883, 20
      %v1562 = vpop.permute.xlu0 %1561
      %1563 = vrot.lane.b32.xlu0 %v884, 20
      %v1564 = vpop.permute.xlu0 %1563
      %1565 = vrot.lane.b32.xlu0 %v885, 20
      %v1566 = vpop.permute.xlu0 %1565
      %1567 = vrot.lane.b32.xlu0 %v886, 20
      %v1568 = vpop.permute.xlu0 %1567
      %1569 = vrot.lane.b32.xlu0 %v887, 20
      %v1570 = vpop.permute.xlu0 %1569
      %1571 = vrot.lane.b32.xlu0 %v888, 20
      %v1572 = vpop.permute.xlu0 %1571
      %1573 = vrot.lane.b32.xlu0 %v889, 20
      %v1574 = vpop.permute.xlu0 %1573
      %1575 = vrot.lane.b32.xlu0 %v890, 20
      %v1576 = vpop.permute.xlu0 %1575
      %1577 = vrot.lane.b32.xlu0 %v891, 20
      %v1578 = vpop.permute.xlu0 %1577
      %1579 = vrot.lane.b32.xlu0 %v892, 20
      %v1580 = vpop.permute.xlu0 %1579
      %1581 = vrot.lane.b32.xlu0 %v893, 20
      %v1582 = vpop.permute.xlu0 %1581
      %1583 = vrot.lane.b32.xlu0 %v894, 20
      %v1584 = vpop.permute.xlu0 %1583
      %1585 = vrot.lane.b32.xlu0 %v895, 20
      %v1586 = vpop.permute.xlu0 %1585
      %1587 = vrot.lane.b32.xlu0 %v896, 20
      %v1588 = vpop.permute.xlu0 %1587
      %1589 = vrot.lane.b32.xlu0 %v897, 20
      %v1590 = vpop.permute.xlu0 %1589
      %1591 = vrot.lane.b32.xlu0 %v898, 20
      %v1592 = vpop.permute.xlu0 %1591
      %1593 = vrot.lane.b32.xlu0 %v899, 20
      %v1594 = vpop.permute.xlu0 %1593
      %1595 = vrot.lane.b32.xlu0 %v900, 20
      %v1596 = vpop.permute.xlu0 %1595
      %1597 = vrot.lane.b32.xlu0 %v901, 20
      %v1598 = vpop.permute.xlu0 %1597
      %1599 = vrot.lane.b32.xlu0 %v902, 20
      %v1600 = vpop.permute.xlu0 %1599
      %1601 = vrot.lane.b32.xlu0 %v903, 20
      %v1602 = vpop.permute.xlu0 %1601
      %1603 = vrot.lane.b32.xlu0 %v904, 20
      %v1604 = vpop.permute.xlu0 %1603
      %1605 = vrot.lane.b32.xlu0 %v905, 20
      %v1606 = vpop.permute.xlu0 %1605
      %1607 = vrot.lane.b32.xlu0 %v906, 20
      %v1608 = vpop.permute.xlu0 %1607
      %1609 = vrot.lane.b32.xlu0 %v907, 20
      %v1610 = vpop.permute.xlu0 %1609
      %1611 = vrot.lane.b32.xlu0 %v908, 20
      %v1612 = vpop.permute.xlu0 %1611
      %1613 = vrot.lane.b32.xlu0 %v909, 20
      %v1614 = vpop.permute.xlu0 %1613
      %1679 = vrot.lane.b32.xlu0 %v911, 24
      %v1680 = vpop.permute.xlu0 %1679
      %1681 = vrot.lane.b32.xlu0 %v912, 24
      %v1682 = vpop.permute.xlu0 %1681
      %1683 = vrot.lane.b32.xlu0 %v913, 24
      %v1684 = vpop.permute.xlu0 %1683
      %1685 = vrot.lane.b32.xlu0 %v914, 24
      %v1686 = vpop.permute.xlu0 %1685
      %1687 = vrot.lane.b32.xlu0 %v915, 24
      %v1688 = vpop.permute.xlu0 %1687
      %1689 = vrot.lane.b32.xlu0 %v916, 24
      %v1690 = vpop.permute.xlu0 %1689
      %1691 = vrot.lane.b32.xlu0 %v917, 24
      %v1692 = vpop.permute.xlu0 %1691
      %1693 = vrot.lane.b32.xlu0 %v918, 24
      %v1694 = vpop.permute.xlu0 %1693
      %1695 = vrot.lane.b32.xlu0 %v919, 24
      %v1696 = vpop.permute.xlu0 %1695
      %1697 = vrot.lane.b32.xlu0 %v920, 24
      %v1698 = vpop.permute.xlu0 %1697
      %1699 = vrot.lane.b32.xlu0 %v921, 24
      %v1700 = vpop.permute.xlu0 %1699
      %1701 = vrot.lane.b32.xlu0 %v922, 24
      %v1702 = vpop.permute.xlu0 %1701
      %1703 = vrot.lane.b32.xlu0 %v923, 24
      %v1704 = vpop.permute.xlu0 %1703
      %1705 = vrot.lane.b32.xlu0 %v924, 24
      %v1706 = vpop.permute.xlu0 %1705
      %1707 = vrot.lane.b32.xlu0 %v925, 24
      %v1708 = vpop.permute.xlu0 %1707
      %1709 = vrot.lane.b32.xlu0 %v926, 24
      %v1710 = vpop.permute.xlu0 %1709
      %1711 = vrot.lane.b32.xlu0 %v927, 24
      %v1712 = vpop.permute.xlu0 %1711
      %1713 = vrot.lane.b32.xlu0 %v928, 24
      %v1714 = vpop.permute.xlu0 %1713
      %1715 = vrot.lane.b32.xlu0 %v929, 24
      %v1716 = vpop.permute.xlu0 %1715
      %1717 = vrot.lane.b32.xlu0 %v930, 24
      %v1718 = vpop.permute.xlu0 %1717
      %1719 = vrot.lane.b32.xlu0 %v931, 24
      %v1720 = vpop.permute.xlu0 %1719
      %1721 = vrot.lane.b32.xlu0 %v932, 24
      %v1722 = vpop.permute.xlu0 %1721
      %1723 = vrot.lane.b32.xlu0 %v933, 24
      %v1724 = vpop.permute.xlu0 %1723
      %1725 = vrot.lane.b32.xlu0 %v934, 24
      %v1726 = vpop.permute.xlu0 %1725
      %1727 = vrot.lane.b32.xlu0 %v935, 24
      %v1728 = vpop.permute.xlu0 %1727
      %1729 = vrot.lane.b32.xlu0 %v936, 24
      %v1730 = vpop.permute.xlu0 %1729
      %1731 = vrot.lane.b32.xlu0 %v937, 24
      %v1732 = vpop.permute.xlu0 %1731
      %1733 = vrot.lane.b32.xlu0 %v938, 24
      %v1734 = vpop.permute.xlu0 %1733
      %1735 = vrot.lane.b32.xlu0 %v939, 24
      %v1736 = vpop.permute.xlu0 %1735
      %1737 = vrot.lane.b32.xlu0 %v940, 24
      %v1738 = vpop.permute.xlu0 %1737
      %1739 = vrot.lane.b32.xlu0 %v941, 24
      %v1740 = vpop.permute.xlu0 %1739
      %1741 = vrot.lane.b32.xlu0 %v942, 24
      %v1742 = vpop.permute.xlu0 %1741
      %1807 = vrot.lane.b32.xlu0 %v943, 28
      %v1808 = vpop.permute.xlu0 %1807
      %1809 = vrot.lane.b32.xlu0 %v944, 28
      %v1810 = vpop.permute.xlu0 %1809
      %1811 = vrot.lane.b32.xlu0 %v945, 28
      %v1812 = vpop.permute.xlu0 %1811
      %1813 = vrot.lane.b32.xlu0 %v946, 28
      %v1814 = vpop.permute.xlu0 %1813
      %1815 = vrot.lane.b32.xlu0 %v947, 28
      %v1816 = vpop.permute.xlu0 %1815
      %1817 = vrot.lane.b32.xlu0 %v948, 28
      %v1818 = vpop.permute.xlu0 %1817
      %1819 = vrot.lane.b32.xlu0 %v949, 28
      %v1820 = vpop.permute.xlu0 %1819
      %1821 = vrot.lane.b32.xlu0 %v950, 28
      %v1822 = vpop.permute.xlu0 %1821
      %1823 = vrot.lane.b32.xlu0 %v951, 28
      %v1824 = vpop.permute.xlu0 %1823
      %1825 = vrot.lane.b32.xlu0 %v952, 28
      %v1826 = vpop.permute.xlu0 %1825
      %1827 = vrot.lane.b32.xlu0 %v953, 28
      %v1828 = vpop.permute.xlu0 %1827
      %1829 = vrot.lane.b32.xlu0 %v954, 28
      %v1830 = vpop.permute.xlu0 %1829
      %1831 = vrot.lane.b32.xlu0 %v955, 28
      %v1832 = vpop.permute.xlu0 %1831
      %1833 = vrot.lane.b32.xlu0 %v956, 28
      %v1834 = vpop.permute.xlu0 %1833
      %1835 = vrot.lane.b32.xlu0 %v957, 28
      %v1836 = vpop.permute.xlu0 %1835
      %1837 = vrot.lane.b32.xlu0 %v958, 28
      %v1838 = vpop.permute.xlu0 %1837
      %1839 = vrot.lane.b32.xlu0 %v959, 28
      %v1840 = vpop.permute.xlu0 %1839
      %1841 = vrot.lane.b32.xlu0 %v960, 28
      %v1842 = vpop.permute.xlu0 %1841
      %1843 = vrot.lane.b32.xlu0 %v961, 28
      %v1844 = vpop.permute.xlu0 %1843
      %1845 = vrot.lane.b32.xlu0 %v962, 28
      %v1846 = vpop.permute.xlu0 %1845
      %1847 = vrot.lane.b32.xlu0 %v963, 28
      %v1848 = vpop.permute.xlu0 %1847
      %1849 = vrot.lane.b32.xlu0 %v964, 28
      %v1850 = vpop.permute.xlu0 %1849
      %1851 = vrot.lane.b32.xlu0 %v965, 28
      %v1852 = vpop.permute.xlu0 %1851
      %1853 = vrot.lane.b32.xlu0 %v966, 28
      %v1854 = vpop.permute.xlu0 %1853
      %1855 = vrot.lane.b32.xlu0 %v967, 28
      %v1856 = vpop.permute.xlu0 %1855
      %1857 = vrot.lane.b32.xlu0 %v968, 28
      %v1858 = vpop.permute.xlu0 %1857
      %1859 = vrot.lane.b32.xlu0 %v969, 28
      %v1860 = vpop.permute.xlu0 %1859
      %1861 = vrot.lane.b32.xlu0 %v970, 28
      %v1862 = vpop.permute.xlu0 %1861
      %1863 = vrot.lane.b32.xlu0 %v971, 28
      %v1864 = vpop.permute.xlu0 %1863
      %1865 = vrot.lane.b32.xlu0 %v972, 28
      %v1866 = vpop.permute.xlu0 %1865
      %1867 = vrot.lane.b32.xlu0 %v973, 28
      %v1868 = vpop.permute.xlu0 %1867
      %1869 = vrot.lane.b32.xlu0 %v974, 28
      %v1870 = vpop.permute.xlu0 %1869
      %1935 = vrot.lane.b32.xlu0 %v975, 32
      %v1936 = vpop.permute.xlu0 %1935
      %1937 = vrot.lane.b32.xlu0 %v976, 32
      %v1938 = vpop.permute.xlu0 %1937
      %1939 = vrot.lane.b32.xlu0 %v977, 32
      %v1940 = vpop.permute.xlu0 %1939
      %1941 = vrot.lane.b32.xlu0 %v978, 32
      %v1942 = vpop.permute.xlu0 %1941
      %1943 = vrot.lane.b32.xlu0 %v979, 32
      %v1944 = vpop.permute.xlu0 %1943
      %1945 = vrot.lane.b32.xlu0 %v980, 32
      %v1946 = vpop.permute.xlu0 %1945
      %1947 = vrot.lane.b32.xlu0 %v981, 32
      %v1948 = vpop.permute.xlu0 %1947
      %1949 = vrot.lane.b32.xlu0 %v982, 32
      %v1950 = vpop.permute.xlu0 %1949
      %1951 = vrot.lane.b32.xlu0 %v983, 32
      %v1952 = vpop.permute.xlu0 %1951
      %1953 = vrot.lane.b32.xlu0 %v984, 32
      %v1954 = vpop.permute.xlu0 %1953
      %1955 = vrot.lane.b32.xlu0 %v985, 32
      %v1956 = vpop.permute.xlu0 %1955
      %1957 = vrot.lane.b32.xlu0 %v986, 32
      %v1958 = vpop.permute.xlu0 %1957
      %1959 = vrot.lane.b32.xlu0 %v987, 32
      %v1960 = vpop.permute.xlu0 %1959
      %1961 = vrot.lane.b32.xlu0 %v988, 32
      %v1962 = vpop.permute.xlu0 %1961
      %1963 = vrot.lane.b32.xlu0 %v989, 32
      %v1964 = vpop.permute.xlu0 %1963
      %1965 = vrot.lane.b32.xlu0 %v990, 32
      %v1966 = vpop.permute.xlu0 %1965
      %1967 = vrot.lane.b32.xlu0 %v991, 32
      %v1968 = vpop.permute.xlu0 %1967
      %1969 = vrot.lane.b32.xlu0 %v992, 32
      %v1970 = vpop.permute.xlu0 %1969
      %1971 = vrot.lane.b32.xlu0 %v993, 32
      %v1972 = vpop.permute.xlu0 %1971
      %1973 = vrot.lane.b32.xlu0 %v994, 32
      %v1974 = vpop.permute.xlu0 %1973
      %1975 = vrot.lane.b32.xlu0 %v995, 32
      %v1976 = vpop.permute.xlu0 %1975
      %1977 = vrot.lane.b32.xlu0 %v996, 32
      %v1978 = vpop.permute.xlu0 %1977
      %1979 = vrot.lane.b32.xlu0 %v997, 32
      %v1980 = vpop.permute.xlu0 %1979
      %1981 = vrot.lane.b32.xlu0 %v998, 32
      %v1982 = vpop.permute.xlu0 %1981
      %1983 = vrot.lane.b32.xlu0 %v999, 32
      %v1984 = vpop.permute.xlu0 %1983
      %1985 = vrot.lane.b32.xlu0 %v1000, 32
      %v1986 = vpop.permute.xlu0 %1985
      %1987 = vrot.lane.b32.xlu0 %v1001, 32
      %v1988 = vpop.permute.xlu0 %1987
      %1989 = vrot.lane.b32.xlu0 %v1002, 32
      %v1990 = vpop.permute.xlu0 %1989
      %1991 = vrot.lane.b32.xlu0 %v1003, 32
      %v1992 = vpop.permute.xlu0 %1991
      %1993 = vrot.lane.b32.xlu0 %v1004, 32
      %v1994 = vpop.permute.xlu0 %1993
      %1995 = vrot.lane.b32.xlu0 %v1005, 32
      %v1996 = vpop.permute.xlu0 %1995
      %1997 = vrot.lane.b32.xlu0 %v1006, 32
      %v1998 = vpop.permute.xlu0 %1997
      %v2031 = vsel %vm523, %v718, %v1040
      %v2032 = vsel %vm523, %v719, %v1042
      %v2033 = vsel %vm523, %v720, %v1044
      %v2034 = vsel %vm523, %v721, %v1046
      %v2035 = vsel %vm523, %v722, %v1048
      %v2036 = vsel %vm523, %v723, %v1050
      %v2037 = vsel %vm523, %v724, %v1052
      %v2038 = vsel %vm523, %v725, %v1054
      %v2039 = vsel %vm523, %v726, %v1056
      %v2040 = vsel %vm523, %v727, %v1058
      %v2041 = vsel %vm523, %v728, %v1060
      %v2042 = vsel %vm523, %v729, %v1062
      %v2043 = vsel %vm523, %v730, %v1064
      %v2044 = vsel %vm523, %v731, %v1066
      %v2045 = vsel %vm523, %v732, %v1068
      %v2046 = vsel %vm523, %v733, %v1070
      %v2047 = vsel %vm523, %v734, %v1072
      %v2048 = vsel %vm523, %v735, %v1074
      %v2049 = vsel %vm523, %v736, %v1076
      %v2050 = vsel %vm523, %v737, %v1078
      %v2051 = vsel %vm523, %v738, %v1080
      %v2052 = vsel %vm523, %v739, %v1082
      %v2053 = vsel %vm523, %v740, %v1084
      %v2054 = vsel %vm523, %v741, %v1086
      %v2055 = vsel %vm523, %v742, %v1088
      %v2056 = vsel %vm523, %v743, %v1090
      %v2057 = vsel %vm523, %v744, %v1092
      %v2058 = vsel %vm523, %v745, %v1094
      %v2059 = vsel %vm523, %v746, %v1096
      %v2060 = vsel %vm523, %v747, %v1098
      %v2061 = vsel %vm523, %v748, %v1100
      %v2062 = vsel %vm523, %v749, %v1102
      %vm2063 = vcmask 64512
      %v2064 = vsel %vm2063, %v2031, %v1168
      %v2065 = vsel %vm2063, %v2032, %v1170
      %v2066 = vsel %vm2063, %v2033, %v1172
      %v2067 = vsel %vm2063, %v2034, %v1174
      %v2068 = vsel %vm2063, %v2035, %v1176
      %v2069 = vsel %vm2063, %v2036, %v1178
      %v2070 = vsel %vm2063, %v2037, %v1180
      %v2071 = vsel %vm2063, %v2038, %v1182
      %v2072 = vsel %vm2063, %v2039, %v1184
      %v2073 = vsel %vm2063, %v2040, %v1186
      %v2074 = vsel %vm2063, %v2041, %v1188
      %v2075 = vsel %vm2063, %v2042, %v1190
      %v2076 = vsel %vm2063, %v2043, %v1192
      %v2077 = vsel %vm2063, %v2044, %v1194
      %v2078 = vsel %vm2063, %v2045, %v1196
      %v2079 = vsel %vm2063, %v2046, %v1198
      %v2080 = vsel %vm2063, %v2047, %v1200
      %v2081 = vsel %vm2063, %v2048, %v1202
      %v2082 = vsel %vm2063, %v2049, %v1204
      %v2083 = vsel %vm2063, %v2050, %v1206
      %v2084 = vsel %vm2063, %v2051, %v1208
      %v2085 = vsel %vm2063, %v2052, %v1210
      %v2086 = vsel %vm2063, %v2053, %v1212
      %v2087 = vsel %vm2063, %v2054, %v1214
      %v2088 = vsel %vm2063, %v2055, %v1216
      %v2089 = vsel %vm2063, %v2056, %v1218
      %v2090 = vsel %vm2063, %v2057, %v1220
      %v2091 = vsel %vm2063, %v2058, %v1222
      %v2092 = vsel %vm2063, %v2059, %v1224
      %v2093 = vsel %vm2063, %v2060, %v1226
      %v2094 = vsel %vm2063, %v2061, %v1228
      %v2095 = vsel %vm2063, %v2062, %v1230
      %vm2096 = vcmask 97280
      %v2097 = vsel %vm2096, %v2064, %v1296
      %v2098 = vsel %vm2096, %v2065, %v1298
      %v2099 = vsel %vm2096, %v2066, %v1300
      %v2100 = vsel %vm2096, %v2067, %v1302
      %v2101 = vsel %vm2096, %v2068, %v1304
      %v2102 = vsel %vm2096, %v2069, %v1306
      %v2103 = vsel %vm2096, %v2070, %v1308
      %v2104 = vsel %vm2096, %v2071, %v1310
      %v2105 = vsel %vm2096, %v2072, %v1312
      %v2106 = vsel %vm2096, %v2073, %v1314
      %v2107 = vsel %vm2096, %v2074, %v1316
      %v2108 = vsel %vm2096, %v2075, %v1318
      %v2109 = vsel %vm2096, %v2076, %v1320
      %v2110 = vsel %vm2096, %v2077, %v1322
      %v2111 = vsel %vm2096, %v2078, %v1324
      %v2112 = vsel %vm2096, %v2079, %v1326
      %v2113 = vsel %vm2096, %v2080, %v1328
      %v2114 = vsel %vm2096, %v2081, %v1330
      %v2115 = vsel %vm2096, %v2082, %v1332
      %v2116 = vsel %vm2096, %v2083, %v1334
      %v2117 = vsel %vm2096, %v2084, %v1336
      %v2118 = vsel %vm2096, %v2085, %v1338
      %v2119 = vsel %vm2096, %v2086, %v1340
      %v2120 = vsel %vm2096, %v2087, %v1342
      %v2121 = vsel %vm2096, %v2088, %v1344
      %v2122 = vsel %vm2096, %v2089, %v1346
      %v2123 = vsel %vm2096, %v2090, %v1348
      %v2124 = vsel %vm2096, %v2091, %v1350
      %v2125 = vsel %vm2096, %v2092, %v1352
      %v2126 = vsel %vm2096, %v2093, %v1354
      %v2127 = vsel %vm2096, %v2094, %v1356
      %v2128 = vsel %vm2096, %v2095, %v1358
      %vm2129 = vcmask 130048
      %v2130 = vsel %vm2129, %v2097, %v1424
      %v2131 = vsel %vm2129, %v2098, %v1426
      %v2132 = vsel %vm2129, %v2099, %v1428
      %v2133 = vsel %vm2129, %v2100, %v1430
      %v2134 = vsel %vm2129, %v2101, %v1432
      %v2135 = vsel %vm2129, %v2102, %v1434
      %v2136 = vsel %vm2129, %v2103, %v1436
      %v2137 = vsel %vm2129, %v2104, %v1438
      %v2138 = vsel %vm2129, %v2105, %v1440
      %v2139 = vsel %vm2129, %v2106, %v1442
      %v2140 = vsel %vm2129, %v2107, %v1444
      %v2141 = vsel %vm2129, %v2108, %v1446
      %v2142 = vsel %vm2129, %v2109, %v1448
      %v2143 = vsel %vm2129, %v2110, %v1450
      %v2144 = vsel %vm2129, %v2111, %v1452
      %v2145 = vsel %vm2129, %v2112, %v1454
      %v2146 = vsel %vm2129, %v2113, %v1456
      %v2147 = vsel %vm2129, %v2114, %v1458
      %v2148 = vsel %vm2129, %v2115, %v1460
      %v2149 = vsel %vm2129, %v2116, %v1462
      %v2150 = vsel %vm2129, %v2117, %v1464
      %v2151 = vsel %vm2129, %v2118, %v1466
      %v2152 = vsel %vm2129, %v2119, %v1468
      %v2153 = vsel %vm2129, %v2120, %v1470
      %v2154 = vsel %vm2129, %v2121, %v1472
      %v2155 = vsel %vm2129, %v2122, %v1474
      %v2156 = vsel %vm2129, %v2123, %v1476
      %v2157 = vsel %vm2129, %v2124, %v1478
      %v2158 = vsel %vm2129, %v2125, %v1480
      %v2159 = vsel %vm2129, %v2126, %v1482
      %v2160 = vsel %vm2129, %v2127, %v1484
      %v2161 = vsel %vm2129, %v2128, %v1486
      %vm2162 = vcmask 162816
      %v2163 = vsel %vm2162, %v2130, %v1552
      %v2164 = vsel %vm2162, %v2131, %v1554
      %v2165 = vsel %vm2162, %v2132, %v1556
      %v2166 = vsel %vm2162, %v2133, %v1558
      %v2167 = vsel %vm2162, %v2134, %v1560
      %v2168 = vsel %vm2162, %v2135, %v1562
      %v2169 = vsel %vm2162, %v2136, %v1564
      %v2170 = vsel %vm2162, %v2137, %v1566
      %v2171 = vsel %vm2162, %v2138, %v1568
      %v2172 = vsel %vm2162, %v2139, %v1570
      %v2173 = vsel %vm2162, %v2140, %v1572
      %v2174 = vsel %vm2162, %v2141, %v1574
      %v2175 = vsel %vm2162, %v2142, %v1576
      %v2176 = vsel %vm2162, %v2143, %v1578
      %v2177 = vsel %vm2162, %v2144, %v1580
      %v2178 = vsel %vm2162, %v2145, %v1582
      %v2179 = vsel %vm2162, %v2146, %v1584
      %v2180 = vsel %vm2162, %v2147, %v1586
      %v2181 = vsel %vm2162, %v2148, %v1588
      %v2182 = vsel %vm2162, %v2149, %v1590
      %v2183 = vsel %vm2162, %v2150, %v1592
      %v2184 = vsel %vm2162, %v2151, %v1594
      %v2185 = vsel %vm2162, %v2152, %v1596
      %v2186 = vsel %vm2162, %v2153, %v1598
      %v2187 = vsel %vm2162, %v2154, %v1600
      %v2188 = vsel %vm2162, %v2155, %v1602
      %v2189 = vsel %vm2162, %v2156, %v1604
      %v2190 = vsel %vm2162, %v2157, %v1606
      %v2191 = vsel %vm2162, %v2158, %v1608
      %v2192 = vsel %vm2162, %v2159, %v1610
      %v2193 = vsel %vm2162, %v2160, %v1612
      %v2194 = vsel %vm2162, %v2161, %v1614
      %vm2195 = vcmask 195584
      %v2196 = vsel %vm2195, %v2163, %v1680
      %v2197 = vsel %vm2195, %v2164, %v1682
      %v2198 = vsel %vm2195, %v2165, %v1684
      %v2199 = vsel %vm2195, %v2166, %v1686
      %v2200 = vsel %vm2195, %v2167, %v1688
      %v2201 = vsel %vm2195, %v2168, %v1690
      %v2202 = vsel %vm2195, %v2169, %v1692
      %v2203 = vsel %vm2195, %v2170, %v1694
      %v2204 = vsel %vm2195, %v2171, %v1696
      %v2205 = vsel %vm2195, %v2172, %v1698
      %v2206 = vsel %vm2195, %v2173, %v1700
      %v2207 = vsel %vm2195, %v2174, %v1702
      %v2208 = vsel %vm2195, %v2175, %v1704
      %v2209 = vsel %vm2195, %v2176, %v1706
      %v2210 = vsel %vm2195, %v2177, %v1708
      %v2211 = vsel %vm2195, %v2178, %v1710
      %v2212 = vsel %vm2195, %v2179, %v1712
      %v2213 = vsel %vm2195, %v2180, %v1714
      %v2214 = vsel %vm2195, %v2181, %v1716
      %v2215 = vsel %vm2195, %v2182, %v1718
      %v2216 = vsel %vm2195, %v2183, %v1720
      %v2217 = vsel %vm2195, %v2184, %v1722
      %v2218 = vsel %vm2195, %v2185, %v1724
      %v2219 = vsel %vm2195, %v2186, %v1726
      %v2220 = vsel %vm2195, %v2187, %v1728
      %v2221 = vsel %vm2195, %v2188, %v1730
      %v2222 = vsel %vm2195, %v2189, %v1732
      %v2223 = vsel %vm2195, %v2190, %v1734
      %v2224 = vsel %vm2195, %v2191, %v1736
      %v2225 = vsel %vm2195, %v2192, %v1738
      %v2226 = vsel %vm2195, %v2193, %v1740
      %v2227 = vsel %vm2195, %v2194, %v1742
      %vm2228 = vcmask 228352
      %v2229 = vsel %vm2228, %v2196, %v1808
      %v2230 = vsel %vm2228, %v2197, %v1810
      %v2231 = vsel %vm2228, %v2198, %v1812
      %v2232 = vsel %vm2228, %v2199, %v1814
      %v2233 = vsel %vm2228, %v2200, %v1816
      %v2234 = vsel %vm2228, %v2201, %v1818
      %v2235 = vsel %vm2228, %v2202, %v1820
      %v2236 = vsel %vm2228, %v2203, %v1822
      %v2237 = vsel %vm2228, %v2204, %v1824
      %v2238 = vsel %vm2228, %v2205, %v1826
      %v2239 = vsel %vm2228, %v2206, %v1828
      %v2240 = vsel %vm2228, %v2207, %v1830
      %v2241 = vsel %vm2228, %v2208, %v1832
      %v2242 = vsel %vm2228, %v2209, %v1834
      %v2243 = vsel %vm2228, %v2210, %v1836
      %v2244 = vsel %vm2228, %v2211, %v1838
      %v2245 = vsel %vm2228, %v2212, %v1840
      %v2246 = vsel %vm2228, %v2213, %v1842
      %v2247 = vsel %vm2228, %v2214, %v1844
      %v2248 = vsel %vm2228, %v2215, %v1846
      %v2249 = vsel %vm2228, %v2216, %v1848
      %v2250 = vsel %vm2228, %v2217, %v1850
      %v2251 = vsel %vm2228, %v2218, %v1852
      %v2252 = vsel %vm2228, %v2219, %v1854
      %v2253 = vsel %vm2228, %v2220, %v1856
      %v2254 = vsel %vm2228, %v2221, %v1858
      %v2255 = vsel %vm2228, %v2222, %v1860
      %v2256 = vsel %vm2228, %v2223, %v1862
      %v2257 = vsel %vm2228, %v2224, %v1864
      %v2258 = vsel %vm2228, %v2225, %v1866
      %v2259 = vsel %vm2228, %v2226, %v1868
      %v2260 = vsel %vm2228, %v2227, %v1870
      %vm2261 = vcmask 261120
      %v2262 = vsel %vm2261, %v2229, %v1936
      %v2263 = vsel %vm2261, %v2230, %v1938
      %v2264 = vsel %vm2261, %v2231, %v1940
      %v2265 = vsel %vm2261, %v2232, %v1942
      %v2266 = vsel %vm2261, %v2233, %v1944
      %v2267 = vsel %vm2261, %v2234, %v1946
      %v2268 = vsel %vm2261, %v2235, %v1948
      %v2269 = vsel %vm2261, %v2236, %v1950
      %v2270 = vsel %vm2261, %v2237, %v1952
      %v2271 = vsel %vm2261, %v2238, %v1954
      %v2272 = vsel %vm2261, %v2239, %v1956
      %v2273 = vsel %vm2261, %v2240, %v1958
      %v2274 = vsel %vm2261, %v2241, %v1960
      %v2275 = vsel %vm2261, %v2242, %v1962
      %v2276 = vsel %vm2261, %v2243, %v1964
      %v2277 = vsel %vm2261, %v2244, %v1966
      %v2278 = vsel %vm2261, %v2245, %v1968
      %v2279 = vsel %vm2261, %v2246, %v1970
      %v2280 = vsel %vm2261, %v2247, %v1972
      %v2281 = vsel %vm2261, %v2248, %v1974
      %v2282 = vsel %vm2261, %v2249, %v1976
      %v2283 = vsel %vm2261, %v2250, %v1978
      %v2284 = vsel %vm2261, %v2251, %v1980
      %v2285 = vsel %vm2261, %v2252, %v1982
      %v2286 = vsel %vm2261, %v2253, %v1984
      %v2287 = vsel %vm2261, %v2254, %v1986
      %v2288 = vsel %vm2261, %v2255, %v1988
      %v2289 = vsel %vm2261, %v2256, %v1990
      %v2290 = vsel %vm2261, %v2257, %v1992
      %v2291 = vsel %vm2261, %v2258, %v1994
      %v2292 = vsel %vm2261, %v2259, %v1996
      %v2293 = vsel %vm2261, %v2260, %v1998
      %v2294 = vld [vmem:[%s4] sm:$0xf]
      %v2295 = vld [vmem:[%s4 + $0x4] sm:$0xf]
      %v2296 = vld [vmem:[%s4 + $0x8] sm:$0xf]
      %v2297 = vld [vmem:[%s4 + $0xc] sm:$0xf]
      %v2298 = vld [vmem:[%s4 + $0x10] sm:$0xf]
      %v2299 = vld [vmem:[%s4 + $0x14] sm:$0xf]
      %v2300 = vld [vmem:[%s4 + $0x18] sm:$0xf]
      %v2301 = vld [vmem:[%s4 + $0x1c] sm:$0xf]
      %v2302 = vld [vmem:[%s4 + $0x20] sm:$0xf]
      %v2312 = vcombine.low %v2294, %v2295
      %v2313 = vcombine.low %v2296, %v2297
      %v2314 = vcombine.low %v2298, %v2299
      %v2315 = vcombine.low %v2300, %v2301
      %vm2320 = vcmask 293888
      %v2322 = vsel %vm2320, %v2262, 0
      %v2325 = vsel %vm2320, %v2263, 0
      %v2328 = vsel %vm2320, %v2264, 0
      %v2331 = vsel %vm2320, %v2265, 0
      %v2334 = vsel %vm2320, %v2266, 0
      %v2337 = vsel %vm2320, %v2267, 0
      %v2340 = vsel %vm2320, %v2268, 0
      %v2343 = vsel %vm2320, %v2269, 0
      %v2346 = vsel %vm2320, %v2270, 0
      %v2349 = vsel %vm2320, %v2271, 0
      %v2352 = vsel %vm2320, %v2272, 0
      %v2355 = vsel %vm2320, %v2273, 0
      %v2358 = vsel %vm2320, %v2274, 0
      %v2361 = vsel %vm2320, %v2275, 0
      %v2364 = vsel %vm2320, %v2276, 0
      %v2367 = vsel %vm2320, %v2277, 0
      %v2370 = vsel %vm2320, %v2278, 0
      %v2373 = vsel %vm2320, %v2279, 0
      %v2376 = vsel %vm2320, %v2280, 0
      %v2379 = vsel %vm2320, %v2281, 0
      %v2382 = vsel %vm2320, %v2282, 0
      %v2385 = vsel %vm2320, %v2283, 0
      %v2388 = vsel %vm2320, %v2284, 0
      %v2391 = vsel %vm2320, %v2285, 0
      %v2394 = vsel %vm2320, %v2286, 0
      %v2397 = vsel %vm2320, %v2287, 0
      %v2400 = vsel %vm2320, %v2288, 0
      %v2403 = vsel %vm2320, %v2289, 0
      %v2406 = vsel %vm2320, %v2290, 0
      %v2409 = vsel %vm2320, %v2291, 0
      %v2412 = vsel %vm2320, %v2292, 0
      %v2415 = vsel %vm2320, %v2293, 0
      %vm2417 = vcmask 1043456
      %v2418 = vsel %vm2417, %v2302, 0
      %2420 = vmatprep.subr.mxu0 0.0
      %2421 = vmatpush1.msra.mxu0 %v2312
      %2422 = vmatprep.subr.mxu0 0.0
      %2423 = vmatpush1.msra.mxu0 %v2313
      %2424 = vmatprep.subr.mxu0 0.0
      %2425 = vmatpush1.msra.mxu0 %v2314
      %2426 = vmatprep.subr.mxu0 0.0
      %2427 = vmatpush1.msra.mxu0 %v2315
      %2428 = vmatprep.subr.mxu0 0.0
      %2429 = vmatpush1.msra.mxu0 %v2418
      %2430 = vmatprep.subr.mxu0 0.0
      %2431 = vmatpush1.msra.mxu0 0.0
      %2432 = vmatprep.subr.mxu0 0.0
      %2433 = vmatpush1.msra.mxu0 0.0
      %2434 = vmatprep.subr.mxu0 0.0
      %2435 = vmatpush1.msra.mxu0 0.0
      %2436 = vmatprep.subr.mxu0 0.0
      %2437 = vmatpush1.msra.mxu0 0.0
      %2438 = vmatprep.subr.mxu0 0.0
      %2439 = vmatpush1.msra.mxu0 0.0
      %2440 = vmatprep.subr.mxu0 0.0
      %2441 = vmatpush1.msra.mxu0 0.0
      %2442 = vmatprep.subr.mxu0 0.0
      %2443 = vmatpush1.msra.mxu0 0.0
      %2444 = vmatprep.subr.mxu0 0.0
      %2445 = vmatpush1.msra.mxu0 0.0
      %2446 = vmatprep.subr.mxu0 0.0
      %2447 = vmatpush1.msra.mxu0 0.0
      %2448 = vmatprep.subr.mxu0 0.0
      %2449 = vmatpush1.msra.mxu0 0.0
      %2450 = vmatprep.subr.mxu0 0.0
      %2451 = vmatpush1.msra.mxu0 0.0
      %2452 = vmatprep.subr.mxu0 0.0
      %2453 = vmatpush1.msra.mxu0 0.0
      %2454 = vmatprep.subr.mxu0 0.0
      %2455 = vmatpush1.msra.mxu0 0.0
      %2456 = vmatprep.subr.mxu0 0.0
      %2457 = vmatpush1.msra.mxu0 0.0
      %2458 = vmatprep.subr.mxu0 0.0
      %2459 = vmatpush1.msra.mxu0 0.0
      %2460 = vmatprep.subr.mxu0 0.0
      %2461 = vmatpush1.msra.mxu0 0.0
      %2462 = vmatprep.subr.mxu0 0.0
      %2463 = vmatpush1.msra.mxu0 0.0
      %2464 = vmatprep.subr.mxu0 0.0
      %2465 = vmatpush1.msra.mxu0 0.0
      %2466 = vmatprep.subr.mxu0 0.0
      %2467 = vmatpush1.msra.mxu0 0.0
      %2468 = vmatprep.subr.mxu0 0.0
      %2469 = vmatpush1.msra.mxu0 0.0
      %2470 = vmatprep.subr.mxu0 0.0
      %2471 = vmatpush1.msra.mxu0 0.0
      %2472 = vmatprep.subr.mxu0 0.0
      %2473 = vmatpush1.msra.mxu0 0.0
      %2474 = vmatprep.subr.mxu0 0.0
      %2475 = vmatpush1.msra.mxu0 0.0
      %2476 = vmatprep.subr.mxu0 0.0
      %2477 = vmatpush1.msra.mxu0 0.0
      %2478 = vmatprep.subr.mxu0 0.0
      %2479 = vmatpush1.msra.mxu0 0.0
      %2480 = vmatprep.subr.mxu0 0.0
      %2481 = vmatpush1.msra.mxu0 0.0
      %2482 = vmatprep.subr.mxu0 0.0
      %2483 = vmatpush1.msra.mxu0 0.0
      %2484 = vmatprep.mubr.f32.mxu0 0.0
      %2485 = vmatmul.mubr.f32.gmra.mrb[0].mxu0 %v2322
      %v2486 = vpop.f32.mrb[0].mxu0
      %v2487 = vadd.f32 0.0, %v2486
      %v2488 = vpop.f32.mrb[0].mxu0
      %2489 = vmatprep.mubr.f32.mxu0 0.0
      %2490 = vmatmul.mubr.f32.gmra.mrb[0].mxu0 %v2325
      %v2491 = vpop.f32.mrb[0].mxu0
      %v2492 = vadd.f32 0.0, %v2491
      %v2493 = vpop.f32.mrb[0].mxu0
      %2494 = vmatprep.mubr.f32.mxu0 0.0
      %2495 = vmatmul.mubr.f32.gmra.mrb[0].mxu0 %v2328
      %v2496 = vpop.f32.mrb[0].mxu0
      %v2497 = vadd.f32 0.0, %v2496
      %v2498 = vpop.f32.mrb[0].mxu0
      %2499 = vmatprep.mubr.f32.mxu0 0.0
      %2500 = vmatmul.mubr.f32.gmra.mrb[0].mxu0 %v2331
      %v2501 = vpop.f32.mrb[0].mxu0
      %v2502 = vadd.f32 0.0, %v2501
      %v2503 = vpop.f32.mrb[0].mxu0
      %2504 = vmatprep.mubr.f32.mxu0 0.0
      %2505 = vmatmul.mubr.f32.gmra.mrb[0].mxu0 %v2334
      %v2506 = vpop.f32.mrb[0].mxu0
      %v2507 = vadd.f32 0.0, %v2506
      %v2508 = vpop.f32.mrb[0].mxu0
      %2509 = vmatprep.mubr.f32.mxu0 0.0
      %2510 = vmatmul.mubr.f32.gmra.mrb[0].mxu0 %v2337
      %v2511 = vpop.f32.mrb[0].mxu0
      %v2512 = vadd.f32 0.0, %v2511
      %v2513 = vpop.f32.mrb[0].mxu0
      %2514 = vmatprep.mubr.f32.mxu0 0.0
      %2515 = vmatmul.mubr.f32.gmra.mrb[0].mxu0 %v2340
      %v2516 = vpop.f32.mrb[0].mxu0
      %v2517 = vadd.f32 0.0, %v2516
      %v2518 = vpop.f32.mrb[0].mxu0
      %2519 = vmatprep.mubr.f32.mxu0 0.0
      %2520 = vmatmul.mubr.f32.gmra.mrb[0].mxu0 %v2343
      %v2521 = vpop.f32.mrb[0].mxu0
      %v2522 = vadd.f32 0.0, %v2521
      %v2523 = vpop.f32.mrb[0].mxu0
      %2524 = vmatprep.mubr.f32.mxu0 0.0
      %2525 = vmatmul.mubr.f32.gmra.mrb[0].mxu0 %v2346
      %v2526 = vpop.f32.mrb[0].mxu0
      %v2527 = vadd.f32 0.0, %v2526
      %v2528 = vpop.f32.mrb[0].mxu0
      %2529 = vmatprep.mubr.f32.mxu0 0.0
      %2530 = vmatmul.mubr.f32.gmra.mrb[0].mxu0 %v2349
      %v2531 = vpop.f32.mrb[0].mxu0
      %v2532 = vadd.f32 0.0, %v2531
      %v2533 = vpop.f32.mrb[0].mxu0
      %2534 = vmatprep.mubr.f32.mxu0 0.0
      %2535 = vmatmul.mubr.f32.gmra.mrb[0].mxu0 %v2352
      %v2536 = vpop.f32.mrb[0].mxu0
      %v2537 = vadd.f32 0.0, %v2536
      %v2538 = vpop.f32.mrb[0].mxu0
      %2539 = vmatprep.mubr.f32.mxu0 0.0
      %2540 = vmatmul.mubr.f32.gmra.mrb[0].mxu0 %v2355
      %v2541 = vpop.f32.mrb[0].mxu0
      %v2542 = vadd.f32 0.0, %v2541
      %v2543 = vpop.f32.mrb[0].mxu0
      %2544 = vmatprep.mubr.f32.mxu0 0.0
      %2545 = vmatmul.mubr.f32.gmra.mrb[0].mxu0 %v2358
      %v2546 = vpop.f32.mrb[0].mxu0
      %v2547 = vadd.f32 0.0, %v2546
      %v2548 = vpop.f32.mrb[0].mxu0
      %2549 = vmatprep.mubr.f32.mxu0 0.0
      %2550 = vmatmul.mubr.f32.gmra.mrb[0].mxu0 %v2361
      %v2551 = vpop.f32.mrb[0].mxu0
      %v2552 = vadd.f32 0.0, %v2551
      %v2553 = vpop.f32.mrb[0].mxu0
      %2554 = vmatprep.mubr.f32.mxu0 0.0
      %2555 = vmatmul.mubr.f32.gmra.mrb[0].mxu0 %v2364
      %v2556 = vpop.f32.mrb[0].mxu0
      %v2557 = vadd.f32 0.0, %v2556
      %v2558 = vpop.f32.mrb[0].mxu0
      %2559 = vmatprep.mubr.f32.mxu0 0.0
      %2560 = vmatmul.mubr.f32.gmra.mrb[0].mxu0 %v2367
      %v2561 = vpop.f32.mrb[0].mxu0
      %v2562 = vadd.f32 0.0, %v2561
      %v2563 = vpop.f32.mrb[0].mxu0
      %2564 = vmatprep.mubr.f32.mxu0 0.0
      %2565 = vmatmul.mubr.f32.gmra.mrb[0].mxu0 %v2370
      %v2566 = vpop.f32.mrb[0].mxu0
      %v2567 = vadd.f32 0.0, %v2566
      %v2568 = vpop.f32.mrb[0].mxu0
      %2569 = vmatprep.mubr.f32.mxu0 0.0
      %2570 = vmatmul.mubr.f32.gmra.mrb[0].mxu0 %v2373
      %v2571 = vpop.f32.mrb[0].mxu0
      %v2572 = vadd.f32 0.0, %v2571
      %v2573 = vpop.f32.mrb[0].mxu0
      %2574 = vmatprep.mubr.f32.mxu0 0.0
      %2575 = vmatmul.mubr.f32.gmra.mrb[0].mxu0 %v2376
      %v2576 = vpop.f32.mrb[0].mxu0
      %v2577 = vadd.f32 0.0, %v2576
      %v2578 = vpop.f32.mrb[0].mxu0
      %2579 = vmatprep.mubr.f32.mxu0 0.0
      %2580 = vmatmul.mubr.f32.gmra.mrb[0].mxu0 %v2379
      %v2581 = vpop.f32.mrb[0].mxu0
      %v2582 = vadd.f32 0.0, %v2581
      %v2583 = vpop.f32.mrb[0].mxu0
      %2584 = vmatprep.mubr.f32.mxu0 0.0
      %2585 = vmatmul.mubr.f32.gmra.mrb[0].mxu0 %v2382
      %v2586 = vpop.f32.mrb[0].mxu0
      %v2587 = vadd.f32 0.0, %v2586
      %v2588 = vpop.f32.mrb[0].mxu0
      %2589 = vmatprep.mubr.f32.mxu0 0.0
      %2590 = vmatmul.mubr.f32.gmra.mrb[0].mxu0 %v2385
      %v2591 = vpop.f32.mrb[0].mxu0
      %v2592 = vadd.f32 0.0, %v2591
      %v2593 = vpop.f32.mrb[0].mxu0
      %2594 = vmatprep.mubr.f32.mxu0 0.0
      %2595 = vmatmul.mubr.f32.gmra.mrb[0].mxu0 %v2388
      %v2596 = vpop.f32.mrb[0].mxu0
      %v2597 = vadd.f32 0.0, %v2596
      %v2598 = vpop.f32.mrb[0].mxu0
      %2599 = vmatprep.mubr.f32.mxu0 0.0
      %2600 = vmatmul.mubr.f32.gmra.mrb[0].mxu0 %v2391
      %v2601 = vpop.f32.mrb[0].mxu0
      %v2602 = vadd.f32 0.0, %v2601
      %v2603 = vpop.f32.mrb[0].mxu0
      %2604 = vmatprep.mubr.f32.mxu0 0.0
      %2605 = vmatmul.mubr.f32.gmra.mrb[0].mxu0 %v2394
      %v2606 = vpop.f32.mrb[0].mxu0
      %v2607 = vadd.f32 0.0, %v2606
      %v2608 = vpop.f32.mrb[0].mxu0
      %2609 = vmatprep.mubr.f32.mxu0 0.0
      %2610 = vmatmul.mubr.f32.gmra.mrb[0].mxu0 %v2397
      %v2611 = vpop.f32.mrb[0].mxu0
      %v2612 = vadd.f32 0.0, %v2611
      %v2613 = vpop.f32.mrb[0].mxu0
      %2614 = vmatprep.mubr.f32.mxu0 0.0
      %2615 = vmatmul.mubr.f32.gmra.mrb[0].mxu0 %v2400
      %v2616 = vpop.f32.mrb[0].mxu0
      %v2617 = vadd.f32 0.0, %v2616
      %v2618 = vpop.f32.mrb[0].mxu0
      %2619 = vmatprep.mubr.f32.mxu0 0.0
      %2620 = vmatmul.mubr.f32.gmra.mrb[0].mxu0 %v2403
      %v2621 = vpop.f32.mrb[0].mxu0
      %v2622 = vadd.f32 0.0, %v2621
      %v2623 = vpop.f32.mrb[0].mxu0
      %2624 = vmatprep.mubr.f32.mxu0 0.0
      %2625 = vmatmul.mubr.f32.gmra.mrb[0].mxu0 %v2406
      %v2626 = vpop.f32.mrb[0].mxu0
      %v2627 = vadd.f32 0.0, %v2626
      %v2628 = vpop.f32.mrb[0].mxu0
      %2629 = vmatprep.mubr.f32.mxu0 0.0
      %2630 = vmatmul.mubr.f32.gmra.mrb[0].mxu0 %v2409
      %v2631 = vpop.f32.mrb[0].mxu0
      %v2632 = vadd.f32 0.0, %v2631
      %v2633 = vpop.f32.mrb[0].mxu0
      %2634 = vmatprep.mubr.f32.mxu0 0.0
      %2635 = vmatmul.mubr.f32.gmra.mrb[0].mxu0 %v2412
      %v2636 = vpop.f32.mrb[0].mxu0
      %v2637 = vadd.f32 0.0, %v2636
      %v2638 = vpop.f32.mrb[0].mxu0
      %2639 = vmatprep.mubr.f32.mxu0 0.0
      %2640 = vmatmul.mubr.f32.gmra.mrb[0].mxu0 %v2415
      %v2641 = vpop.f32.mrb[0].mxu0
      %v2642 = vadd.f32 0.0, %v2641
      %v2643 = vpop.f32.mrb[0].mxu0
      %2644 = vdwg.mxu0
      %2645 = vst.msk [vmem:[%s440] sm:$0xff] %vm523, %v2487
      %2646 = vst.msk [vmem:[%s440 + $0x8] sm:$0xff] %vm523, %v2492
      %2647 = vst.msk [vmem:[%s440 + $0x10] sm:$0xff] %vm523, %v2497
      %2648 = vst.msk [vmem:[%s440 + $0x18] sm:$0xff] %vm523, %v2502
      %2649 = vst.msk [vmem:[%s440 + $0x20] sm:$0xff] %vm523, %v2507
      %2650 = vst.msk [vmem:[%s440 + $0x28] sm:$0xff] %vm523, %v2512
      %2651 = vst.msk [vmem:[%s440 + $0x30] sm:$0xff] %vm523, %v2517
      %2652 = vst.msk [vmem:[%s440 + $0x38] sm:$0xff] %vm523, %v2522
      %2653 = vst.msk [vmem:[%s440 + $0x40] sm:$0xff] %vm523, %v2527
      %2654 = vst.msk [vmem:[%s440 + $0x48] sm:$0xff] %vm523, %v2532
      %2655 = vst.msk [vmem:[%s440 + $0x50] sm:$0xff] %vm523, %v2537
      %2656 = vst.msk [vmem:[%s440 + $0x58] sm:$0xff] %vm523, %v2542
      %2657 = vst.msk [vmem:[%s440 + $0x60] sm:$0xff] %vm523, %v2547
      %2658 = vst.msk [vmem:[%s440 + $0x68] sm:$0xff] %vm523, %v2552
      %2659 = vst.msk [vmem:[%s440 + $0x70] sm:$0xff] %vm523, %v2557
      %2660 = vst.msk [vmem:[%s440 + $0x78] sm:$0xff] %vm523, %v2562
      %2661 = vst.msk [vmem:[%s440 + $0x80] sm:$0xff] %vm523, %v2567
      %2662 = vst.msk [vmem:[%s440 + $0x88] sm:$0xff] %vm523, %v2572
      %2663 = vst.msk [vmem:[%s440 + $0x90] sm:$0xff] %vm523, %v2577
      %2664 = vst.msk [vmem:[%s440 + $0x98] sm:$0xff] %vm523, %v2582
      %2665 = vst.msk [vmem:[%s440 + $0xa0] sm:$0xff] %vm523, %v2587
      %2666 = vst.msk [vmem:[%s440 + $0xa8] sm:$0xff] %vm523, %v2592
      %2667 = vst.msk [vmem:[%s440 + $0xb0] sm:$0xff] %vm523, %v2597
      %2668 = vst.msk [vmem:[%s440 + $0xb8] sm:$0xff] %vm523, %v2602
      %2669 = vst.msk [vmem:[%s440 + $0xc0] sm:$0xff] %vm523, %v2607
      %2670 = vst.msk [vmem:[%s440 + $0xc8] sm:$0xff] %vm523, %v2612
      %2671 = vst.msk [vmem:[%s440 + $0xd0] sm:$0xff] %vm523, %v2617
      %2672 = vst.msk [vmem:[%s440 + $0xd8] sm:$0xff] %vm523, %v2622
      %2673 = vst.msk [vmem:[%s440 + $0xe0] sm:$0xff] %vm523, %v2627
      %2674 = vst.msk [vmem:[%s440 + $0xe8] sm:$0xff] %vm523, %v2632
      %2675 = vst.msk [vmem:[%s440 + $0xf0] sm:$0xff] %vm523, %v2637
      %2676 = vst.msk [vmem:[%s440 + $0xf8] sm:$0xff] %vm523, %v2642
      %v2677 = vsel %vm523, %v2487, 0.0
      %v2678 = vsel %vm523, %v2492, 0.0
      %v2679 = vadd.f32 %v2677, %v2678
      %v2680 = vsel %vm523, %v2497, 0.0
      %v2681 = vadd.f32 %v2679, %v2680
      %v2682 = vsel %vm523, %v2502, 0.0
      %v2683 = vadd.f32 %v2681, %v2682
      %v2684 = vsel %vm523, %v2507, 0.0
      %v2685 = vadd.f32 %v2683, %v2684
      %v2686 = vsel %vm523, %v2512, 0.0
      %v2687 = vadd.f32 %v2685, %v2686
      %v2688 = vsel %vm523, %v2517, 0.0
      %v2689 = vadd.f32 %v2687, %v2688
      %v2690 = vsel %vm523, %v2522, 0.0
      %v2691 = vadd.f32 %v2689, %v2690
      %v2692 = vsel %vm523, %v2527, 0.0
      %v2693 = vadd.f32 %v2691, %v2692
      %v2694 = vsel %vm523, %v2532, 0.0
      %v2695 = vadd.f32 %v2693, %v2694
      %v2696 = vsel %vm523, %v2537, 0.0
      %v2697 = vadd.f32 %v2695, %v2696
      %v2698 = vsel %vm523, %v2542, 0.0
      %v2699 = vadd.f32 %v2697, %v2698
      %v2700 = vsel %vm523, %v2547, 0.0
      %v2701 = vadd.f32 %v2699, %v2700
      %v2702 = vsel %vm523, %v2552, 0.0
      %v2703 = vadd.f32 %v2701, %v2702
      %v2704 = vsel %vm523, %v2557, 0.0
      %v2705 = vadd.f32 %v2703, %v2704
      %v2706 = vsel %vm523, %v2562, 0.0
      %v2707 = vadd.f32 %v2705, %v2706
      %v2708 = vsel %vm523, %v2567, 0.0
      %v2709 = vadd.f32 %v2707, %v2708
      %v2710 = vsel %vm523, %v2572, 0.0
      %v2711 = vadd.f32 %v2709, %v2710
      %v2712 = vsel %vm523, %v2577, 0.0
      %v2713 = vadd.f32 %v2711, %v2712
      %v2714 = vsel %vm523, %v2582, 0.0
      %v2715 = vadd.f32 %v2713, %v2714
      %v2716 = vsel %vm523, %v2587, 0.0
      %v2717 = vadd.f32 %v2715, %v2716
      %v2718 = vsel %vm523, %v2592, 0.0
      %v2719 = vadd.f32 %v2717, %v2718
      %v2720 = vsel %vm523, %v2597, 0.0
      %v2721 = vadd.f32 %v2719, %v2720
      %v2722 = vsel %vm523, %v2602, 0.0
      %v2723 = vadd.f32 %v2721, %v2722
      %v2724 = vsel %vm523, %v2607, 0.0
      %v2725 = vadd.f32 %v2723, %v2724
      %v2726 = vsel %vm523, %v2612, 0.0
      %v2727 = vadd.f32 %v2725, %v2726
      %v2728 = vsel %vm523, %v2617, 0.0
      %v2729 = vadd.f32 %v2727, %v2728
      %v2730 = vsel %vm523, %v2622, 0.0
      %v2731 = vadd.f32 %v2729, %v2730
      %v2732 = vsel %vm523, %v2627, 0.0
      %v2733 = vadd.f32 %v2731, %v2732
      %v2734 = vsel %vm523, %v2632, 0.0
      %v2735 = vadd.f32 %v2733, %v2734
      %v2736 = vsel %vm523, %v2637, 0.0
      %v2737 = vadd.f32 %v2735, %v2736
      %v2738 = vsel %vm523, %v2642, 0.0
      %v2739 = vadd.f32 %v2737, %v2738
      %v2740 = vrot.slane %v2739, 4
      %v2741 = vadd.f32 %v2739, %v2740
      %v2742 = vrot.slane %v2741, 2
      %v2743 = vadd.f32 %v2741, %v2742
      %v2744 = vrot.slane %v2743, 1
      %v2745 = vadd.f32 %v2743, %v2744
      %v2746 = vmul.f32 %v2487, %v2487
      %v2747 = vmul.f32 %v2492, %v2492
      %v2748 = vmul.f32 %v2497, %v2497
      %v2749 = vmul.f32 %v2502, %v2502
      %v2750 = vmul.f32 %v2507, %v2507
      %v2751 = vmul.f32 %v2512, %v2512
      %v2752 = vmul.f32 %v2517, %v2517
      %v2753 = vmul.f32 %v2522, %v2522
      %v2754 = vmul.f32 %v2527, %v2527
      %v2755 = vmul.f32 %v2532, %v2532
      %v2756 = vmul.f32 %v2537, %v2537
      %v2757 = vmul.f32 %v2542, %v2542
      %v2758 = vmul.f32 %v2547, %v2547
      %v2759 = vmul.f32 %v2552, %v2552
      %v2760 = vmul.f32 %v2557, %v2557
      %v2761 = vmul.f32 %v2562, %v2562
      %v2762 = vmul.f32 %v2567, %v2567
      %v2763 = vmul.f32 %v2572, %v2572
      %v2764 = vmul.f32 %v2577, %v2577
      %v2765 = vmul.f32 %v2582, %v2582
      %v2766 = vmul.f32 %v2587, %v2587
      %v2767 = vmul.f32 %v2592, %v2592
      %v2768 = vmul.f32 %v2597, %v2597
      %v2769 = vmul.f32 %v2602, %v2602
      %v2770 = vmul.f32 %v2607, %v2607
      %v2771 = vmul.f32 %v2612, %v2612
      %v2772 = vmul.f32 %v2617, %v2617
      %v2773 = vmul.f32 %v2622, %v2622
      %v2774 = vmul.f32 %v2627, %v2627
      %v2775 = vmul.f32 %v2632, %v2632
      %v2776 = vmul.f32 %v2637, %v2637
      %v2777 = vmul.f32 %v2642, %v2642
      %v2778 = vsel %vm523, %v2746, 0.0
      %v2779 = vsel %vm523, %v2747, 0.0
      %v2780 = vadd.f32 %v2778, %v2779
      %v2781 = vsel %vm523, %v2748, 0.0
      %v2782 = vadd.f32 %v2780, %v2781
      %v2783 = vsel %vm523, %v2749, 0.0
      %v2784 = vadd.f32 %v2782, %v2783
      %v2785 = vsel %vm523, %v2750, 0.0
      %v2786 = vadd.f32 %v2784, %v2785
      %v2787 = vsel %vm523, %v2751, 0.0
      %v2788 = vadd.f32 %v2786, %v2787
      %v2789 = vsel %vm523, %v2752, 0.0
      %v2790 = vadd.f32 %v2788, %v2789
      %v2791 = vsel %vm523, %v2753, 0.0
      %v2792 = vadd.f32 %v2790, %v2791
      %v2793 = vsel %vm523, %v2754, 0.0
      %v2794 = vadd.f32 %v2792, %v2793
      %v2795 = vsel %vm523, %v2755, 0.0
      %v2796 = vadd.f32 %v2794, %v2795
      %v2797 = vsel %vm523, %v2756, 0.0
      %v2798 = vadd.f32 %v2796, %v2797
      %v2799 = vsel %vm523, %v2757, 0.0
      %v2800 = vadd.f32 %v2798, %v2799
      %v2801 = vsel %vm523, %v2758, 0.0
      %v2802 = vadd.f32 %v2800, %v2801
      %v2803 = vsel %vm523, %v2759, 0.0
      %v2804 = vadd.f32 %v2802, %v2803
      %v2805 = vsel %vm523, %v2760, 0.0
      %v2806 = vadd.f32 %v2804, %v2805
      %v2807 = vsel %vm523, %v2761, 0.0
      %v2808 = vadd.f32 %v2806, %v2807
      %v2809 = vsel %vm523, %v2762, 0.0
      %v2810 = vadd.f32 %v2808, %v2809
      %v2811 = vsel %vm523, %v2763, 0.0
      %v2812 = vadd.f32 %v2810, %v2811
      %v2813 = vsel %vm523, %v2764, 0.0
      %v2814 = vadd.f32 %v2812, %v2813
      %v2815 = vsel %vm523, %v2765, 0.0
      %v2816 = vadd.f32 %v2814, %v2815
      %v2817 = vsel %vm523, %v2766, 0.0
      %v2818 = vadd.f32 %v2816, %v2817
      %v2819 = vsel %vm523, %v2767, 0.0
      %v2820 = vadd.f32 %v2818, %v2819
      %v2821 = vsel %vm523, %v2768, 0.0
      %v2822 = vadd.f32 %v2820, %v2821
      %v2823 = vsel %vm523, %v2769, 0.0
      %v2824 = vadd.f32 %v2822, %v2823
      %v2825 = vsel %vm523, %v2770, 0.0
      %v2826 = vadd.f32 %v2824, %v2825
      %v2827 = vsel %vm523, %v2771, 0.0
      %v2828 = vadd.f32 %v2826, %v2827
      %v2829 = vsel %vm523, %v2772, 0.0
      %v2830 = vadd.f32 %v2828, %v2829
      %v2831 = vsel %vm523, %v2773, 0.0
      %v2832 = vadd.f32 %v2830, %v2831
      %v2833 = vsel %vm523, %v2774, 0.0
      %v2834 = vadd.f32 %v2832, %v2833
      %v2835 = vsel %vm523, %v2775, 0.0
      %v2836 = vadd.f32 %v2834, %v2835
      %v2837 = vsel %vm523, %v2776, 0.0
      %v2838 = vadd.f32 %v2836, %v2837
      %v2839 = vsel %vm523, %v2777, 0.0
      %v2840 = vadd.f32 %v2838, %v2839
      %v2841 = vrot.slane %v2840, 4
      %v2842 = vadd.f32 %v2840, %v2841
      %v2843 = vrot.slane %v2842, 2
      %v2844 = vadd.f32 %v2842, %v2843
      %v2845 = vrot.slane %v2844, 1
      %v2846 = vadd.f32 %v2844, %v2845
      %vm2847 = vcmask 1040384
      %v2848 = vsel %vm2847, %v2745, %v2846
      %2849 = vst.msk [vmem:[%s448] sm:$0x3] %vm450, %v2848
      %s2850 = smul.u32 16, %s23
      %p2851 = scmp.lt.s32.totalorder %s22, 1
      %s2852 = scalar_select %p2851, %s22, 1
      %p2853 = scmp.lt.s32.totalorder %s2850, 15
      %s2854 = scalar_select %p2853, %s2850, 15
      %s2855 = smul.addr %s2854, 2
      %s2856 = smul.addr %s2852, 32
      %s2857 = sadd.s32 %s2855, %s2856
      %s2858 = smul.addr %s2857, 8
      %s2859 = scalar_lea.vmem %s5, %s2858
      %p2860 = scmp.lt.s32.totalorder %s22, 1
      %s2861 = scalar_select %p2860, %s22, 1
      %p2862 = scmp.lt.s32.totalorder %s23, 0
      %s2863 = scalar_select %p2862, %s23, 0
      %s2864 = sadd.s32 %s2863, %s2861
      %s2865 = smul.addr %s2864, 2
      %s2866 = scalar_lea.vmem %s6, %s2865
      // Predicated region
      $region41: #{atrous_bottleneck_nhwc.5} parent=39 // pred_check
        %p2867 = pneg %p192
      $region42: #{atrous_bottleneck_nhwc.5} parent=39 // pred_check_branch
        %2869 = sbr.rel (%p2867) target = $region44
      $region43: #{atrous_bottleneck_nhwc.5} parent=39 // pred_region
        %s2870 = smul.u32 16, %s23
      $region44: #{atrous_bottleneck_nhwc.5} parent=39 // pred_fallthru
        _
      // Predicated region
      $region45: #{atrous_bottleneck_nhwc.5} parent=39 // pred_check
        %p2871 = pneg %p220
      $region46: #{atrous_bottleneck_nhwc.5} parent=39 // pred_check_branch
        %2873 = sbr.rel (%p2871) target = $region48
      $region47: #{atrous_bottleneck_nhwc.5} parent=39 // pred_region
        _
      $region48: #{atrous_bottleneck_nhwc.5} parent=39 // pred_fallthru
        _
    $region40: #{atrous_bottleneck_nhwc.5} parent=5 // pred_fallthru
      _
    %p2874 = scmp.le.s32.totalorder 2, %s13
    // Predicated region
    $region49: #{atrous_bottleneck_nhwc.5} parent=5 // pred_check
      %p2875 = pneg %p2874
    $region50: #{atrous_bottleneck_nhwc.5} parent=5 // pred_check_branch
      %2877 = sbr.rel (%p2875) target = $region52
    $region51: #{atrous_bottleneck_nhwc.5} parent=5 // pred_region
      %s2878 = ssub.s32 %s13, 2
      // Predicated region
      $region53: #{atrous_bottleneck_nhwc.5} parent=51 // pred_check
        %p2879 = pneg %p198
      $region54: #{atrous_bottleneck_nhwc.5} parent=51 // pred_check_branch
        %2881 = sbr.rel (%p2879) target = $region56
      $region55: #{atrous_bottleneck_nhwc.5} parent=51 // pred_region
        %s2882 = smul.u32 16, %s25
        %p2883 = scmp.lt.s32.totalorder %s24, 1
        %s2884 = scalar_select %p2883, %s24, 1
        %p2885 = scmp.lt.s32.totalorder %s2882, 15
        %s2886 = scalar_select %p2885, %s2882, 15
        %s2887 = smul.addr %s2886, 2
        %s2888 = smul.addr %s2884, 32
        %s2889 = sadd.s32 %s2887, %s2888
        %s2890 = smul.addr %s2889, 8
        %s2891 = scalar_lea.vmem %s5, %s2890
      $region56: #{atrous_bottleneck_nhwc.5} parent=51 // pred_fallthru
        _
      // Predicated region
      $region57: #{atrous_bottleneck_nhwc.5} parent=51 // pred_check
        %p2892 = pneg %p226
      $region58: #{atrous_bottleneck_nhwc.5} parent=51 // pred_check_branch
        %2894 = sbr.rel (%p2892) target = $region60
      $region59: #{atrous_bottleneck_nhwc.5} parent=51 // pred_region
        %p2895 = scmp.lt.s32.totalorder %s24, 1
        %s2896 = scalar_select %p2895, %s24, 1
        %p2897 = scmp.lt.s32.totalorder %s25, 0
        %s2898 = scalar_select %p2897, %s25, 0
        %s2899 = sadd.s32 %s2898, %s2896
        %s2900 = smul.addr %s2899, 2
        %s2901 = scalar_lea.vmem %s6, %s2900
      $region60: #{atrous_bottleneck_nhwc.5} parent=51 // pred_fallthru
        _
    $region52: #{atrous_bottleneck_nhwc.5} parent=5 // pred_fallthru
      _
  $region6: #{atrous_bottleneck_nhwc.5} parent=0 // loop_footer
    %s17 = sadd.s32 1, %s13
  $region7: #{atrous_bottleneck_nhwc.5} parent=0 // loop_footer_branch
    %12 = sbr.rel target = $region3
  $region8: #{atrous_bottleneck_nhwc.5} parent=0 // loop_exit
    _

</llo_original>
